<compile_context>
chip_gen: v6e
topology: v6e:2x2x1
jax: 0.10.0
libtpu: 0.0.40
codegen_flags: <defaults>
</compile_context>

<pallas_src>
import math
from functools import partial

import jax
import jax.numpy as jnp
from jax.experimental import pallas as pl
from jax.experimental.pallas import tpu as pltpu


# ---------------------------------------------------------------------------
# Pallas kernel: shared by the stride-2 conv and the stride-2 conv-transpose.
# ---------------------------------------------------------------------------
def _s2d_conv_kernel(x_ref, w_ref, b_ref, o_ref, *, wrow, act):
    """out[r, :] = act( sum_t x[r + shift_t, :] @ W_t + b ),  shifts = {0, 1, wrow, wrow+1}.

    x_ref : (M + wrow + 1, K)  bf16   flattened single-image rows + halo rows
    w_ref : (4, K, Nout)       bf16   one (K, Nout) matrix per tap
    b_ref : (1, Nout)          f32
    o_ref : (M, Nout)                 flattened output rows (junk halo rows included;
                                      the wrapper crops them after reshaping)
    """
    m = o_ref.shape[0]
    acc = jnp.dot(x_ref[0:m, :], w_ref[0], preferred_element_type=jnp.float32)
    acc = acc + jnp.dot(x_ref[1:1 + m, :], w_ref[1],
                        preferred_element_type=jnp.float32)
    acc = acc + jnp.dot(x_ref[wrow:wrow + m, :], w_ref[2],
                        preferred_element_type=jnp.float32)
    acc = acc + jnp.dot(x_ref[wrow + 1:wrow + 1 + m, :], w_ref[3],
                        preferred_element_type=jnp.float32)
    acc = acc + b_ref[...]
    if act == "relu":
        acc = jnp.maximum(acc, 0.0)
    elif act == "tanh":
        acc = jnp.tanh(acc)
    o_ref[...] = acc.astype(o_ref.dtype)


def _launch(flat, w_taps, b, wrow, act, m_img, out_dtype):
    """Batch-parallel pallas_call: one image (plus halo) per grid step."""
    N, mp, K = flat.shape
    nout = w_taps.shape[2]
    in_bytes = mp * K * flat.dtype.itemsize
    out_bytes = m_img * nout * jnp.dtype(out_dtype).itemsize
    acc_bytes = m_img * nout * 4
    w_bytes = w_taps.size * 2 + nout * 4
    est = 2 * (in_bytes + out_bytes) + acc_bytes + w_bytes + (8 << 20)
    return pl.pallas_call(
        partial(_s2d_conv_kernel, wrow=wrow, act=act),
        grid=(N,),
        out_shape=jax.ShapeDtypeStruct((N, m_img, nout), out_dtype),
        in_specs=[
            pl.BlockSpec((None, mp, K), lambda n: (n, 0, 0)),
            pl.BlockSpec(w_taps.shape, lambda n: (0, 0, 0)),
            pl.BlockSpec(b.shape, lambda n: (0, 0)),
        ],
        out_specs=pl.BlockSpec((None, m_img, nout), lambda n: (n, 0, 0)),
        compiler_params=pltpu.CompilerParams(
            dimension_semantics=("parallel",),
            vmem_limit_bytes=int(min(max(est, 32 << 20), 64 << 20)),
        ),
    )(flat, w_taps, b)


# ---------------------------------------------------------------------------
# Layer wrappers (layout glue is plain JAX at ~1x data size; compute is Pallas)
# ---------------------------------------------------------------------------
def conv2d_s2(x, w_taps, b, act, out_dtype=jnp.bfloat16):
    """nn.Conv2d(Ci, Co, kernel_size=4, stride=2, padding=1) + activation (NHWC)."""
    N, H, W, Ci = x.shape
    K, Co = w_taps.shape[1], w_taps.shape[2]          # K = 4*Ci (phases along K)
    Ho, Wo = H // 2, W // 2
    Hm, Wm = Ho + 1, Wo + 1
    # pad=1, then space-to-depth (factor 2): (N, Hm, Wm, 4*Ci), channel order (pr,pc,c)
    xp = jnp.pad(x, ((0, 0), (1, 1), (1, 1), (0, 0)))
    u = xp.reshape(N, Hm, 2, Wm, 2, Ci).transpose(0, 1, 3, 2, 4, 5)
    m_img = Hm * Wm
    flat = u.reshape(N, m_img, 4 * Ci)
    if 4 * Ci < K:                                    # (not hit for this model)
        flat = jnp.pad(flat, ((0, 0), (0, 0), (0, K - 4 * Ci)))
    flat = jnp.pad(flat, ((0, 0), (0, Wm + 1), (0, 0)))   # halo rows for max shift
    out = _launch(flat, w_taps, b, Wm, act, m_img, out_dtype)
    # drop junk halo rows -> (N, Ho, Wo, Co)
    return out.reshape(N, Hm, Wm, Co)[:, :Ho, :Wo, :]


def _convt_s2_std(x, w_taps, b, act, out_dtype):
    """ConvTranspose2d(Ci, Co, 4, 2, 1) computed in the space-to-depth layout of the
    un-cropped output.  Returns (N, Hi+2, Wi+2, 2, 2, Co) indexed (n, a, b, pr, pc, co)
    with y_uncropped[n, 2a+pr, 2b+pc, co] = value (out-of-range entries are junk)."""
    N, Hi, Wi, Ci = x.shape
    K, No = w_taps.shape[1], w_taps.shape[2]          # No = 4*Co (phases along lanes)
    Co = No // 4
    Hg, Wg = Hi + 2, Wi + 2
    xp = jnp.pad(x, ((0, 0), (1, 1), (1, 1), (0, 0)))
    m_img = Hg * Wg
    flat = xp.reshape(N, m_img, Ci)
    if Ci < K:                                        # (not hit for this model)
        flat = jnp.pad(flat, ((0, 0), (0, 0), (0, K - Ci)))
    flat = jnp.pad(flat, ((0, 0), (0, Wg + 1), (0, 0)))   # halo rows for max shift
    out = _launch(flat, w_taps, b, Wg, act, m_img, out_dtype)
    return out.reshape(N, Hg, Wg, 2, 2, Co)


def conv_transpose2d_s2(x, w_taps, b, act, out_dtype=jnp.bfloat16):
    """nn.ConvTranspose2d(Ci, Co, kernel_size=4, stride=2, padding=1) + act (NHWC)."""
    N, Hi, Wi, _ = x.shape
    std = _convt_s2_std(x, w_taps, b, act, out_dtype)
    Co = std.shape[-1]
    # depth-to-space + crop the ConvT "padding=1" border
    y = std.transpose(0, 1, 3, 2, 4, 5).reshape(N, 2 * (Hi + 2), 2 * (Wi + 2), Co)
    return y[:, 1:2 * Hi + 1, 1:2 * Wi + 1, :]


# ---------------------------------------------------------------------------
# Parameters: PyTorch-layout init + one-time kernel-layout preparation
# ---------------------------------------------------------------------------
def init_params(key, c_in):
    ks = jax.random.split(key, 8)

    def u(k, shape, fan_in):
        bound = 1.0 / math.sqrt(fan_in)
        return jax.random.uniform(k, shape, jnp.float32, -bound, bound)

    return {
        "enc1_w": u(ks[0], (64, c_in, 4, 4), c_in * 16),   # Conv2d(c_in, 64, 4, 2, 1)
        "enc1_b": u(ks[1], (64,), c_in * 16),
        "enc2_w": u(ks[2], (128, 64, 4, 4), 64 * 16),      # Conv2d(64, 128, 4, 2, 1)
        "enc2_b": u(ks[3], (128,), 64 * 16),
        "dec1_w": u(ks[4], (128, 64, 4, 4), 64 * 16),      # ConvT(128, 64, 4, 2, 1)
        "dec1_b": u(ks[5], (64,), 64 * 16),
        "dec2_w": u(ks[6], (64, c_in, 4, 4), c_in * 16),   # ConvT(64, c_in, 4, 2, 1)
        "dec2_b": u(ks[7], (c_in,), c_in * 16),
    }


def prepare_params(params):
    """One-time re-layout to kernel form (outside jit).

    Conv : (Co, Ci, 4, 4) -> (4, 4*Ci, Co)  tap t = di*2+dj; the 4 input parity
           phases (pr,pc) are concatenated along K (matching the space-to-depth
           input channel order (pr, pc, ci)).
    ConvT: (Ci, Co, 4, 4) -> (4, Ci, 4*Co)  tap t = si*2+sj (si = 1-di); the 4
           OUTPUT phases (pr, pc) are concatenated along the lane/N axis.
    """
    def conv_taps(w):
        co, ci = w.shape[0], w.shape[1]
        taps = []
        for di in range(2):
            for dj in range(2):
                blk = w[:, :, 2 * di:2 * di + 2, 2 * dj:2 * dj + 2]   # (Co,Ci,pr,pc)
                taps.append(jnp.transpose(blk, (2, 3, 1, 0)).reshape(4 * ci, co))
        return jnp.stack(taps, 0).astype(jnp.bfloat16)

    def convt_taps(w):
        ci, co = w.shape[0], w.shape[1]
        taps = []
        for si in range(2):
            for sj in range(2):
                di, dj = 1 - si, 1 - sj
                blk = w[:, :, 2 * di:2 * di + 2, 2 * dj:2 * dj + 2]   # (Ci,Co,pr,pc)
                taps.append(jnp.transpose(blk, (0, 2, 3, 1)).reshape(ci, 4 * co))
        return jnp.stack(taps, 0).astype(jnp.bfloat16)

    def bias(b):
        return b.reshape(1, -1).astype(jnp.float32)

    def bias4(b):  # bias repeated for each of the 4 output phases (pr, pc, co order)
        return jnp.tile(b, (4,)).reshape(1, -1).astype(jnp.float32)

    return {
        "enc1_w": conv_taps(params["enc1_w"]), "enc1_b": bias(params["enc1_b"]),
        "enc2_w": conv_taps(params["enc2_w"]), "enc2_b": bias(params["enc2_b"]),
        "dec1_w": convt_taps(params["dec1_w"]), "dec1_b": bias4(params["dec1_b"]),
        "dec2_w": convt_taps(params["dec2_w"]), "dec2_b": bias4(params["dec2_b"]),
    }


# ---------------------------------------------------------------------------
# Forward pass
# ---------------------------------------------------------------------------
@jax.jit
def adversarial_autoencoder_forward(kparams, x_nchw):
    x = jnp.transpose(x_nchw, (0, 2, 3, 1)).astype(jnp.bfloat16)   # NCHW -> NHWC bf16
    x = conv2d_s2(x, kparams["enc1_w"], kparams["enc1_b"], "relu")
    x = conv2d_s2(x, kparams["enc2_w"], kparams["enc2_b"], "relu")
    x = conv_transpose2d_s2(x, kparams["dec1_w"], kparams["dec1_b"], "relu")
    # Last layer: keep f32 and fold depth-to-space + NHWC->NCHW into ONE transpose.
    N, Hi, Wi, _ = x.shape
    std = _convt_s2_std(x, kparams["dec2_w"], kparams["dec2_b"], "tanh", jnp.float32)
    Co = std.shape[-1]
    y = std.transpose(0, 5, 1, 3, 2, 4).reshape(N, Co, 2 * (Hi + 2), 2 * (Wi + 2))
    return y[:, :, 1:2 * Hi + 1, 1:2 * Wi + 1]


# ---------------------------------------------------------------------------
# Pure-XLA reference (same bf16 operand quantization) for a correctness check
# ---------------------------------------------------------------------------
def _ref_forward(params, x_nchw):
    q = lambda a: a.astype(jnp.bfloat16).astype(jnp.float32)
    dn = ("NHWC", "HWIO", "NHWC")
    hp = jax.lax.Precision.HIGHEST

    def conv(x, w, b):
        w_hwio = jnp.transpose(q(w), (2, 3, 1, 0))
        y = jax.lax.conv_general_dilated(x, w_hwio, (2, 2), ((1, 1), (1, 1)),
                                         dimension_numbers=dn, precision=hp)
        return y + b

    def convt(x, w, b):
        w_hwio = jnp.transpose(jnp.flip(q(w), (2, 3)), (2, 3, 0, 1))
        y = jax.lax.conv_general_dilated(x, w_hwio, (1, 1), ((2, 2), (2, 2)),
                                         lhs_dilation=(2, 2),
                                         dimension_numbers=dn, precision=hp)
        return y + b

    x = jnp.transpose(q(x_nchw), (0, 2, 3, 1))
    x = q(jax.nn.relu(conv(x, params["enc1_w"], params["enc1_b"])))
    x = q(jax.nn.relu(conv(x, params["enc2_w"], params["enc2_b"])))
    x = q(jax.nn.relu(convt(x, params["dec1_w"], params["dec1_b"])))
    x = jnp.tanh(convt(x, params["dec2_w"], params["dec2_b"]))
    return jnp.transpose(x, (0, 3, 1, 2))


if __name__ == "__main__":
    key = jax.random.PRNGKey(0)
    k_param, k_x = jax.random.split(key)

    B, C, H, W = 2, 4, 16, 16
    params = init_params(k_param, C)
    kparams = prepare_params(params)            # one-time weight re-layout, outside jit
    x = jax.random.normal(k_x, (B, C, H, W), jnp.float32)

    out = adversarial_autoencoder_forward(kparams, x)
    jax.block_until_ready(out)

    assert out.shape == (B, C, H, W), out.shape
    assert out.dtype == jnp.float32

    ref = _ref_forward(params, x)
    err = float(jnp.max(jnp.abs(out - ref)))
    assert err < 2e-2, f"numerical mismatch vs XLA reference: max abs err = {err}"

    print("KERNEL_OK")
</pallas_src>

<mosaic_0001>
module attributes {stable_mosaic.version = 11 : i64} {
  func.func @_s2d_conv_kernel(%arg0: i32, %arg1: memref<1x91x16xbf16, #tpu.memory_space<vmem>>, %arg2: memref<4x16x64xbf16, #tpu.memory_space<vmem>>, %arg3: memref<1x64xf32, #tpu.memory_space<vmem>>, %arg4: memref<1x81x64xbf16, #tpu.memory_space<vmem>>) attributes {dimension_semantics = [#tpu.dimension_semantics<parallel>], iteration_bounds = array<i64: 2>, scalar_prefetch = 0 : i64, scratch_operands = 0 : i64, tpu.core_type = #tpu.core_type<tc>, window_params = [{transform_indices = @transform_0, window_bounds = array<i64: 1, 91, 16>}, {pipeline_mode = #tpu.pipeline_mode<synchronous>, transform_indices = @transform_1, window_bounds = array<i64: 4, 16, 64>}, {pipeline_mode = #tpu.pipeline_mode<synchronous>, transform_indices = @transform_2, window_bounds = array<i64: 1, 64>}, {transform_indices = @transform_3, window_bounds = array<i64: 1, 81, 64>}]} {
    %c0 = arith.constant 0 : index
    %c0_0 = arith.constant 0 : index
    %c0_1 = arith.constant 0 : index
    %0 = vector.load %arg1[%c0, %c0_0, %c0_1] : memref<1x91x16xbf16, #tpu.memory_space<vmem>>, vector<1x81x16xbf16>
    %1 = vector.shape_cast %0 : vector<1x81x16xbf16> to vector<81x16xbf16>
    %c0_2 = arith.constant 0 : index
    %c0_3 = arith.constant 0 : index
    %c0_4 = arith.constant 0 : index
    %2 = vector.load %arg2[%c0_2, %c0_3, %c0_4] : memref<4x16x64xbf16, #tpu.memory_space<vmem>>, vector<1x16x64xbf16>
    %3 = vector.shape_cast %2 : vector<1x16x64xbf16> to vector<16x64xbf16>
    %cst = arith.constant dense<0.000000e+00> : vector<81x64xf32>
    %4 = tpu.matmul %1, %3, %cst {dimension_numbers = #tpu.dot_dimension_numbers<[1], [0], [0], [1], [0, 0, 1, 1], [], []>} : vector<81x16xbf16>, vector<16x64xbf16>, vector<81x64xf32> -> vector<81x64xf32>
    %c0_5 = arith.constant 0 : index
    %c1 = arith.constant 1 : index
    %c0_6 = arith.constant 0 : index
    %5 = vector.load %arg1[%c0_5, %c1, %c0_6] : memref<1x91x16xbf16, #tpu.memory_space<vmem>>, vector<1x81x16xbf16>
    %6 = vector.shape_cast %5 : vector<1x81x16xbf16> to vector<81x16xbf16>
    %c1_7 = arith.constant 1 : index
    %c0_8 = arith.constant 0 : index
    %c0_9 = arith.constant 0 : index
    %7 = vector.load %arg2[%c1_7, %c0_8, %c0_9] : memref<4x16x64xbf16, #tpu.memory_space<vmem>>, vector<1x16x64xbf16>
    %8 = vector.shape_cast %7 : vector<1x16x64xbf16> to vector<16x64xbf16>
    %cst_10 = arith.constant dense<0.000000e+00> : vector<81x64xf32>
    %9 = tpu.matmul %6, %8, %cst_10 {dimension_numbers = #tpu.dot_dimension_numbers<[1], [0], [0], [1], [0, 0, 1, 1], [], []>} : vector<81x16xbf16>, vector<16x64xbf16>, vector<81x64xf32> -> vector<81x64xf32>
    %10 = arith.addf %4, %9 : vector<81x64xf32>
    %c0_11 = arith.constant 0 : index
    %c9 = arith.constant 9 : index
    %c0_12 = arith.constant 0 : index
    %11 = vector.load %arg1[%c0_11, %c9, %c0_12] : memref<1x91x16xbf16, #tpu.memory_space<vmem>>, vector<1x81x16xbf16>
    %12 = vector.shape_cast %11 : vector<1x81x16xbf16> to vector<81x16xbf16>
    %c2 = arith.constant 2 : index
    %c0_13 = arith.constant 0 : index
    %c0_14 = arith.constant 0 : index
    %13 = vector.load %arg2[%c2, %c0_13, %c0_14] : memref<4x16x64xbf16, #tpu.memory_space<vmem>>, vector<1x16x64xbf16>
    %14 = vector.shape_cast %13 : vector<1x16x64xbf16> to vector<16x64xbf16>
    %cst_15 = arith.constant dense<0.000000e+00> : vector<81x64xf32>
    %15 = tpu.matmul %12, %14, %cst_15 {dimension_numbers = #tpu.dot_dimension_numbers<[1], [0], [0], [1], [0, 0, 1, 1], [], []>} : vector<81x16xbf16>, vector<16x64xbf16>, vector<81x64xf32> -> vector<81x64xf32>
    %16 = arith.addf %10, %15 : vector<81x64xf32>
    %c0_16 = arith.constant 0 : index
    %c10 = arith.constant 10 : index
    %c0_17 = arith.constant 0 : index
    %17 = vector.load %arg1[%c0_16, %c10, %c0_17] : memref<1x91x16xbf16, #tpu.memory_space<vmem>>, vector<1x81x16xbf16>
    %18 = vector.shape_cast %17 : vector<1x81x16xbf16> to vector<81x16xbf16>
    %c3 = arith.constant 3 : index
    %c0_18 = arith.constant 0 : index
    %c0_19 = arith.constant 0 : index
    %19 = vector.load %arg2[%c3, %c0_18, %c0_19] : memref<4x16x64xbf16, #tpu.memory_space<vmem>>, vector<1x16x64xbf16>
    %20 = vector.shape_cast %19 : vector<1x16x64xbf16> to vector<16x64xbf16>
    %cst_20 = arith.constant dense<0.000000e+00> : vector<81x64xf32>
    %21 = tpu.matmul %18, %20, %cst_20 {dimension_numbers = #tpu.dot_dimension_numbers<[1], [0], [0], [1], [0, 0, 1, 1], [], []>} : vector<81x16xbf16>, vector<16x64xbf16>, vector<81x64xf32> -> vector<81x64xf32>
    %22 = arith.addf %16, %21 : vector<81x64xf32>
    %c0_21 = arith.constant 0 : index
    %c0_22 = arith.constant 0 : index
    %23 = vector.load %arg3[%c0_21, %c0_22] : memref<1x64xf32, #tpu.memory_space<vmem>>, vector<1x64xf32>
    %24 = vector.broadcast %23 : vector<1x64xf32> to vector<81x64xf32>
    %25 = arith.addf %22, %24 : vector<81x64xf32>
    %cst_23 = arith.constant 0.000000e+00 : f32
    %26 = vector.broadcast %cst_23 : f32 to vector<81x64xf32>
    %27 = arith.maximumf %25, %26 : vector<81x64xf32>
    %28 = arith.truncf %27 : vector<81x64xf32> to vector<81x64xbf16>
    %c0_24 = arith.constant 0 : index
    %c0_25 = arith.constant 0 : index
    %c0_26 = arith.constant 0 : index
    %29 = vector.load %arg4[%c0_24, %c0_25, %c0_26] : memref<1x81x64xbf16, #tpu.memory_space<vmem>>, vector<1x81x64xbf16>
    %30 = vector.shape_cast %29 : vector<1x81x64xbf16> to vector<81x64xbf16>
    %31 = vector.shape_cast %28 : vector<81x64xbf16> to vector<1x81x64xbf16>
    tpu.vector_store %arg4[%c0_24, %c0_25, %c0_26], %31 {strides = array<i32>} : memref<1x81x64xbf16, #tpu.memory_space<vmem>>, vector<1x81x64xbf16>,
    return
  }
  func.func @transform_0(%arg0: i32) -> (i32, i32, i32) {
    %c0_i32 = arith.constant 0 : i32
    %c0_i32_0 = arith.constant 0 : i32
    %c0_i32_1 = arith.constant 0 : i32
    return %arg0, %c0_i32, %c0_i32_0 : i32, i32, i32
  }
  func.func @transform_1(%arg0: i32) -> (i32, i32, i32) {
    %c0_i32 = arith.constant 0 : i32
    %c0_i32_0 = arith.constant 0 : i32
    %c0_i32_1 = arith.constant 0 : i32
    %c0_i32_2 = arith.constant 0 : i32
    return %c0_i32, %c0_i32_0, %c0_i32_1 : i32, i32, i32
  }
  func.func @transform_2(%arg0: i32) -> (i32, i32) {
    %c0_i32 = arith.constant 0 : i32
    %c0_i32_0 = arith.constant 0 : i32
    %c0_i32_1 = arith.constant 0 : i32
    return %c0_i32, %c0_i32_0 : i32, i32
  }
  func.func @transform_3(%arg0: i32) -> (i32, i32, i32) {
    %c0_i32 = arith.constant 0 : i32
    %c0_i32_0 = arith.constant 0 : i32
    %c0_i32_1 = arith.constant 0 : i32
    return %arg0, %c0_i32, %c0_i32_0 : i32, i32, i32
  }
}

module attributes {stable_mosaic.version = 11 : i64} {
  func.func @_s2d_conv_kernel(%arg0: i32, %arg1: memref<1x31x256xbf16, #tpu.memory_space<vmem>>, %arg2: memref<4x256x128xbf16, #tpu.memory_space<vmem>>, %arg3: memref<1x128xf32, #tpu.memory_space<vmem>>, %arg4: memref<1x25x128xbf16, #tpu.memory_space<vmem>>) attributes {dimension_semantics = [#tpu.dimension_semantics<parallel>], iteration_bounds = array<i64: 2>, scalar_prefetch = 0 : i64, scratch_operands = 0 : i64, tpu.core_type = #tpu.core_type<tc>, window_params = [{transform_indices = @transform_0, window_bounds = array<i64: 1, 31, 256>}, {pipeline_mode = #tpu.pipeline_mode<synchronous>, transform_indices = @transform_1, window_bounds = array<i64: 4, 256, 128>}, {pipeline_mode = #tpu.pipeline_mode<synchronous>, transform_indices = @transform_2, window_bounds = array<i64: 1, 128>}, {transform_indices = @transform_3, window_bounds = array<i64: 1, 25, 128>}]} {
    %c0 = arith.constant 0 : index
    %c0_0 = arith.constant 0 : index
    %c0_1 = arith.constant 0 : index
    %0 = vector.load %arg1[%c0, %c0_0, %c0_1] : memref<1x31x256xbf16, #tpu.memory_space<vmem>>, vector<1x25x256xbf16>
    %1 = vector.shape_cast %0 : vector<1x25x256xbf16> to vector<25x256xbf16>
    %c0_2 = arith.constant 0 : index
    %c0_3 = arith.constant 0 : index
    %c0_4 = arith.constant 0 : index
    %2 = vector.load %arg2[%c0_2, %c0_3, %c0_4] : memref<4x256x128xbf16, #tpu.memory_space<vmem>>, vector<1x256x128xbf16>
    %3 = vector.shape_cast %2 : vector<1x256x128xbf16> to vector<256x128xbf16>
    %cst = arith.constant dense<0.000000e+00> : vector<25x128xf32>
    %4 = tpu.matmul %1, %3, %cst {dimension_numbers = #tpu.dot_dimension_numbers<[1], [0], [0], [1], [0, 0, 1, 1], [], []>} : vector<25x256xbf16>, vector<256x128xbf16>, vector<25x128xf32> -> vector<25x128xf32>
    %c0_5 = arith.constant 0 : index
    %c1 = arith.constant 1 : index
    %c0_6 = arith.constant 0 : index
    %5 = vector.load %arg1[%c0_5, %c1, %c0_6] : memref<1x31x256xbf16, #tpu.memory_space<vmem>>, vector<1x25x256xbf16>
    %6 = vector.shape_cast %5 : vector<1x25x256xbf16> to vector<25x256xbf16>
    %c1_7 = arith.constant 1 : index
    %c0_8 = arith.constant 0 : index
    %c0_9 = arith.constant 0 : index
    %7 = vector.load %arg2[%c1_7, %c0_8, %c0_9] : memref<4x256x128xbf16, #tpu.memory_space<vmem>>, vector<1x256x128xbf16>
    %8 = vector.shape_cast %7 : vector<1x256x128xbf16> to vector<256x128xbf16>
    %cst_10 = arith.constant dense<0.000000e+00> : vector<25x128xf32>
    %9 = tpu.matmul %6, %8, %cst_10 {dimension_numbers = #tpu.dot_dimension_numbers<[1], [0], [0], [1], [0, 0, 1, 1], [], []>} : vector<25x256xbf16>, vector<256x128xbf16>, vector<25x128xf32> -> vector<25x128xf32>
    %10 = arith.addf %4, %9 : vector<25x128xf32>
    %c0_11 = arith.constant 0 : index
    %c5 = arith.constant 5 : index
    %c0_12 = arith.constant 0 : index
    %11 = vector.load %arg1[%c0_11, %c5, %c0_12] : memref<1x31x256xbf16, #tpu.memory_space<vmem>>, vector<1x25x256xbf16>
    %12 = vector.shape_cast %11 : vector<1x25x256xbf16> to vector<25x256xbf16>
    %c2 = arith.constant 2 : index
    %c0_13 = arith.constant 0 : index
    %c0_14 = arith.constant 0 : index
    %13 = vector.load %arg2[%c2, %c0_13, %c0_14] : memref<4x256x128xbf16, #tpu.memory_space<vmem>>, vector<1x256x128xbf16>
    %14 = vector.shape_cast %13 : vector<1x256x128xbf16> to vector<256x128xbf16>
    %cst_15 = arith.constant dense<0.000000e+00> : vector<25x128xf32>
    %15 = tpu.matmul %12, %14, %cst_15 {dimension_numbers = #tpu.dot_dimension_numbers<[1], [0], [0], [1], [0, 0, 1, 1], [], []>} : vector<25x256xbf16>, vector<256x128xbf16>, vector<25x128xf32> -> vector<25x128xf32>
    %16 = arith.addf %10, %15 : vector<25x128xf32>
    %c0_16 = arith.constant 0 : index
    %c6 = arith.constant 6 : index
    %c0_17 = arith.constant 0 : index
    %17 = vector.load %arg1[%c0_16, %c6, %c0_17] : memref<1x31x256xbf16, #tpu.memory_space<vmem>>, vector<1x25x256xbf16>
    %18 = vector.shape_cast %17 : vector<1x25x256xbf16> to vector<25x256xbf16>
    %c3 = arith.constant 3 : index
    %c0_18 = arith.constant 0 : index
    %c0_19 = arith.constant 0 : index
    %19 = vector.load %arg2[%c3, %c0_18, %c0_19] : memref<4x256x128xbf16, #tpu.memory_space<vmem>>, vector<1x256x128xbf16>
    %20 = vector.shape_cast %19 : vector<1x256x128xbf16> to vector<256x128xbf16>
    %cst_20 = arith.constant dense<0.000000e+00> : vector<25x128xf32>
    %21 = tpu.matmul %18, %20, %cst_20 {dimension_numbers = #tpu.dot_dimension_numbers<[1], [0], [0], [1], [0, 0, 1, 1], [], []>} : vector<25x256xbf16>, vector<256x128xbf16>, vector<25x128xf32> -> vector<25x128xf32>
    %22 = arith.addf %16, %21 : vector<25x128xf32>
    %c0_21 = arith.constant 0 : index
    %c0_22 = arith.constant 0 : index
    %23 = vector.load %arg3[%c0_21, %c0_22] : memref<1x128xf32, #tpu.memory_space<vmem>>, vector<1x128xf32>
    %24 = vector.broadcast %23 : vector<1x128xf32> to vector<25x128xf32>
    %25 = arith.addf %22, %24 : vector<25x128xf32>
    %cst_23 = arith.constant 0.000000e+00 : f32
    %26 = vector.broadcast %cst_23 : f32 to vector<25x128xf32>
    %27 = arith.maximumf %25, %26 : vector<25x128xf32>
    %28 = arith.truncf %27 : vector<25x128xf32> to vector<25x128xbf16>
    %c0_24 = arith.constant 0 : index
    %c0_25 = arith.constant 0 : index
    %c0_26 = arith.constant 0 : index
    %29 = vector.load %arg4[%c0_24, %c0_25, %c0_26] : memref<1x25x128xbf16, #tpu.memory_space<vmem>>, vector<1x25x128xbf16>
    %30 = vector.shape_cast %29 : vector<1x25x128xbf16> to vector<25x128xbf16>
    %31 = vector.shape_cast %28 : vector<25x128xbf16> to vector<1x25x128xbf16>
    tpu.vector_store %arg4[%c0_24, %c0_25, %c0_26], %31 {strides = array<i32>} : memref<1x25x128xbf16, #tpu.memory_space<vmem>>, vector<1x25x128xbf16>,
    return
  }
  func.func @transform_0(%arg0: i32) -> (i32, i32, i32) {
    %c0_i32 = arith.constant 0 : i32
    %c0_i32_0 = arith.constant 0 : i32
    %c0_i32_1 = arith.constant 0 : i32
    return %arg0, %c0_i32, %c0_i32_0 : i32, i32, i32
  }
  func.func @transform_1(%arg0: i32) -> (i32, i32, i32) {
    %c0_i32 = arith.constant 0 : i32
    %c0_i32_0 = arith.constant 0 : i32
    %c0_i32_1 = arith.constant 0 : i32
    %c0_i32_2 = arith.constant 0 : i32
    return %c0_i32, %c0_i32_0, %c0_i32_1 : i32, i32, i32
  }
  func.func @transform_2(%arg0: i32) -> (i32, i32) {
    %c0_i32 = arith.constant 0 : i32
    %c0_i32_0 = arith.constant 0 : i32
    %c0_i32_1 = arith.constant 0 : i32
    return %c0_i32, %c0_i32_0 : i32, i32
  }
  func.func @transform_3(%arg0: i32) -> (i32, i32, i32) {
    %c0_i32 = arith.constant 0 : i32
    %c0_i32_0 = arith.constant 0 : i32
    %c0_i32_1 = arith.constant 0 : i32
    return %arg0, %c0_i32, %c0_i32_0 : i32, i32, i32
  }
}

module attributes {stable_mosaic.version = 11 : i64} {
  func.func @_s2d_conv_kernel(%arg0: i32, %arg1: memref<1x43x128xbf16, #tpu.memory_space<vmem>>, %arg2: memref<4x128x256xbf16, #tpu.memory_space<vmem>>, %arg3: memref<1x256xf32, #tpu.memory_space<vmem>>, %arg4: memref<1x36x256xbf16, #tpu.memory_space<vmem>>) attributes {dimension_semantics = [#tpu.dimension_semantics<parallel>], iteration_bounds = array<i64: 2>, scalar_prefetch = 0 : i64, scratch_operands = 0 : i64, tpu.core_type = #tpu.core_type<tc>, window_params = [{transform_indices = @transform_0, window_bounds = array<i64: 1, 43, 128>}, {pipeline_mode = #tpu.pipeline_mode<synchronous>, transform_indices = @transform_1, window_bounds = array<i64: 4, 128, 256>}, {pipeline_mode = #tpu.pipeline_mode<synchronous>, transform_indices = @transform_2, window_bounds = array<i64: 1, 256>}, {transform_indices = @transform_3, window_bounds = array<i64: 1, 36, 256>}]} {
    %c0 = arith.constant 0 : index
    %c0_0 = arith.constant 0 : index
    %c0_1 = arith.constant 0 : index
    %0 = vector.load %arg1[%c0, %c0_0, %c0_1] : memref<1x43x128xbf16, #tpu.memory_space<vmem>>, vector<1x36x128xbf16>
    %1 = vector.shape_cast %0 : vector<1x36x128xbf16> to vector<36x128xbf16>
    %c0_2 = arith.constant 0 : index
    %c0_3 = arith.constant 0 : index
    %c0_4 = arith.constant 0 : index
    %2 = vector.load %arg2[%c0_2, %c0_3, %c0_4] : memref<4x128x256xbf16, #tpu.memory_space<vmem>>, vector<1x128x256xbf16>
    %3 = vector.shape_cast %2 : vector<1x128x256xbf16> to vector<128x256xbf16>
    %cst = arith.constant dense<0.000000e+00> : vector<36x256xf32>
    %4 = tpu.matmul %1, %3, %cst {dimension_numbers = #tpu.dot_dimension_numbers<[1], [0], [0], [1], [0, 0, 1, 1], [], []>} : vector<36x128xbf16>, vector<128x256xbf16>, vector<36x256xf32> -> vector<36x256xf32>
    %c0_5 = arith.constant 0 : index
    %c1 = arith.constant 1 : index
    %c0_6 = arith.constant 0 : index
    %5 = vector.load %arg1[%c0_5, %c1, %c0_6] : memref<1x43x128xbf16, #tpu.memory_space<vmem>>, vector<1x36x128xbf16>
    %6 = vector.shape_cast %5 : vector<1x36x128xbf16> to vector<36x128xbf16>
    %c1_7 = arith.constant 1 : index
    %c0_8 = arith.constant 0 : index
    %c0_9 = arith.constant 0 : index
    %7 = vector.load %arg2[%c1_7, %c0_8, %c0_9] : memref<4x128x256xbf16, #tpu.memory_space<vmem>>, vector<1x128x256xbf16>
    %8 = vector.shape_cast %7 : vector<1x128x256xbf16> to vector<128x256xbf16>
    %cst_10 = arith.constant dense<0.000000e+00> : vector<36x256xf32>
    %9 = tpu.matmul %6, %8, %cst_10 {dimension_numbers = #tpu.dot_dimension_numbers<[1], [0], [0], [1], [0, 0, 1, 1], [], []>} : vector<36x128xbf16>, vector<128x256xbf16>, vector<36x256xf32> -> vector<36x256xf32>
    %10 = arith.addf %4, %9 : vector<36x256xf32>
    %c0_11 = arith.constant 0 : index
    %c6 = arith.constant 6 : index
    %c0_12 = arith.constant 0 : index
    %11 = vector.load %arg1[%c0_11, %c6, %c0_12] : memref<1x43x128xbf16, #tpu.memory_space<vmem>>, vector<1x36x128xbf16>
    %12 = vector.shape_cast %11 : vector<1x36x128xbf16> to vector<36x128xbf16>
    %c2 = arith.constant 2 : index
    %c0_13 = arith.constant 0 : index
    %c0_14 = arith.constant 0 : index
    %13 = vector.load %arg2[%c2, %c0_13, %c0_14] : memref<4x128x256xbf16, #tpu.memory_space<vmem>>, vector<1x128x256xbf16>
    %14 = vector.shape_cast %13 : vector<1x128x256xbf16> to vector<128x256xbf16>
    %cst_15 = arith.constant dense<0.000000e+00> : vector<36x256xf32>
    %15 = tpu.matmul %12, %14, %cst_15 {dimension_numbers = #tpu.dot_dimension_numbers<[1], [0], [0], [1], [0, 0, 1, 1], [], []>} : vector<36x128xbf16>, vector<128x256xbf16>, vector<36x256xf32> -> vector<36x256xf32>
    %16 = arith.addf %10, %15 : vector<36x256xf32>
    %c0_16 = arith.constant 0 : index
    %c7 = arith.constant 7 : index
    %c0_17 = arith.constant 0 : index
    %17 = vector.load %arg1[%c0_16, %c7, %c0_17] : memref<1x43x128xbf16, #tpu.memory_space<vmem>>, vector<1x36x128xbf16>
    %18 = vector.shape_cast %17 : vector<1x36x128xbf16> to vector<36x128xbf16>
    %c3 = arith.constant 3 : index
    %c0_18 = arith.constant 0 : index
    %c0_19 = arith.constant 0 : index
    %19 = vector.load %arg2[%c3, %c0_18, %c0_19] : memref<4x128x256xbf16, #tpu.memory_space<vmem>>, vector<1x128x256xbf16>
    %20 = vector.shape_cast %19 : vector<1x128x256xbf16> to vector<128x256xbf16>
    %cst_20 = arith.constant dense<0.000000e+00> : vector<36x256xf32>
    %21 = tpu.matmul %18, %20, %cst_20 {dimension_numbers = #tpu.dot_dimension_numbers<[1], [0], [0], [1], [0, 0, 1, 1], [], []>} : vector<36x128xbf16>, vector<128x256xbf16>, vector<36x256xf32> -> vector<36x256xf32>
    %22 = arith.addf %16, %21 : vector<36x256xf32>
    %c0_21 = arith.constant 0 : index
    %c0_22 = arith.constant 0 : index
    %23 = vector.load %arg3[%c0_21, %c0_22] : memref<1x256xf32, #tpu.memory_space<vmem>>, vector<1x256xf32>
    %24 = vector.broadcast %23 : vector<1x256xf32> to vector<36x256xf32>
    %25 = arith.addf %22, %24 : vector<36x256xf32>
    %cst_23 = arith.constant 0.000000e+00 : f32
    %26 = vector.broadcast %cst_23 : f32 to vector<36x256xf32>
    %27 = arith.maximumf %25, %26 : vector<36x256xf32>
    %28 = arith.truncf %27 : vector<36x256xf32> to vector<36x256xbf16>
    %c0_24 = arith.constant 0 : index
    %c0_25 = arith.constant 0 : index
    %c0_26 = arith.constant 0 : index
    %29 = vector.load %arg4[%c0_24, %c0_25, %c0_26] : memref<1x36x256xbf16, #tpu.memory_space<vmem>>, vector<1x36x256xbf16>
    %30 = vector.shape_cast %29 : vector<1x36x256xbf16> to vector<36x256xbf16>
    %31 = vector.shape_cast %28 : vector<36x256xbf16> to vector<1x36x256xbf16>
    tpu.vector_store %arg4[%c0_24, %c0_25, %c0_26], %31 {strides = array<i32>} : memref<1x36x256xbf16, #tpu.memory_space<vmem>>, vector<1x36x256xbf16>,
    return
  }
  func.func @transform_0(%arg0: i32) -> (i32, i32, i32) {
    %c0_i32 = arith.constant 0 : i32
    %c0_i32_0 = arith.constant 0 : i32
    %c0_i32_1 = arith.constant 0 : i32
    return %arg0, %c0_i32, %c0_i32_0 : i32, i32, i32
  }
  func.func @transform_1(%arg0: i32) -> (i32, i32, i32) {
    %c0_i32 = arith.constant 0 : i32
    %c0_i32_0 = arith.constant 0 : i32
    %c0_i32_1 = arith.constant 0 : i32
    %c0_i32_2 = arith.constant 0 : i32
    return %c0_i32, %c0_i32_0, %c0_i32_1 : i32, i32, i32
  }
  func.func @transform_2(%arg0: i32) -> (i32, i32) {
    %c0_i32 = arith.constant 0 : i32
    %c0_i32_0 = arith.constant 0 : i32
    %c0_i32_1 = arith.constant 0 : i32
    return %c0_i32, %c0_i32_0 : i32, i32
  }
  func.func @transform_3(%arg0: i32) -> (i32, i32, i32) {
    %c0_i32 = arith.constant 0 : i32
    %c0_i32_0 = arith.constant 0 : i32
    %c0_i32_1 = arith.constant 0 : i32
    return %arg0, %c0_i32, %c0_i32_0 : i32, i32, i32
  }
}

module attributes {stable_mosaic.version = 11 : i64} {
  func.func @_s2d_conv_kernel(%arg0: i32, %arg1: memref<1x111x64xbf16, #tpu.memory_space<vmem>>, %arg2: memref<4x64x16xbf16, #tpu.memory_space<vmem>>, %arg3: memref<1x16xf32, #tpu.memory_space<vmem>>, %arg4: memref<1x100x16xf32, #tpu.memory_space<vmem>>) attributes {dimension_semantics = [#tpu.dimension_semantics<parallel>], iteration_bounds = array<i64: 2>, scalar_prefetch = 0 : i64, scratch_operands = 0 : i64, tpu.core_type = #tpu.core_type<tc>, window_params = [{transform_indices = @transform_0, window_bounds = array<i64: 1, 111, 64>}, {pipeline_mode = #tpu.pipeline_mode<synchronous>, transform_indices = @transform_1, window_bounds = array<i64: 4, 64, 16>}, {pipeline_mode = #tpu.pipeline_mode<synchronous>, transform_indices = @transform_2, window_bounds = array<i64: 1, 16>}, {transform_indices = @transform_3, window_bounds = array<i64: 1, 100, 16>}]} {
    %c0 = arith.constant 0 : index
    %c0_0 = arith.constant 0 : index
    %c0_1 = arith.constant 0 : index
    %0 = vector.load %arg1[%c0, %c0_0, %c0_1] : memref<1x111x64xbf16, #tpu.memory_space<vmem>>, vector<1x100x64xbf16>
    %1 = vector.shape_cast %0 : vector<1x100x64xbf16> to vector<100x64xbf16>
    %c0_2 = arith.constant 0 : index
    %c0_3 = arith.constant 0 : index
    %c0_4 = arith.constant 0 : index
    %2 = vector.load %arg2[%c0_2, %c0_3, %c0_4] : memref<4x64x16xbf16, #tpu.memory_space<vmem>>, vector<1x64x16xbf16>
    %3 = vector.shape_cast %2 : vector<1x64x16xbf16> to vector<64x16xbf16>
    %cst = arith.constant dense<0.000000e+00> : vector<100x16xf32>
    %4 = tpu.matmul %1, %3, %cst {dimension_numbers = #tpu.dot_dimension_numbers<[1], [0], [0], [1], [0, 0, 1, 1], [], []>} : vector<100x64xbf16>, vector<64x16xbf16>, vector<100x16xf32> -> vector<100x16xf32>
    %c0_5 = arith.constant 0 : index
    %c1 = arith.constant 1 : index
    %c0_6 = arith.constant 0 : index
    %5 = vector.load %arg1[%c0_5, %c1, %c0_6] : memref<1x111x64xbf16, #tpu.memory_space<vmem>>, vector<1x100x64xbf16>
    %6 = vector.shape_cast %5 : vector<1x100x64xbf16> to vector<100x64xbf16>
    %c1_7 = arith.constant 1 : index
    %c0_8 = arith.constant 0 : index
    %c0_9 = arith.constant 0 : index
    %7 = vector.load %arg2[%c1_7, %c0_8, %c0_9] : memref<4x64x16xbf16, #tpu.memory_space<vmem>>, vector<1x64x16xbf16>
    %8 = vector.shape_cast %7 : vector<1x64x16xbf16> to vector<64x16xbf16>
    %cst_10 = arith.constant dense<0.000000e+00> : vector<100x16xf32>
    %9 = tpu.matmul %6, %8, %cst_10 {dimension_numbers = #tpu.dot_dimension_numbers<[1], [0], [0], [1], [0, 0, 1, 1], [], []>} : vector<100x64xbf16>, vector<64x16xbf16>, vector<100x16xf32> -> vector<100x16xf32>
    %10 = arith.addf %4, %9 : vector<100x16xf32>
    %c0_11 = arith.constant 0 : index
    %c10 = arith.constant 10 : index
    %c0_12 = arith.constant 0 : index
    %11 = vector.load %arg1[%c0_11, %c10, %c0_12] : memref<1x111x64xbf16, #tpu.memory_space<vmem>>, vector<1x100x64xbf16>
    %12 = vector.shape_cast %11 : vector<1x100x64xbf16> to vector<100x64xbf16>
    %c2 = arith.constant 2 : index
    %c0_13 = arith.constant 0 : index
    %c0_14 = arith.constant 0 : index
    %13 = vector.load %arg2[%c2, %c0_13, %c0_14] : memref<4x64x16xbf16, #tpu.memory_space<vmem>>, vector<1x64x16xbf16>
    %14 = vector.shape_cast %13 : vector<1x64x16xbf16> to vector<64x16xbf16>
    %cst_15 = arith.constant dense<0.000000e+00> : vector<100x16xf32>
    %15 = tpu.matmul %12, %14, %cst_15 {dimension_numbers = #tpu.dot_dimension_numbers<[1], [0], [0], [1], [0, 0, 1, 1], [], []>} : vector<100x64xbf16>, vector<64x16xbf16>, vector<100x16xf32> -> vector<100x16xf32>
    %16 = arith.addf %10, %15 : vector<100x16xf32>
    %c0_16 = arith.constant 0 : index
    %c11 = arith.constant 11 : index
    %c0_17 = arith.constant 0 : index
    %17 = vector.load %arg1[%c0_16, %c11, %c0_17] : memref<1x111x64xbf16, #tpu.memory_space<vmem>>, vector<1x100x64xbf16>
    %18 = vector.shape_cast %17 : vector<1x100x64xbf16> to vector<100x64xbf16>
    %c3 = arith.constant 3 : index
    %c0_18 = arith.constant 0 : index
    %c0_19 = arith.constant 0 : index
    %19 = vector.load %arg2[%c3, %c0_18, %c0_19] : memref<4x64x16xbf16, #tpu.memory_space<vmem>>, vector<1x64x16xbf16>
    %20 = vector.shape_cast %19 : vector<1x64x16xbf16> to vector<64x16xbf16>
    %cst_20 = arith.constant dense<0.000000e+00> : vector<100x16xf32>
    %21 = tpu.matmul %18, %20, %cst_20 {dimension_numbers = #tpu.dot_dimension_numbers<[1], [0], [0], [1], [0, 0, 1, 1], [], []>} : vector<100x64xbf16>, vector<64x16xbf16>, vector<100x16xf32> -> vector<100x16xf32>
    %22 = arith.addf %16, %21 : vector<100x16xf32>
    %c0_21 = arith.constant 0 : index
    %c0_22 = arith.constant 0 : index
    %23 = vector.load %arg3[%c0_21, %c0_22] : memref<1x16xf32, #tpu.memory_space<vmem>>, vector<1x16xf32>
    %24 = vector.broadcast %23 : vector<1x16xf32> to vector<100x16xf32>
    %25 = arith.addf %22, %24 : vector<100x16xf32>
    %26 = math.tanh %25 : vector<100x16xf32>
    %c0_23 = arith.constant 0 : index
    %c0_24 = arith.constant 0 : index
    %c0_25 = arith.constant 0 : index
    %27 = vector.load %arg4[%c0_23, %c0_24, %c0_25] : memref<1x100x16xf32, #tpu.memory_space<vmem>>, vector<1x100x16xf32>
    %28 = vector.shape_cast %27 : vector<1x100x16xf32> to vector<100x16xf32>
    %29 = vector.shape_cast %26 : vector<100x16xf32> to vector<1x100x16xf32>
    tpu.vector_store %arg4[%c0_23, %c0_24, %c0_25], %29 {strides = array<i32>} : memref<1x100x16xf32, #tpu.memory_space<vmem>>, vector<1x100x16xf32>,
    return
  }
  func.func @transform_0(%arg0: i32) -> (i32, i32, i32) {
    %c0_i32 = arith.constant 0 : i32
    %c0_i32_0 = arith.constant 0 : i32
    %c0_i32_1 = arith.constant 0 : i32
    return %arg0, %c0_i32, %c0_i32_0 : i32, i32, i32
  }
  func.func @transform_1(%arg0: i32) -> (i32, i32, i32) {
    %c0_i32 = arith.constant 0 : i32
    %c0_i32_0 = arith.constant 0 : i32
    %c0_i32_1 = arith.constant 0 : i32
    %c0_i32_2 = arith.constant 0 : i32
    return %c0_i32, %c0_i32_0, %c0_i32_1 : i32, i32, i32
  }
  func.func @transform_2(%arg0: i32) -> (i32, i32) {
    %c0_i32 = arith.constant 0 : i32
    %c0_i32_0 = arith.constant 0 : i32
    %c0_i32_1 = arith.constant 0 : i32
    return %c0_i32, %c0_i32_0 : i32, i32
  }
  func.func @transform_3(%arg0: i32) -> (i32, i32, i32) {
    %c0_i32 = arith.constant 0 : i32
    %c0_i32_0 = arith.constant 0 : i32
    %c0_i32_1 = arith.constant 0 : i32
    return %arg0, %c0_i32, %c0_i32_0 : i32, i32, i32
  }
}

</mosaic_0001>

<llo_original>
// kernel: adversarial_autoencoder_forward.4
$region0: #{adversarial_autoencoder_forward.4}
  #allocation0 [shape = 'u32[]', space=smem, size = 0x4, offset = 0x4, fixed_abs, tag = 'smem constant byte address 0x4 - core index']
  #allocation1 [shape = 'u32[144,128]{1,0:T(1,128)}', space=vmem, size = 0x12000, scoped, tag = 'internal scratch']
  %s0 = inlined_call_operand.vmem [shape: bf16[2,91,16], index: 0, kind: input, shape index: {}]
  %s1 = inlined_call_operand.vmem [shape: bf16[4,16,64], index: 1, kind: input, shape index: {}]
  %s2 = inlined_call_operand.vmem [shape: f32[1,64], index: 2, kind: input, shape index: {}]
  %s3 = inlined_call_operand.vmem [shape: bf16[2,81,64], index: 3, kind: output, shape index: {}]
  %s4 = sld [smem:[#allocation0]]
  $region45: #{adversarial_autoencoder_forward.4} parent=0
    _
  %s6 = ssub.s32 1, %s4
  %s7 = scalar_select 0, %s6, %s4
  loop: start=0, step=1, limit=4
  $region2: #{adversarial_autoencoder_forward.4} parent=0 // loop_pre_header
    _
  $region3: #{adversarial_autoencoder_forward.4} parent=0 // loop_header
    %s9 = sphi 0, %s13
    %p10 = scmp.ge.s32.totalorder %s9, 4
    %s19 = sphi 0, %s21
    %s22 = sphi 0, %s19
    %s23 = sphi 0, %s22
    %s39 = sphi 0, %s23
    %s43 = sphi 0, %s43
    %s45 = sphi 0, %s43
    %s46 = sphi 0, %s45
    %s60 = sphi 0, %s46
    %s64 = sphi 0, %s64
    %s66 = sphi 0, %s64
    %s67 = sphi 0, %s66
    %s81 = sphi 0, %s67
    %s87 = sphi 0, %s89
    %s90 = sphi 0, %s87
    %s91 = sphi 0, %s90
    %s107 = sphi 0, %s91
  $region4: #{adversarial_autoencoder_forward.4} parent=0 // loop_header_branch
    %12 = sbr.rel (%p10) target = $region8
  $region5: #{adversarial_autoencoder_forward.4} parent=0 // loop_body
    %s14 = ssub.s32 %s9, 1
    %s15 = ssub.s32 %s9, 2
    %s16 = sadd.s32 %s9, 1
    %s17 = ssub.s32 %s9, %s16
    %p18 = scmp.eq.s32.totalorder %s17, 0
    %s20 = sadd.s32 %s19, 1
    %s21 = scalar_select %p18, %s19, %s20
    %p24 = pneg %p18
    %p25 = scmp.eq.s32.totalorder %s9, 1
    %p26 = por %p24, %p25
    %p27 = scmp.ne.s32.totalorder %s19, %s22
    %p28 = scmp.eq.s32.totalorder %s9, 0
    %p29 = por %p27, %p28
    %p30 = scmp.ne.s32.totalorder %s19, %s22
    %p31 = scmp.eq.s32.totalorder %s14, 1
    %p32 = por %p30, %p31
    %p33 = scmp.ne.s32.totalorder %s22, %s23
    %p34 = scmp.eq.s32.totalorder %s14, 0
    %p35 = por %p33, %p34
    %p36 = scmp.ne.s32.totalorder %s22, %s23
    %p37 = scmp.eq.s32.totalorder %s15, 1
    %p38 = por %p36, %p37
    %p40 = scmp.ne.s32.totalorder %s23, %s39
    %p41 = scmp.eq.s32.totalorder %s15, 0
    %p42 = por %p40, %p41
    %s44 = sadd.s32 %s43, 1
    %p47 = scmp.eq.s32.totalorder %s9, 1
    %p48 = scmp.ne.s32.totalorder %s43, %s45
    %p49 = scmp.eq.s32.totalorder %s9, 0
    %p50 = por %p48, %p49
    %p51 = scmp.ne.s32.totalorder %s43, %s45
    %p52 = scmp.eq.s32.totalorder %s14, 1
    %p53 = por %p51, %p52
    %p54 = scmp.ne.s32.totalorder %s45, %s46
    %p55 = scmp.eq.s32.totalorder %s14, 0
    %p56 = por %p54, %p55
    %p57 = scmp.ne.s32.totalorder %s45, %s46
    %p58 = scmp.eq.s32.totalorder %s15, 1
    %p59 = por %p57, %p58
    %p61 = scmp.ne.s32.totalorder %s46, %s60
    %p62 = scmp.eq.s32.totalorder %s15, 0
    %p63 = por %p61, %p62
    %s65 = sadd.s32 %s64, 1
    %p68 = scmp.eq.s32.totalorder %s9, 1
    %p69 = scmp.ne.s32.totalorder %s64, %s66
    %p70 = scmp.eq.s32.totalorder %s9, 0
    %p71 = por %p69, %p70
    %p72 = scmp.ne.s32.totalorder %s64, %s66
    %p73 = scmp.eq.s32.totalorder %s14, 1
    %p74 = por %p72, %p73
    %p75 = scmp.ne.s32.totalorder %s66, %s67
    %p76 = scmp.eq.s32.totalorder %s14, 0
    %p77 = por %p75, %p76
    %p78 = scmp.ne.s32.totalorder %s66, %s67
    %p79 = scmp.eq.s32.totalorder %s15, 1
    %p80 = por %p78, %p79
    %p82 = scmp.ne.s32.totalorder %s67, %s81
    %p83 = scmp.eq.s32.totalorder %s15, 0
    %p84 = por %p82, %p83
    %s85 = ssub.s32 %s9, %s16
    %p86 = scmp.eq.s32.totalorder %s85, 0
    %s88 = sadd.s32 %s87, 1
    %s89 = scalar_select %p86, %s87, %s88
    %p92 = pneg %p86
    %p93 = scmp.eq.s32.totalorder %s9, 1
    %p94 = por %p92, %p93
    %p95 = scmp.ne.s32.totalorder %s87, %s90
    %p96 = scmp.eq.s32.totalorder %s9, 0
    %p97 = por %p95, %p96
    %p98 = scmp.ne.s32.totalorder %s87, %s90
    %p99 = scmp.eq.s32.totalorder %s14, 1
    %p100 = por %p98, %p99
    %p101 = scmp.ne.s32.totalorder %s90, %s91
    %p102 = scmp.eq.s32.totalorder %s14, 0
    %p103 = por %p101, %p102
    %p104 = scmp.ne.s32.totalorder %s90, %s91
    %p105 = scmp.eq.s32.totalorder %s15, 1
    %p106 = por %p104, %p105
    %p108 = scmp.ne.s32.totalorder %s91, %s107
    %p109 = scmp.eq.s32.totalorder %s15, 0
    %p110 = por %p108, %p109
    %p111 = scmp.le.s32.totalorder 1, %s9
    %p112 = scmp.lt.s32.totalorder %s9, 3
    %p113 = pnand %p111, %p112
    %p114 = pneg %p113
    // Predicated region
    $region9: #{adversarial_autoencoder_forward.4} parent=5 // pred_check
      _
    $region10: #{adversarial_autoencoder_forward.4} parent=5 // pred_check_branch
      %116 = sbr.rel (%p113) target = $region12
    $region11: #{adversarial_autoencoder_forward.4} parent=5 // pred_region
      %s117 = ssub.s32 %s9, 1
      // Predicated region
      $region13: #{adversarial_autoencoder_forward.4} parent=11 // pred_check
        %p118 = pneg %p56
      $region14: #{adversarial_autoencoder_forward.4} parent=11 // pred_check_branch
        %120 = sbr.rel (%p118) target = $region16
      $region15: #{adversarial_autoencoder_forward.4} parent=11 // pred_region
        _
      $region16: #{adversarial_autoencoder_forward.4} parent=11 // pred_fallthru
        _
      // Predicated region
      $region17: #{adversarial_autoencoder_forward.4} parent=11 // pred_check
        %p121 = pneg %p77
      $region18: #{adversarial_autoencoder_forward.4} parent=11 // pred_check_branch
        %123 = sbr.rel (%p121) target = $region20
      $region19: #{adversarial_autoencoder_forward.4} parent=11 // pred_region
        _
      $region20: #{adversarial_autoencoder_forward.4} parent=11 // pred_fallthru
        _
    $region12: #{adversarial_autoencoder_forward.4} parent=5 // pred_fallthru
      _
    %p124 = scmp.lt.s32.totalorder %s9, 2
    // Predicated region
    $region21: #{adversarial_autoencoder_forward.4} parent=5 // pred_check
      %p125 = pneg %p124
    $region22: #{adversarial_autoencoder_forward.4} parent=5 // pred_check_branch
      %127 = sbr.rel (%p125) target = $region24
    $region23: #{adversarial_autoencoder_forward.4} parent=5 // pred_region
      // Predicated region
      $region25: #{adversarial_autoencoder_forward.4} parent=23 // pred_check
        %p128 = pneg %p29
      $region26: #{adversarial_autoencoder_forward.4} parent=23 // pred_check_branch
        %130 = sbr.rel (%p128) target = $region28
      $region27: #{adversarial_autoencoder_forward.4} parent=23 // pred_region
        %p131 = scmp.lt.s32.totalorder %s9, 1
        %s132 = scalar_select %p131, %s9, 1
        %s133 = smul.addr %s132, 12
        %s134 = smul.addr %s133, 4
        %s135 = scalar_lea.vmem %s0, %s134
      $region28: #{adversarial_autoencoder_forward.4} parent=23 // pred_fallthru
        _
    $region24: #{adversarial_autoencoder_forward.4} parent=5 // pred_fallthru
      _
    %p136 = scmp.le.s32.totalorder 1, %s9
    %p137 = scmp.lt.s32.totalorder %s9, 3
    %p138 = pnand %p136, %p137
    %p139 = pneg %p138
    // Predicated region
    $region29: #{adversarial_autoencoder_forward.4} parent=5 // pred_check
      _
    $region30: #{adversarial_autoencoder_forward.4} parent=5 // pred_check_branch
      %141 = sbr.rel (%p138) target = $region32
    $region31: #{adversarial_autoencoder_forward.4} parent=5 // pred_region
      %s142 = ssub.s32 %s9, 1
      %p143 = scmp.lt.s32.totalorder %s14, 1
      %s144 = scalar_select %p143, %s14, 1
      %s145 = smul.addr %s144, 12
      %s146 = smul.addr %s145, 4
      %s147 = scalar_lea.vmem %s0, %s146
      %p148 = pneg %p35
      %p149 = pneg %p32
      %p150 = pneg %p56
      %p151 = pneg %p53
      %p152 = pneg %p77
      %p153 = pneg %p74
      %p154 = pneg %p103
      %p155 = pneg %p100
      %p156 = scmp.lt.s32.totalorder %s14, 1
      %s157 = scalar_select %p156, %s14, 1
      %s158 = smul.addr %s157, 11
      %s159 = smul.addr %s158, 4
      %s160 = scalar_lea.vmem %s3, %s159
      %p161 = scmp.lt.s32.totalorder %s14, 1
      %s162 = scalar_select %p161, %s14, 1
      %s163 = smul.addr %s162, 12
      %s164 = smul.addr %s163, 4
      %s165 = scalar_lea.vmem %s0, %s164
      %p166 = scmp.lt.s32.totalorder %s14, 1
      %s167 = scalar_select %p166, %s14, 1
      %s168 = smul.addr %s167, 11
      %s169 = smul.addr %s168, 4
      %s170 = scalar_lea.vmem %s3, %s169
      %v172 = vld [vmem:[%s165] sm:$0xf]
      %v173 = vld [vmem:[%s165 + $0x4] sm:$0xf]
      %v174 = vld [vmem:[%s165 + $0x8] sm:$0xf]
      %v175 = vld [vmem:[%s165 + $0xc] sm:$0xf]
      %v176 = vld [vmem:[%s165 + $0x10] sm:$0xf]
      %v177 = vld [vmem:[%s165 + $0x14] sm:$0xf]
      %v178 = vld [vmem:[%s165 + $0x18] sm:$0xf]
      %v179 = vld [vmem:[%s165 + $0x1c] sm:$0xf]
      %v180 = vld [vmem:[%s165 + $0x20] sm:$0xf]
      %v181 = vld [vmem:[%s165 + $0x24] sm:$0xf]
      %v182 = vld [vmem:[%s165 + $0x28] sm:$0x1]
      %v183 = vld [vmem:[%s1] sm:$0xf]
      %v184 = vld [vmem:[%s1 + $0x4] sm:$0xf]
      %s185 = scalar_lea.vmem %s1, 8
      %v186 = vld [vmem:[%s185] sm:$0xf]
      %v187 = vld [vmem:[%s185 + $0x4] sm:$0xf]
      %v199 = vunpack.c.l.b16 %v172
      %v200 = vunpack.c.l.b16 %v173
      %v201 = vunpack.c.l.b16 %v174
      %v202 = vunpack.c.l.b16 %v175
      %v203 = vunpack.c.l.b16 %v176
      %v204 = vunpack.c.l.b16 %v177
      %v205 = vunpack.c.l.b16 %v178
      %v206 = vunpack.c.l.b16 %v179
      %v207 = vunpack.c.l.b16 %v180
      %v208 = vunpack.c.l.b16 %v181
      %v209 = vunpack.c.l.b16 %v182
      %v210 = vpack.c.b16 %v200, %v199
      %v211 = vpack.c.b16 %v202, %v201
      %v212 = vpack.c.b16 %v204, %v203
      %v213 = vpack.c.b16 %v206, %v205
      %v214 = vpack.c.b16 %v208, %v207
      %v215 = vpack.c.b16 %v209, %v209
      %vm216 = vsmask.f32 7424
      %v218 = vshrl.u32 %v210, 16
      %v220 = vshll.u32 %v210, 16
      %v222 = vrot.slane %v220, 1
      %v223 = vor.u32 %v218, %v222
      %v225 = vshll.u32 %v211, 16
      %v227 = vrot.slane %v225, 1
      %v228 = vsel %vm216, %v223, %v227
      %v229 = vshrl.u32 %v211, 16
      %v231 = vor.u32 %v229, %v227
      %v233 = vshll.u32 %v212, 16
      %v235 = vrot.slane %v233, 1
      %v236 = vsel %vm216, %v231, %v235
      %v237 = vshrl.u32 %v212, 16
      %v239 = vor.u32 %v237, %v235
      %v241 = vshll.u32 %v213, 16
      %v243 = vrot.slane %v241, 1
      %v244 = vsel %vm216, %v239, %v243
      %v245 = vshrl.u32 %v213, 16
      %v247 = vor.u32 %v245, %v243
      %v249 = vshll.u32 %v214, 16
      %v251 = vrot.slane %v249, 1
      %v252 = vsel %vm216, %v247, %v251
      %v253 = vshrl.u32 %v214, 16
      %v255 = vor.u32 %v253, %v251
      %v257 = vshll.u32 %v215, 16
      %v259 = vrot.slane %v257, 1
      %v260 = vsel %vm216, %v255, %v259
      %v261 = vshrl.u32 %v215, 16
      %v265 = vunpack.c.l.b16 %v186
      %v266 = vunpack.c.l.b16 %v187
      %v267 = vpack.c.b16 %v266, %v265
      %vm269 = vcmask 130048
      %v271 = vsel %vm269, %v228, 0
      %v274 = vsel %vm269, %v236, 0
      %v277 = vsel %vm269, %v244, 0
      %v280 = vsel %vm269, %v252, 0
      %v283 = vsel %vm269, %v260, 0
      %v286 = vsel %vm269, %v261, 0
      %288 = vmatprep.subr.bf16.mxu0 0
      %289 = vmatpush1.bf16.msra.mxu0 0
      %290 = vmatprep.subr.bf16.mxu0 0
      %291 = vmatpush1.bf16.msra.mxu0 0
      %292 = vmatprep.subr.bf16.mxu0 0
      %293 = vmatpush1.bf16.msra.mxu0 0
      %294 = vmatprep.subr.bf16.mxu0 0
      %295 = vmatpush1.bf16.msra.mxu0 0
      %296 = vmatprep.subr.bf16.mxu0 0
      %297 = vmatpush1.bf16.msra.mxu0 0
      %298 = vmatprep.subr.bf16.mxu0 0
      %299 = vmatpush1.bf16.msra.mxu0 0
      %300 = vmatprep.subr.bf16.mxu0 0
      %301 = vmatpush1.bf16.msra.mxu0 0
      %302 = vmatprep.subr.bf16.mxu0 0
      %303 = vmatpush1.bf16.msra.mxu0 %v267
      %304 = vmatprep.subr.bf16.mxu0 0
      %305 = vmatpush2.bf16.msra.mxu0 0
      %306 = vmatprep.subr.bf16.mxu0 0
      %307 = vmatpush2.bf16.msra.mxu0 0
      %308 = vmatprep.subr.bf16.mxu0 0
      %309 = vmatpush2.bf16.msra.mxu0 0
      %310 = vmatprep.subr.bf16.mxu0 0
      %311 = vmatpush2.bf16.msra.mxu0 0
      %312 = vmatprep.subr.bf16.mxu0 0
      %313 = vmatpush2.bf16.msra.mxu0 0
      %314 = vmatprep.subr.bf16.mxu0 0
      %315 = vmatpush2.bf16.msra.mxu0 0
      %316 = vmatprep.subr.bf16.mxu0 0
      %317 = vmatpush2.bf16.msra.mxu0 0
      %318 = vmatprep.subr.bf16.mxu0 0
      %319 = vmatpush2.bf16.msra.mxu0 0
      %320 = vmatprep.mubr.bf16.mxu0 0
      %321 = vmatmul.mubr.bf16.gmra.mxu0 %v271
      %v322 = vpop.f32.mrf.mxu0
      %v323 = vadd.f32 0.0, %v322
      %v324 = vpop.f32.mrf.mxu0
      %v325 = vpop.f32.mrf.mxu0
      %v326 = vadd.f32 0.0, %v325
      %v327 = vpop.f32.mrf.mxu0
      %328 = vmatprep.mubr.bf16.mxu0 0
      %329 = vmatmul.mubr.bf16.gmra.mxu0 %v274
      %v330 = vpop.f32.mrf.mxu0
      %v331 = vadd.f32 0.0, %v330
      %v332 = vpop.f32.mrf.mxu0
      %v333 = vpop.f32.mrf.mxu0
      %v334 = vadd.f32 0.0, %v333
      %v335 = vpop.f32.mrf.mxu0
      %336 = vmatprep.mubr.bf16.mxu0 0
      %337 = vmatmul.mubr.bf16.gmra.mxu0 %v277
      %v338 = vpop.f32.mrf.mxu0
      %v339 = vadd.f32 0.0, %v338
      %v340 = vpop.f32.mrf.mxu0
      %v341 = vpop.f32.mrf.mxu0
      %v342 = vadd.f32 0.0, %v341
      %v343 = vpop.f32.mrf.mxu0
      %344 = vmatprep.mubr.bf16.mxu0 0
      %345 = vmatmul.mubr.bf16.gmra.mxu0 %v280
      %v346 = vpop.f32.mrf.mxu0
      %v347 = vadd.f32 0.0, %v346
      %v348 = vpop.f32.mrf.mxu0
      %v349 = vpop.f32.mrf.mxu0
      %v350 = vadd.f32 0.0, %v349
      %v351 = vpop.f32.mrf.mxu0
      %352 = vmatprep.mubr.bf16.mxu0 0
      %353 = vmatmul.mubr.bf16.gmra.mxu0 %v283
      %v354 = vpop.f32.mrf.mxu0
      %v355 = vadd.f32 0.0, %v354
      %v356 = vpop.f32.mrf.mxu0
      %v357 = vpop.f32.mrf.mxu0
      %v358 = vadd.f32 0.0, %v357
      %v359 = vpop.f32.mrf.mxu0
      %360 = vmatprep.mubr.bf16.mxu0 0
      %361 = vmatmul.mubr.bf16.gmra.mxu0 %v286
      %v362 = vpop.f32.mrf.mxu0
      %v363 = vadd.f32 0.0, %v362
      %v364 = vpop.f32.mrf.mxu0
      %v365 = vpop.f32.mrf.mxu0
      %v366 = vpop.f32.mrf.mxu0
      %367 = vdwg.mxu0
      %v370 = vunpack.c.l.b16 %v183
      %v371 = vunpack.c.l.b16 %v184
      %v372 = vpack.c.b16 %v371, %v370
      %v374 = vsel %vm269, %v210, 0
      %v376 = vsel %vm269, %v211, 0
      %v378 = vsel %vm269, %v212, 0
      %v380 = vsel %vm269, %v213, 0
      %v382 = vsel %vm269, %v214, 0
      %v384 = vsel %vm269, %v215, 0
      %386 = vmatprep.subr.bf16.mxu0 0
      %387 = vmatpush1.bf16.msra.mxu0 0
      %388 = vmatprep.subr.bf16.mxu0 0
      %389 = vmatpush1.bf16.msra.mxu0 0
      %390 = vmatprep.subr.bf16.mxu0 0
      %391 = vmatpush1.bf16.msra.mxu0 0
      %392 = vmatprep.subr.bf16.mxu0 0
      %393 = vmatpush1.bf16.msra.mxu0 0
      %394 = vmatprep.subr.bf16.mxu0 0
      %395 = vmatpush1.bf16.msra.mxu0 0
      %396 = vmatprep.subr.bf16.mxu0 0
      %397 = vmatpush1.bf16.msra.mxu0 0
      %398 = vmatprep.subr.bf16.mxu0 0
      %399 = vmatpush1.bf16.msra.mxu0 0
      %400 = vmatprep.subr.bf16.mxu0 0
      %401 = vmatpush1.bf16.msra.mxu0 %v372
      %402 = vmatprep.subr.bf16.mxu0 0
      %403 = vmatpush2.bf16.msra.mxu0 0
      %404 = vmatprep.subr.bf16.mxu0 0
      %405 = vmatpush2.bf16.msra.mxu0 0
      %406 = vmatprep.subr.bf16.mxu0 0
      %407 = vmatpush2.bf16.msra.mxu0 0
      %408 = vmatprep.subr.bf16.mxu0 0
      %409 = vmatpush2.bf16.msra.mxu0 0
      %410 = vmatprep.subr.bf16.mxu0 0
      %411 = vmatpush2.bf16.msra.mxu0 0
      %412 = vmatprep.subr.bf16.mxu0 0
      %413 = vmatpush2.bf16.msra.mxu0 0
      %414 = vmatprep.subr.bf16.mxu0 0
      %415 = vmatpush2.bf16.msra.mxu0 0
      %416 = vmatprep.subr.bf16.mxu0 0
      %417 = vmatpush2.bf16.msra.mxu0 0
      %418 = vmatprep.mubr.bf16.mxu0 0
      %419 = vmatmul.mubr.bf16.gmra.mxu0 %v374
      %v420 = vpop.f32.mrf.mxu0
      %v421 = vadd.f32 %v323, %v420
      %v422 = vpop.f32.mrf.mxu0
      %v423 = vpop.f32.mrf.mxu0
      %v424 = vadd.f32 %v326, %v423
      %v425 = vpop.f32.mrf.mxu0
      %426 = vmatprep.mubr.bf16.mxu0 0
      %427 = vmatmul.mubr.bf16.gmra.mxu0 %v376
      %v428 = vpop.f32.mrf.mxu0
      %v429 = vadd.f32 %v331, %v428
      %v430 = vpop.f32.mrf.mxu0
      %v431 = vpop.f32.mrf.mxu0
      %v432 = vadd.f32 %v334, %v431
      %v433 = vpop.f32.mrf.mxu0
      %434 = vmatprep.mubr.bf16.mxu0 0
      %435 = vmatmul.mubr.bf16.gmra.mxu0 %v378
      %v436 = vpop.f32.mrf.mxu0
      %v437 = vadd.f32 %v339, %v436
      %v438 = vpop.f32.mrf.mxu0
      %v439 = vpop.f32.mrf.mxu0
      %v440 = vadd.f32 %v342, %v439
      %v441 = vpop.f32.mrf.mxu0
      %442 = vmatprep.mubr.bf16.mxu0 0
      %443 = vmatmul.mubr.bf16.gmra.mxu0 %v380
      %v444 = vpop.f32.mrf.mxu0
      %v445 = vadd.f32 %v347, %v444
      %v446 = vpop.f32.mrf.mxu0
      %v447 = vpop.f32.mrf.mxu0
      %v448 = vadd.f32 %v350, %v447
      %v449 = vpop.f32.mrf.mxu0
      %450 = vmatprep.mubr.bf16.mxu0 0
      %451 = vmatmul.mubr.bf16.gmra.mxu0 %v382
      %v452 = vpop.f32.mrf.mxu0
      %v453 = vadd.f32 %v355, %v452
      %v454 = vpop.f32.mrf.mxu0
      %v455 = vpop.f32.mrf.mxu0
      %v456 = vadd.f32 %v358, %v455
      %v457 = vpop.f32.mrf.mxu0
      %458 = vmatprep.mubr.bf16.mxu0 0
      %459 = vmatmul.mubr.bf16.gmra.mxu0 %v384
      %v460 = vpop.f32.mrf.mxu0
      %v461 = vadd.f32 %v363, %v460
      %v462 = vpop.f32.mrf.mxu0
      %v463 = vpop.f32.mrf.mxu0
      %v464 = vpop.f32.mrf.mxu0
      %465 = vdwg.mxu0
      %v466 = vld [vmem:[%s165 + $0x4] sm:$0xf]
      %v467 = vld [vmem:[%s165 + $0x8] sm:$0xf]
      %v468 = vld [vmem:[%s165 + $0xc] sm:$0xf]
      %v469 = vld [vmem:[%s165 + $0x10] sm:$0xf]
      %v470 = vld [vmem:[%s165 + $0x14] sm:$0xf]
      %v471 = vld [vmem:[%s165 + $0x18] sm:$0xf]
      %v472 = vld [vmem:[%s165 + $0x1c] sm:$0xf]
      %v473 = vld [vmem:[%s165 + $0x20] sm:$0xf]
      %v474 = vld [vmem:[%s165 + $0x24] sm:$0xf]
      %v475 = vld [vmem:[%s165 + $0x28] sm:$0xf]
      %v476 = vld [vmem:[%s165 + $0x2c] sm:$0x1]
      %s477 = scalar_lea.vmem %s1, 16
      %v478 = vld [vmem:[%s477] sm:$0xf]
      %v479 = vld [vmem:[%s477 + $0x4] sm:$0xf]
      %v491 = vunpack.c.l.b16 %v466
      %v492 = vunpack.c.l.b16 %v467
      %v493 = vunpack.c.l.b16 %v468
      %v494 = vunpack.c.l.b16 %v469
      %v495 = vunpack.c.l.b16 %v470
      %v496 = vunpack.c.l.b16 %v471
      %v497 = vunpack.c.l.b16 %v472
      %v498 = vunpack.c.l.b16 %v473
      %v499 = vunpack.c.l.b16 %v474
      %v500 = vunpack.c.l.b16 %v475
      %v501 = vunpack.c.l.b16 %v476
      %v502 = vpack.c.b16 %v492, %v491
      %v503 = vpack.c.b16 %v494, %v493
      %v504 = vpack.c.b16 %v496, %v495
      %v505 = vpack.c.b16 %v498, %v497
      %v506 = vpack.c.b16 %v500, %v499
      %v507 = vpack.c.b16 %v501, %v501
      %v509 = vshrl.u32 %v502, 16
      %v511 = vshll.u32 %v502, 16
      %v513 = vrot.slane %v511, 1
      %v514 = vor.u32 %v509, %v513
      %v516 = vshll.u32 %v503, 16
      %v518 = vrot.slane %v516, 1
      %v519 = vsel %vm216, %v514, %v518
      %v520 = vshrl.u32 %v503, 16
      %v522 = vor.u32 %v520, %v518
      %v524 = vshll.u32 %v504, 16
      %v526 = vrot.slane %v524, 1
      %v527 = vsel %vm216, %v522, %v526
      %v528 = vshrl.u32 %v504, 16
      %v530 = vor.u32 %v528, %v526
      %v532 = vshll.u32 %v505, 16
      %v534 = vrot.slane %v532, 1
      %v535 = vsel %vm216, %v530, %v534
      %v536 = vshrl.u32 %v505, 16
      %v538 = vor.u32 %v536, %v534
      %v540 = vshll.u32 %v506, 16
      %v542 = vrot.slane %v540, 1
      %v543 = vsel %vm216, %v538, %v542
      %v544 = vshrl.u32 %v506, 16
      %v546 = vor.u32 %v544, %v542
      %v548 = vshll.u32 %v507, 16
      %v550 = vrot.slane %v548, 1
      %v551 = vsel %vm216, %v546, %v550
      %v552 = vshrl.u32 %v507, 16
      %v556 = vunpack.c.l.b16 %v478
      %v557 = vunpack.c.l.b16 %v479
      %v558 = vpack.c.b16 %v557, %v556
      %v561 = vsel %vm269, %v519, 0
      %v564 = vsel %vm269, %v527, 0
      %v567 = vsel %vm269, %v535, 0
      %v570 = vsel %vm269, %v543, 0
      %v573 = vsel %vm269, %v551, 0
      %v576 = vsel %vm269, %v552, 0
      %578 = vmatprep.subr.bf16.mxu0 0
      %579 = vmatpush1.bf16.msra.mxu0 0
      %580 = vmatprep.subr.bf16.mxu0 0
      %581 = vmatpush1.bf16.msra.mxu0 0
      %582 = vmatprep.subr.bf16.mxu0 0
      %583 = vmatpush1.bf16.msra.mxu0 0
      %584 = vmatprep.subr.bf16.mxu0 0
      %585 = vmatpush1.bf16.msra.mxu0 0
      %586 = vmatprep.subr.bf16.mxu0 0
      %587 = vmatpush1.bf16.msra.mxu0 0
      %588 = vmatprep.subr.bf16.mxu0 0
      %589 = vmatpush1.bf16.msra.mxu0 0
      %590 = vmatprep.subr.bf16.mxu0 0
      %591 = vmatpush1.bf16.msra.mxu0 0
      %592 = vmatprep.subr.bf16.mxu0 0
      %593 = vmatpush1.bf16.msra.mxu0 %v558
      %594 = vmatprep.subr.bf16.mxu0 0
      %595 = vmatpush2.bf16.msra.mxu0 0
      %596 = vmatprep.subr.bf16.mxu0 0
      %597 = vmatpush2.bf16.msra.mxu0 0
      %598 = vmatprep.subr.bf16.mxu0 0
      %599 = vmatpush2.bf16.msra.mxu0 0
      %600 = vmatprep.subr.bf16.mxu0 0
      %601 = vmatpush2.bf16.msra.mxu0 0
      %602 = vmatprep.subr.bf16.mxu0 0
      %603 = vmatpush2.bf16.msra.mxu0 0
      %604 = vmatprep.subr.bf16.mxu0 0
      %605 = vmatpush2.bf16.msra.mxu0 0
      %606 = vmatprep.subr.bf16.mxu0 0
      %607 = vmatpush2.bf16.msra.mxu0 0
      %608 = vmatprep.subr.bf16.mxu0 0
      %609 = vmatpush2.bf16.msra.mxu0 0
      %610 = vmatprep.mubr.bf16.mxu0 0
      %611 = vmatmul.mubr.bf16.gmra.mxu0 %v561
      %v612 = vpop.f32.mrf.mxu0
      %v613 = vadd.f32 0.0, %v612
      %v614 = vpop.f32.mrf.mxu0
      %v615 = vpop.f32.mrf.mxu0
      %v616 = vadd.f32 0.0, %v615
      %v617 = vpop.f32.mrf.mxu0
      %618 = vmatprep.mubr.bf16.mxu0 0
      %619 = vmatmul.mubr.bf16.gmra.mxu0 %v564
      %v620 = vpop.f32.mrf.mxu0
      %v621 = vadd.f32 0.0, %v620
      %v622 = vpop.f32.mrf.mxu0
      %v623 = vpop.f32.mrf.mxu0
      %v624 = vadd.f32 0.0, %v623
      %v625 = vpop.f32.mrf.mxu0
      %626 = vmatprep.mubr.bf16.mxu0 0
      %627 = vmatmul.mubr.bf16.gmra.mxu0 %v567
      %v628 = vpop.f32.mrf.mxu0
      %v629 = vadd.f32 0.0, %v628
      %v630 = vpop.f32.mrf.mxu0
      %v631 = vpop.f32.mrf.mxu0
      %v632 = vadd.f32 0.0, %v631
      %v633 = vpop.f32.mrf.mxu0
      %634 = vmatprep.mubr.bf16.mxu0 0
      %635 = vmatmul.mubr.bf16.gmra.mxu0 %v570
      %v636 = vpop.f32.mrf.mxu0
      %v637 = vadd.f32 0.0, %v636
      %v638 = vpop.f32.mrf.mxu0
      %v639 = vpop.f32.mrf.mxu0
      %v640 = vadd.f32 0.0, %v639
      %v641 = vpop.f32.mrf.mxu0
      %642 = vmatprep.mubr.bf16.mxu0 0
      %643 = vmatmul.mubr.bf16.gmra.mxu0 %v573
      %v644 = vpop.f32.mrf.mxu0
      %v645 = vadd.f32 0.0, %v644
      %v646 = vpop.f32.mrf.mxu0
      %v647 = vpop.f32.mrf.mxu0
      %v648 = vadd.f32 0.0, %v647
      %v649 = vpop.f32.mrf.mxu0
      %650 = vmatprep.mubr.bf16.mxu0 0
      %651 = vmatmul.mubr.bf16.gmra.mxu0 %v576
      %v652 = vpop.f32.mrf.mxu0
      %v653 = vadd.f32 0.0, %v652
      %v654 = vpop.f32.mrf.mxu0
      %v655 = vpop.f32.mrf.mxu0
      %v656 = vpop.f32.mrf.mxu0
      %657 = vdwg.mxu0
      %v658 = vadd.f32 %v421, %v613
      %v659 = vadd.f32 %v424, %v616
      %v660 = vadd.f32 %v429, %v621
      %v661 = vadd.f32 %v432, %v624
      %v662 = vadd.f32 %v437, %v629
      %v663 = vadd.f32 %v440, %v632
      %v664 = vadd.f32 %v445, %v637
      %v665 = vadd.f32 %v448, %v640
      %v666 = vadd.f32 %v453, %v645
      %v667 = vadd.f32 %v456, %v648
      %v668 = vadd.f32 %v461, %v653
      %v669 = vld [vmem:[%s165 + $0x4] sm:$0xe]
      %v670 = vld [vmem:[%s165 + $0x2c] sm:$0x3]
      %s671 = scalar_lea.vmem %s1, 24
      %v672 = vld [vmem:[%s671] sm:$0xf]
      %v673 = vld [vmem:[%s671 + $0x4] sm:$0xf]
      %v676 = vunpack.c.l.b16 %v669
      %v677 = vunpack.c.l.b16 %v670
      %v678 = vpack.c.b16 %v492, %v676
      %v679 = vpack.c.b16 %v677, %v677
      %vm680 = vcmask 1046528
      %v681 = vrot.slane %v678, 1
      %v682 = vrot.slane %v503, 1
      %v683 = vsel %vm680, %v681, %v682
      %v684 = vrot.slane %v504, 1
      %v685 = vsel %vm680, %v682, %v684
      %v686 = vrot.slane %v505, 1
      %v687 = vsel %vm680, %v684, %v686
      %v688 = vrot.slane %v506, 1
      %v689 = vsel %vm680, %v686, %v688
      %v690 = vrot.slane %v679, 1
      %v691 = vsel %vm680, %v688, %v690
      %v694 = vunpack.c.l.b16 %v672
      %v695 = vunpack.c.l.b16 %v673
      %v696 = vpack.c.b16 %v695, %v694
      %v699 = vsel %vm269, %v683, 0
      %v702 = vsel %vm269, %v685, 0
      %v705 = vsel %vm269, %v687, 0
      %v708 = vsel %vm269, %v689, 0
      %v711 = vsel %vm269, %v691, 0
      %v714 = vsel %vm269, %v690, 0
      %716 = vmatprep.subr.bf16.mxu0 0
      %717 = vmatpush1.bf16.msra.mxu0 0
      %718 = vmatprep.subr.bf16.mxu0 0
      %719 = vmatpush1.bf16.msra.mxu0 0
      %720 = vmatprep.subr.bf16.mxu0 0
      %721 = vmatpush1.bf16.msra.mxu0 0
      %722 = vmatprep.subr.bf16.mxu0 0
      %723 = vmatpush1.bf16.msra.mxu0 0
      %724 = vmatprep.subr.bf16.mxu0 0
      %725 = vmatpush1.bf16.msra.mxu0 0
      %726 = vmatprep.subr.bf16.mxu0 0
      %727 = vmatpush1.bf16.msra.mxu0 0
      %728 = vmatprep.subr.bf16.mxu0 0
      %729 = vmatpush1.bf16.msra.mxu0 0
      %730 = vmatprep.subr.bf16.mxu0 0
      %731 = vmatpush1.bf16.msra.mxu0 %v696
      %732 = vmatprep.subr.bf16.mxu0 0
      %733 = vmatpush2.bf16.msra.mxu0 0
      %734 = vmatprep.subr.bf16.mxu0 0
      %735 = vmatpush2.bf16.msra.mxu0 0
      %736 = vmatprep.subr.bf16.mxu0 0
      %737 = vmatpush2.bf16.msra.mxu0 0
      %738 = vmatprep.subr.bf16.mxu0 0
      %739 = vmatpush2.bf16.msra.mxu0 0
      %740 = vmatprep.subr.bf16.mxu0 0
      %741 = vmatpush2.bf16.msra.mxu0 0
      %742 = vmatprep.subr.bf16.mxu0 0
      %743 = vmatpush2.bf16.msra.mxu0 0
      %744 = vmatprep.subr.bf16.mxu0 0
      %745 = vmatpush2.bf16.msra.mxu0 0
      %746 = vmatprep.subr.bf16.mxu0 0
      %747 = vmatpush2.bf16.msra.mxu0 0
      %748 = vmatprep.mubr.bf16.mxu0 0
      %749 = vmatmul.mubr.bf16.gmra.mxu0 %v699
      %v750 = vpop.f32.mrf.mxu0
      %v751 = vadd.f32 0.0, %v750
      %v752 = vpop.f32.mrf.mxu0
      %v753 = vpop.f32.mrf.mxu0
      %v754 = vadd.f32 0.0, %v753
      %v755 = vpop.f32.mrf.mxu0
      %756 = vmatprep.mubr.bf16.mxu0 0
      %757 = vmatmul.mubr.bf16.gmra.mxu0 %v702
      %v758 = vpop.f32.mrf.mxu0
      %v759 = vadd.f32 0.0, %v758
      %v760 = vpop.f32.mrf.mxu0
      %v761 = vpop.f32.mrf.mxu0
      %v762 = vadd.f32 0.0, %v761
      %v763 = vpop.f32.mrf.mxu0
      %764 = vmatprep.mubr.bf16.mxu0 0
      %765 = vmatmul.mubr.bf16.gmra.mxu0 %v705
      %v766 = vpop.f32.mrf.mxu0
      %v767 = vadd.f32 0.0, %v766
      %v768 = vpop.f32.mrf.mxu0
      %v769 = vpop.f32.mrf.mxu0
      %v770 = vadd.f32 0.0, %v769
      %v771 = vpop.f32.mrf.mxu0
      %772 = vmatprep.mubr.bf16.mxu0 0
      %773 = vmatmul.mubr.bf16.gmra.mxu0 %v708
      %v774 = vpop.f32.mrf.mxu0
      %v775 = vadd.f32 0.0, %v774
      %v776 = vpop.f32.mrf.mxu0
      %v777 = vpop.f32.mrf.mxu0
      %v778 = vadd.f32 0.0, %v777
      %v779 = vpop.f32.mrf.mxu0
      %780 = vmatprep.mubr.bf16.mxu0 0
      %781 = vmatmul.mubr.bf16.gmra.mxu0 %v711
      %v782 = vpop.f32.mrf.mxu0
      %v783 = vadd.f32 0.0, %v782
      %v784 = vpop.f32.mrf.mxu0
      %v785 = vpop.f32.mrf.mxu0
      %v786 = vadd.f32 0.0, %v785
      %v787 = vpop.f32.mrf.mxu0
      %788 = vmatprep.mubr.bf16.mxu0 0
      %789 = vmatmul.mubr.bf16.gmra.mxu0 %v714
      %v790 = vpop.f32.mrf.mxu0
      %v791 = vadd.f32 0.0, %v790
      %v792 = vpop.f32.mrf.mxu0
      %v793 = vpop.f32.mrf.mxu0
      %v794 = vpop.f32.mrf.mxu0
      %795 = vdwg.mxu0
      %v796 = vadd.f32 %v658, %v751
      %v797 = vadd.f32 %v659, %v754
      %v798 = vadd.f32 %v660, %v759
      %v799 = vadd.f32 %v661, %v762
      %v800 = vadd.f32 %v662, %v767
      %v801 = vadd.f32 %v663, %v770
      %v802 = vadd.f32 %v664, %v775
      %v803 = vadd.f32 %v665, %v778
      %v804 = vadd.f32 %v666, %v783
      %v805 = vadd.f32 %v667, %v786
      %v806 = vadd.f32 %v668, %v791
      %v807 = vld [vmem:[%s2] sm:$0x1]
      %v809 = vlaneseq
      %v810 = vshrl.u32 %v809, 7
      %v811 = vsub.s32 0, %v810
      %v812 = vrot.slane %v807, %v811
      %v814 = vadd.f32 %v796, %v812
      %v815 = vadd.f32 %v797, %v812
      %v816 = vadd.f32 %v798, %v812
      %v817 = vadd.f32 %v799, %v812
      %v818 = vadd.f32 %v800, %v812
      %v819 = vadd.f32 %v801, %v812
      %v820 = vadd.f32 %v802, %v812
      %v821 = vadd.f32 %v803, %v812
      %v822 = vadd.f32 %v804, %v812
      %v823 = vadd.f32 %v805, %v812
      %v824 = vadd.f32 %v806, %v812
      %v825 = vmax.f32 %v814, 0.0
      %v826 = vmax.f32 %v815, 0.0
      %v827 = vmax.f32 %v816, 0.0
      %v828 = vmax.f32 %v817, 0.0
      %v829 = vmax.f32 %v818, 0.0
      %v830 = vmax.f32 %v819, 0.0
      %v831 = vmax.f32 %v820, 0.0
      %v832 = vmax.f32 %v821, 0.0
      %v833 = vmax.f32 %v822, 0.0
      %v834 = vmax.f32 %v823, 0.0
      %v835 = vmax.f32 %v824, 0.0
      %v836 = vpack.c.bf16 %v826, %v825
      %v837 = vpack.c.bf16 %v828, %v827
      %v838 = vpack.c.bf16 %v830, %v829
      %v839 = vpack.c.bf16 %v832, %v831
      %v840 = vpack.c.bf16 %v834, %v833
      %v841 = vpack.c.bf16 %v835, %v835
      %v848 = vunpack.c.l.b16 %v836
      %v849 = vunpack.c.h.b16 %v836
      %v850 = vunpack.c.l.b16 %v837
      %v851 = vunpack.c.h.b16 %v837
      %v852 = vunpack.c.l.b16 %v838
      %v853 = vunpack.c.h.b16 %v838
      %v854 = vunpack.c.l.b16 %v839
      %v855 = vunpack.c.h.b16 %v839
      %v856 = vunpack.c.l.b16 %v840
      %v857 = vunpack.c.h.b16 %v840
      %v858 = vunpack.c.l.b16 %v841
      %v859 = vpack.c.b16 %v848, %v848
      %v860 = vpack.c.b16 %v849, %v849
      %v861 = vpack.c.b16 %v850, %v850
      %v862 = vpack.c.b16 %v851, %v851
      %v863 = vpack.c.b16 %v852, %v852
      %v864 = vpack.c.b16 %v853, %v853
      %v865 = vpack.c.b16 %v854, %v854
      %v866 = vpack.c.b16 %v855, %v855
      %v867 = vpack.c.b16 %v856, %v856
      %v868 = vpack.c.b16 %v857, %v857
      %v869 = vpack.c.b16 %v858, %v858
      %vm881 = vcmask 519168
      %882 = vst.msk [vmem:[%s170] sm:$0xf] %vm881, %v859
      %883 = vst.msk [vmem:[%s170 + $0x4] sm:$0xf] %vm881, %v860
      %884 = vst.msk [vmem:[%s170 + $0x8] sm:$0xf] %vm881, %v861
      %885 = vst.msk [vmem:[%s170 + $0xc] sm:$0xf] %vm881, %v862
      %886 = vst.msk [vmem:[%s170 + $0x10] sm:$0xf] %vm881, %v863
      %887 = vst.msk [vmem:[%s170 + $0x14] sm:$0xf] %vm881, %v864
      %888 = vst.msk [vmem:[%s170 + $0x18] sm:$0xf] %vm881, %v865
      %889 = vst.msk [vmem:[%s170 + $0x1c] sm:$0xf] %vm881, %v866
      %890 = vst.msk [vmem:[%s170 + $0x20] sm:$0xf] %vm881, %v867
      %891 = vst.msk [vmem:[%s170 + $0x24] sm:$0xf] %vm881, %v868
      %vm892 = vcmask 516096
      %vm893 = vsmask.f32 256
      %vm894 = vmand %vm892, %vm893
      %v895 = vld [vmem:[%s170 + $0x28] sm:$0x1]
      %v896 = vsel %vm894, %v869, %v895
      %897 = vst [vmem:[%s170 + $0x28] sm:$0x1] %v896
      %p898 = scmp.lt.s32.totalorder %s14, 1
      %s899 = scalar_select %p898, %s14, 1
      %s900 = smul.addr %s899, 11
      %s901 = smul.addr %s900, 4
      %s902 = scalar_lea.vmem %s3, %s901
      // Predicated region
      $region33: #{adversarial_autoencoder_forward.4} parent=31 // pred_check
        %p903 = pneg %p100
      $region34: #{adversarial_autoencoder_forward.4} parent=31 // pred_check_branch
        %905 = sbr.rel (%p903) target = $region36
      $region35: #{adversarial_autoencoder_forward.4} parent=31 // pred_region
        _
      $region36: #{adversarial_autoencoder_forward.4} parent=31 // pred_fallthru
        _
    $region32: #{adversarial_autoencoder_forward.4} parent=5 // pred_fallthru
      _
    %p906 = scmp.le.s32.totalorder 2, %s9
    // Predicated region
    $region37: #{adversarial_autoencoder_forward.4} parent=5 // pred_check
      %p907 = pneg %p906
    $region38: #{adversarial_autoencoder_forward.4} parent=5 // pred_check_branch
      %909 = sbr.rel (%p907) target = $region40
    $region39: #{adversarial_autoencoder_forward.4} parent=5 // pred_region
      %s910 = ssub.s32 %s9, 2
      // Predicated region
      $region41: #{adversarial_autoencoder_forward.4} parent=39 // pred_check
        %p911 = pneg %p106
      $region42: #{adversarial_autoencoder_forward.4} parent=39 // pred_check_branch
        %913 = sbr.rel (%p911) target = $region44
      $region43: #{adversarial_autoencoder_forward.4} parent=39 // pred_region
        %p914 = scmp.lt.s32.totalorder %s15, 1
        %s915 = scalar_select %p914, %s15, 1
        %s916 = smul.addr %s915, 11
        %s917 = smul.addr %s916, 4
        %s918 = scalar_lea.vmem %s3, %s917
      $region44: #{adversarial_autoencoder_forward.4} parent=39 // pred_fallthru
        _
    $region40: #{adversarial_autoencoder_forward.4} parent=5 // pred_fallthru
      _
  $region6: #{adversarial_autoencoder_forward.4} parent=0 // loop_footer
    %s13 = sadd.s32 1, %s9
  $region7: #{adversarial_autoencoder_forward.4} parent=0 // loop_footer_branch
    %8 = sbr.rel target = $region3
  $region8: #{adversarial_autoencoder_forward.4} parent=0 // loop_exit
    _

// kernel: adversarial_autoencoder_forward.5
$region0: #{adversarial_autoencoder_forward.5}
  #allocation0 [shape = 'u32[]', space=smem, size = 0x4, offset = 0x4, fixed_abs, tag = 'smem constant byte address 0x4 - core index']
  #allocation1 [shape = 'u32[144,128]{1,0:T(1,128)}', space=vmem, size = 0x12000, scoped, tag = 'internal scratch']
  %s0 = inlined_call_operand.vmem [shape: bf16[2,31,256], index: 0, kind: input, shape index: {}]
  %s1 = inlined_call_operand.vmem [shape: bf16[4,256,128], index: 1, kind: input, shape index: {}]
  %s2 = inlined_call_operand.vmem [shape: f32[1,128], index: 2, kind: input, shape index: {}]
  %s3 = inlined_call_operand.vmem [shape: bf16[2,25,128], index: 3, kind: output, shape index: {}]
  %s4 = sld [smem:[#allocation0]]
  $region45: #{adversarial_autoencoder_forward.5} parent=0
    _
  %s6 = ssub.s32 1, %s4
  %s7 = scalar_select 0, %s6, %s4
  loop: start=0, step=1, limit=4
  $region2: #{adversarial_autoencoder_forward.5} parent=0 // loop_pre_header
    _
  $region3: #{adversarial_autoencoder_forward.5} parent=0 // loop_header
    %s9 = sphi 0, %s13
    %p10 = scmp.ge.s32.totalorder %s9, 4
    %s19 = sphi 0, %s21
    %s22 = sphi 0, %s19
    %s23 = sphi 0, %s22
    %s39 = sphi 0, %s23
    %s43 = sphi 0, %s43
    %s45 = sphi 0, %s43
    %s46 = sphi 0, %s45
    %s60 = sphi 0, %s46
    %s64 = sphi 0, %s64
    %s66 = sphi 0, %s64
    %s67 = sphi 0, %s66
    %s81 = sphi 0, %s67
    %s87 = sphi 0, %s89
    %s90 = sphi 0, %s87
    %s91 = sphi 0, %s90
    %s107 = sphi 0, %s91
  $region4: #{adversarial_autoencoder_forward.5} parent=0 // loop_header_branch
    %12 = sbr.rel (%p10) target = $region8
  $region5: #{adversarial_autoencoder_forward.5} parent=0 // loop_body
    %s14 = ssub.s32 %s9, 1
    %s15 = ssub.s32 %s9, 2
    %s16 = sadd.s32 %s9, 1
    %s17 = ssub.s32 %s9, %s16
    %p18 = scmp.eq.s32.totalorder %s17, 0
    %s20 = sadd.s32 %s19, 1
    %s21 = scalar_select %p18, %s19, %s20
    %p24 = pneg %p18
    %p25 = scmp.eq.s32.totalorder %s9, 1
    %p26 = por %p24, %p25
    %p27 = scmp.ne.s32.totalorder %s19, %s22
    %p28 = scmp.eq.s32.totalorder %s9, 0
    %p29 = por %p27, %p28
    %p30 = scmp.ne.s32.totalorder %s19, %s22
    %p31 = scmp.eq.s32.totalorder %s14, 1
    %p32 = por %p30, %p31
    %p33 = scmp.ne.s32.totalorder %s22, %s23
    %p34 = scmp.eq.s32.totalorder %s14, 0
    %p35 = por %p33, %p34
    %p36 = scmp.ne.s32.totalorder %s22, %s23
    %p37 = scmp.eq.s32.totalorder %s15, 1
    %p38 = por %p36, %p37
    %p40 = scmp.ne.s32.totalorder %s23, %s39
    %p41 = scmp.eq.s32.totalorder %s15, 0
    %p42 = por %p40, %p41
    %s44 = sadd.s32 %s43, 1
    %p47 = scmp.eq.s32.totalorder %s9, 1
    %p48 = scmp.ne.s32.totalorder %s43, %s45
    %p49 = scmp.eq.s32.totalorder %s9, 0
    %p50 = por %p48, %p49
    %p51 = scmp.ne.s32.totalorder %s43, %s45
    %p52 = scmp.eq.s32.totalorder %s14, 1
    %p53 = por %p51, %p52
    %p54 = scmp.ne.s32.totalorder %s45, %s46
    %p55 = scmp.eq.s32.totalorder %s14, 0
    %p56 = por %p54, %p55
    %p57 = scmp.ne.s32.totalorder %s45, %s46
    %p58 = scmp.eq.s32.totalorder %s15, 1
    %p59 = por %p57, %p58
    %p61 = scmp.ne.s32.totalorder %s46, %s60
    %p62 = scmp.eq.s32.totalorder %s15, 0
    %p63 = por %p61, %p62
    %s65 = sadd.s32 %s64, 1
    %p68 = scmp.eq.s32.totalorder %s9, 1
    %p69 = scmp.ne.s32.totalorder %s64, %s66
    %p70 = scmp.eq.s32.totalorder %s9, 0
    %p71 = por %p69, %p70
    %p72 = scmp.ne.s32.totalorder %s64, %s66
    %p73 = scmp.eq.s32.totalorder %s14, 1
    %p74 = por %p72, %p73
    %p75 = scmp.ne.s32.totalorder %s66, %s67
    %p76 = scmp.eq.s32.totalorder %s14, 0
    %p77 = por %p75, %p76
    %p78 = scmp.ne.s32.totalorder %s66, %s67
    %p79 = scmp.eq.s32.totalorder %s15, 1
    %p80 = por %p78, %p79
    %p82 = scmp.ne.s32.totalorder %s67, %s81
    %p83 = scmp.eq.s32.totalorder %s15, 0
    %p84 = por %p82, %p83
    %s85 = ssub.s32 %s9, %s16
    %p86 = scmp.eq.s32.totalorder %s85, 0
    %s88 = sadd.s32 %s87, 1
    %s89 = scalar_select %p86, %s87, %s88
    %p92 = pneg %p86
    %p93 = scmp.eq.s32.totalorder %s9, 1
    %p94 = por %p92, %p93
    %p95 = scmp.ne.s32.totalorder %s87, %s90
    %p96 = scmp.eq.s32.totalorder %s9, 0
    %p97 = por %p95, %p96
    %p98 = scmp.ne.s32.totalorder %s87, %s90
    %p99 = scmp.eq.s32.totalorder %s14, 1
    %p100 = por %p98, %p99
    %p101 = scmp.ne.s32.totalorder %s90, %s91
    %p102 = scmp.eq.s32.totalorder %s14, 0
    %p103 = por %p101, %p102
    %p104 = scmp.ne.s32.totalorder %s90, %s91
    %p105 = scmp.eq.s32.totalorder %s15, 1
    %p106 = por %p104, %p105
    %p108 = scmp.ne.s32.totalorder %s91, %s107
    %p109 = scmp.eq.s32.totalorder %s15, 0
    %p110 = por %p108, %p109
    %p111 = scmp.le.s32.totalorder 1, %s9
    %p112 = scmp.lt.s32.totalorder %s9, 3
    %p113 = pnand %p111, %p112
    %p114 = pneg %p113
    // Predicated region
    $region9: #{adversarial_autoencoder_forward.5} parent=5 // pred_check
      _
    $region10: #{adversarial_autoencoder_forward.5} parent=5 // pred_check_branch
      %116 = sbr.rel (%p113) target = $region12
    $region11: #{adversarial_autoencoder_forward.5} parent=5 // pred_region
      %s117 = ssub.s32 %s9, 1
      // Predicated region
      $region13: #{adversarial_autoencoder_forward.5} parent=11 // pred_check
        %p118 = pneg %p56
      $region14: #{adversarial_autoencoder_forward.5} parent=11 // pred_check_branch
        %120 = sbr.rel (%p118) target = $region16
      $region15: #{adversarial_autoencoder_forward.5} parent=11 // pred_region
        _
      $region16: #{adversarial_autoencoder_forward.5} parent=11 // pred_fallthru
        _
      // Predicated region
      $region17: #{adversarial_autoencoder_forward.5} parent=11 // pred_check
        %p121 = pneg %p77
      $region18: #{adversarial_autoencoder_forward.5} parent=11 // pred_check_branch
        %123 = sbr.rel (%p121) target = $region20
      $region19: #{adversarial_autoencoder_forward.5} parent=11 // pred_region
        _
      $region20: #{adversarial_autoencoder_forward.5} parent=11 // pred_fallthru
        _
    $region12: #{adversarial_autoencoder_forward.5} parent=5 // pred_fallthru
      _
    %p124 = scmp.lt.s32.totalorder %s9, 2
    // Predicated region
    $region21: #{adversarial_autoencoder_forward.5} parent=5 // pred_check
      %p125 = pneg %p124
    $region22: #{adversarial_autoencoder_forward.5} parent=5 // pred_check_branch
      %127 = sbr.rel (%p125) target = $region24
    $region23: #{adversarial_autoencoder_forward.5} parent=5 // pred_region
      // Predicated region
      $region25: #{adversarial_autoencoder_forward.5} parent=23 // pred_check
        %p128 = pneg %p29
      $region26: #{adversarial_autoencoder_forward.5} parent=23 // pred_check_branch
        %130 = sbr.rel (%p128) target = $region28
      $region27: #{adversarial_autoencoder_forward.5} parent=23 // pred_region
        %p131 = scmp.lt.s32.totalorder %s9, 1
        %s132 = scalar_select %p131, %s9, 1
        %s133 = smul.addr %s132, 8
        %s134 = smul.addr %s133, 4
        %s135 = scalar_lea.vmem %s0, %s134
      $region28: #{adversarial_autoencoder_forward.5} parent=23 // pred_fallthru
        _
    $region24: #{adversarial_autoencoder_forward.5} parent=5 // pred_fallthru
      _
    %p136 = scmp.le.s32.totalorder 1, %s9
    %p137 = scmp.lt.s32.totalorder %s9, 3
    %p138 = pnand %p136, %p137
    %p139 = pneg %p138
    // Predicated region
    $region29: #{adversarial_autoencoder_forward.5} parent=5 // pred_check
      _
    $region30: #{adversarial_autoencoder_forward.5} parent=5 // pred_check_branch
      %141 = sbr.rel (%p138) target = $region32
    $region31: #{adversarial_autoencoder_forward.5} parent=5 // pred_region
      %s142 = ssub.s32 %s9, 1
      %p143 = scmp.lt.s32.totalorder %s14, 1
      %s144 = scalar_select %p143, %s14, 1
      %s145 = smul.addr %s144, 8
      %s146 = smul.addr %s145, 4
      %s147 = scalar_lea.vmem %s0, %s146
      %p148 = pneg %p35
      %p149 = pneg %p32
      %p150 = pneg %p56
      %p151 = pneg %p53
      %p152 = pneg %p77
      %p153 = pneg %p74
      %p154 = pneg %p103
      %p155 = pneg %p100
      %p156 = scmp.lt.s32.totalorder %s14, 1
      %s157 = scalar_select %p156, %s14, 1
      %s158 = smul.addr %s157, 4
      %s159 = smul.addr %s158, 4
      %s160 = scalar_lea.vmem %s3, %s159
      %p161 = scmp.lt.s32.totalorder %s14, 1
      %s162 = scalar_select %p161, %s14, 1
      %s163 = smul.addr %s162, 8
      %s164 = smul.addr %s163, 4
      %s165 = scalar_lea.vmem %s0, %s164
      %p166 = scmp.lt.s32.totalorder %s14, 1
      %s167 = scalar_select %p166, %s14, 1
      %s168 = smul.addr %s167, 4
      %s169 = smul.addr %s168, 4
      %s170 = scalar_lea.vmem %s3, %s169
      %v172 = vld [vmem:[%s165] sm:$0xff]
      %v173 = vld [vmem:[%s165 + $0x8] sm:$0xff]
      %v174 = vld [vmem:[%s165 + $0x10] sm:$0xff]
      %v175 = vld [vmem:[%s165 + $0x18] sm:$0x11]
      %v176 = vld [vmem:[%s1] sm:$0xf]
      %v177 = vld [vmem:[%s1 + $0x4] sm:$0xf]
      %v178 = vld [vmem:[%s1 + $0x8] sm:$0xf]
      %v179 = vld [vmem:[%s1 + $0xc] sm:$0xf]
      %v180 = vld [vmem:[%s1 + $0x10] sm:$0xf]
      %v181 = vld [vmem:[%s1 + $0x14] sm:$0xf]
      %v182 = vld [vmem:[%s1 + $0x18] sm:$0xf]
      %v183 = vld [vmem:[%s1 + $0x1c] sm:$0xf]
      %v184 = vld [vmem:[%s1 + $0x20] sm:$0xf]
      %v185 = vld [vmem:[%s1 + $0x24] sm:$0xf]
      %v186 = vld [vmem:[%s1 + $0x28] sm:$0xf]
      %v187 = vld [vmem:[%s1 + $0x2c] sm:$0xf]
      %v188 = vld [vmem:[%s1 + $0x30] sm:$0xf]
      %v189 = vld [vmem:[%s1 + $0x34] sm:$0xf]
      %v190 = vld [vmem:[%s1 + $0x38] sm:$0xf]
      %v191 = vld [vmem:[%s1 + $0x3c] sm:$0xf]
      %v192 = vld [vmem:[%s1 + $0x40] sm:$0xf]
      %v193 = vld [vmem:[%s1 + $0x44] sm:$0xf]
      %v194 = vld [vmem:[%s1 + $0x48] sm:$0xf]
      %v195 = vld [vmem:[%s1 + $0x4c] sm:$0xf]
      %v196 = vld [vmem:[%s1 + $0x50] sm:$0xf]
      %v197 = vld [vmem:[%s1 + $0x54] sm:$0xf]
      %v198 = vld [vmem:[%s1 + $0x58] sm:$0xf]
      %v199 = vld [vmem:[%s1 + $0x5c] sm:$0xf]
      %v200 = vld [vmem:[%s1 + $0x60] sm:$0xf]
      %v201 = vld [vmem:[%s1 + $0x64] sm:$0xf]
      %v202 = vld [vmem:[%s1 + $0x68] sm:$0xf]
      %v203 = vld [vmem:[%s1 + $0x6c] sm:$0xf]
      %v204 = vld [vmem:[%s1 + $0x70] sm:$0xf]
      %v205 = vld [vmem:[%s1 + $0x74] sm:$0xf]
      %v206 = vld [vmem:[%s1 + $0x78] sm:$0xf]
      %v207 = vld [vmem:[%s1 + $0x7c] sm:$0xf]
      %s208 = scalar_lea.vmem %s1, 128
      %v209 = vld [vmem:[%s208] sm:$0xf]
      %v210 = vld [vmem:[%s208 + $0x4] sm:$0xf]
      %v211 = vld [vmem:[%s208 + $0x8] sm:$0xf]
      %v212 = vld [vmem:[%s208 + $0xc] sm:$0xf]
      %v213 = vld [vmem:[%s208 + $0x10] sm:$0xf]
      %v214 = vld [vmem:[%s208 + $0x14] sm:$0xf]
      %v215 = vld [vmem:[%s208 + $0x18] sm:$0xf]
      %v216 = vld [vmem:[%s208 + $0x1c] sm:$0xf]
      %v217 = vld [vmem:[%s208 + $0x20] sm:$0xf]
      %v218 = vld [vmem:[%s208 + $0x24] sm:$0xf]
      %v219 = vld [vmem:[%s208 + $0x28] sm:$0xf]
      %v220 = vld [vmem:[%s208 + $0x2c] sm:$0xf]
      %v221 = vld [vmem:[%s208 + $0x30] sm:$0xf]
      %v222 = vld [vmem:[%s208 + $0x34] sm:$0xf]
      %v223 = vld [vmem:[%s208 + $0x38] sm:$0xf]
      %v224 = vld [vmem:[%s208 + $0x3c] sm:$0xf]
      %v225 = vld [vmem:[%s208 + $0x40] sm:$0xf]
      %v226 = vld [vmem:[%s208 + $0x44] sm:$0xf]
      %v227 = vld [vmem:[%s208 + $0x48] sm:$0xf]
      %v228 = vld [vmem:[%s208 + $0x4c] sm:$0xf]
      %v229 = vld [vmem:[%s208 + $0x50] sm:$0xf]
      %v230 = vld [vmem:[%s208 + $0x54] sm:$0xf]
      %v231 = vld [vmem:[%s208 + $0x58] sm:$0xf]
      %v232 = vld [vmem:[%s208 + $0x5c] sm:$0xf]
      %v233 = vld [vmem:[%s208 + $0x60] sm:$0xf]
      %v234 = vld [vmem:[%s208 + $0x64] sm:$0xf]
      %v235 = vld [vmem:[%s208 + $0x68] sm:$0xf]
      %v236 = vld [vmem:[%s208 + $0x6c] sm:$0xf]
      %v237 = vld [vmem:[%s208 + $0x70] sm:$0xf]
      %v238 = vld [vmem:[%s208 + $0x74] sm:$0xf]
      %v239 = vld [vmem:[%s208 + $0x78] sm:$0xf]
      %v240 = vld [vmem:[%s208 + $0x7c] sm:$0xf]
      %v245 = vunpack.c.l.b16 %v172
      %v246 = vunpack.c.h.b16 %v172
      %v247 = vunpack.c.l.b16 %v173
      %v248 = vunpack.c.h.b16 %v173
      %v249 = vunpack.c.l.b16 %v174
      %v250 = vunpack.c.h.b16 %v174
      %v251 = vunpack.c.l.b16 %v175
      %v252 = vunpack.c.h.b16 %v175
      %v253 = vpack.c.b16 %v247, %v245
      %v254 = vpack.c.b16 %v248, %v246
      %v255 = vpack.c.b16 %v251, %v249
      %v256 = vpack.c.b16 %v252, %v250
      %vm257 = vsmask.f32 7424
      %v259 = vshrl.u32 %v253, 16
      %v261 = vshll.u32 %v253, 16
      %v263 = vrot.slane %v261, 1
      %v264 = vor.u32 %v259, %v263
      %v266 = vshll.u32 %v255, 16
      %v268 = vrot.slane %v266, 1
      %v269 = vsel %vm257, %v264, %v268
      %v271 = vshrl.u32 %v254, 16
      %v273 = vshll.u32 %v254, 16
      %v275 = vrot.slane %v273, 1
      %v276 = vor.u32 %v271, %v275
      %v278 = vshll.u32 %v256, 16
      %v280 = vrot.slane %v278, 1
      %v281 = vsel %vm257, %v276, %v280
      %v282 = vshrl.u32 %v255, 16
      %v284 = vor.u32 %v282, %v268
      %v285 = vshrl.u32 %v256, 16
      %v287 = vor.u32 %v285, %v280
      %v324 = vunpack.c.l.b16 %v209
      %v325 = vunpack.c.l.b16 %v210
      %v326 = vunpack.c.l.b16 %v211
      %v327 = vunpack.c.l.b16 %v212
      %v328 = vunpack.c.l.b16 %v213
      %v329 = vunpack.c.l.b16 %v214
      %v330 = vunpack.c.l.b16 %v215
      %v331 = vunpack.c.l.b16 %v216
      %v332 = vunpack.c.l.b16 %v217
      %v333 = vunpack.c.l.b16 %v218
      %v334 = vunpack.c.l.b16 %v219
      %v335 = vunpack.c.l.b16 %v220
      %v336 = vunpack.c.l.b16 %v221
      %v337 = vunpack.c.l.b16 %v222
      %v338 = vunpack.c.l.b16 %v223
      %v339 = vunpack.c.l.b16 %v224
      %v340 = vunpack.c.l.b16 %v225
      %v341 = vunpack.c.l.b16 %v226
      %v342 = vunpack.c.l.b16 %v227
      %v343 = vunpack.c.l.b16 %v228
      %v344 = vunpack.c.l.b16 %v229
      %v345 = vunpack.c.l.b16 %v230
      %v346 = vunpack.c.l.b16 %v231
      %v347 = vunpack.c.l.b16 %v232
      %v348 = vunpack.c.l.b16 %v233
      %v349 = vunpack.c.l.b16 %v234
      %v350 = vunpack.c.l.b16 %v235
      %v351 = vunpack.c.l.b16 %v236
      %v352 = vunpack.c.l.b16 %v237
      %v353 = vunpack.c.l.b16 %v238
      %v354 = vunpack.c.l.b16 %v239
      %v355 = vunpack.c.l.b16 %v240
      %v356 = vpack.c.b16 %v325, %v324
      %v357 = vpack.c.b16 %v327, %v326
      %v358 = vpack.c.b16 %v329, %v328
      %v359 = vpack.c.b16 %v331, %v330
      %v360 = vpack.c.b16 %v333, %v332
      %v361 = vpack.c.b16 %v335, %v334
      %v362 = vpack.c.b16 %v337, %v336
      %v363 = vpack.c.b16 %v339, %v338
      %v364 = vpack.c.b16 %v341, %v340
      %v365 = vpack.c.b16 %v343, %v342
      %v366 = vpack.c.b16 %v345, %v344
      %v367 = vpack.c.b16 %v347, %v346
      %v368 = vpack.c.b16 %v349, %v348
      %v369 = vpack.c.b16 %v351, %v350
      %v370 = vpack.c.b16 %v353, %v352
      %v371 = vpack.c.b16 %v355, %v354
      %388 = vmatprep.subr.bf16.mxu0 0
      %389 = vmatpush1.bf16.msra.mxu0 %v363
      %390 = vmatprep.subr.bf16.mxu0 0
      %391 = vmatpush1.bf16.msra.mxu0 %v362
      %392 = vmatprep.subr.bf16.mxu0 0
      %393 = vmatpush1.bf16.msra.mxu0 %v361
      %394 = vmatprep.subr.bf16.mxu0 0
      %395 = vmatpush1.bf16.msra.mxu0 %v360
      %396 = vmatprep.subr.bf16.mxu0 0
      %397 = vmatpush1.bf16.msra.mxu0 %v359
      %398 = vmatprep.subr.bf16.mxu0 0
      %399 = vmatpush1.bf16.msra.mxu0 %v358
      %400 = vmatprep.subr.bf16.mxu0 0
      %401 = vmatpush1.bf16.msra.mxu0 %v357
      %402 = vmatprep.subr.bf16.mxu0 0
      %403 = vmatpush1.bf16.msra.mxu0 %v356
      %404 = vmatprep.subr.bf16.mxu0 0
      %405 = vmatpush2.bf16.msra.mxu0 %v371
      %406 = vmatprep.subr.bf16.mxu0 0
      %407 = vmatpush2.bf16.msra.mxu0 %v370
      %408 = vmatprep.subr.bf16.mxu0 0
      %409 = vmatpush2.bf16.msra.mxu0 %v369
      %410 = vmatprep.subr.bf16.mxu0 0
      %411 = vmatpush2.bf16.msra.mxu0 %v368
      %412 = vmatprep.subr.bf16.mxu0 0
      %413 = vmatpush2.bf16.msra.mxu0 %v367
      %414 = vmatprep.subr.bf16.mxu0 0
      %415 = vmatpush2.bf16.msra.mxu0 %v366
      %416 = vmatprep.subr.bf16.mxu0 0
      %417 = vmatpush2.bf16.msra.mxu0 %v365
      %418 = vmatprep.subr.bf16.mxu0 0
      %419 = vmatpush2.bf16.msra.mxu0 %v364
      %420 = vmatprep.mubr.bf16.mxu0 %v281
      %421 = vmatmul.mubr.bf16.gmra.mxu0 %v269
      %v422 = vpop.f32.mrf.mxu0
      %v423 = vadd.f32 0.0, %v422
      %v424 = vpop.f32.mrf.mxu0
      %v425 = vpop.f32.mrf.mxu0
      %v426 = vadd.f32 0.0, %v425
      %v427 = vpop.f32.mrf.mxu0
      %428 = vmatprep.mubr.bf16.mxu0 %v287
      %429 = vmatmul.mubr.bf16.gmra.mxu0 %v284
      %v430 = vpop.f32.mrf.mxu0
      %v431 = vadd.f32 0.0, %v430
      %v432 = vpop.f32.mrf.mxu0
      %v433 = vpop.f32.mrf.mxu0
      %v434 = vadd.f32 0.0, %v433
      %v435 = vpop.f32.mrf.mxu0
      %436 = vdwg.mxu0
      %v473 = vunpack.c.l.b16 %v176
      %v474 = vunpack.c.l.b16 %v177
      %v475 = vunpack.c.l.b16 %v178
      %v476 = vunpack.c.l.b16 %v179
      %v477 = vunpack.c.l.b16 %v180
      %v478 = vunpack.c.l.b16 %v181
      %v479 = vunpack.c.l.b16 %v182
      %v480 = vunpack.c.l.b16 %v183
      %v481 = vunpack.c.l.b16 %v184
      %v482 = vunpack.c.l.b16 %v185
      %v483 = vunpack.c.l.b16 %v186
      %v484 = vunpack.c.l.b16 %v187
      %v485 = vunpack.c.l.b16 %v188
      %v486 = vunpack.c.l.b16 %v189
      %v487 = vunpack.c.l.b16 %v190
      %v488 = vunpack.c.l.b16 %v191
      %v489 = vunpack.c.l.b16 %v192
      %v490 = vunpack.c.l.b16 %v193
      %v491 = vunpack.c.l.b16 %v194
      %v492 = vunpack.c.l.b16 %v195
      %v493 = vunpack.c.l.b16 %v196
      %v494 = vunpack.c.l.b16 %v197
      %v495 = vunpack.c.l.b16 %v198
      %v496 = vunpack.c.l.b16 %v199
      %v497 = vunpack.c.l.b16 %v200
      %v498 = vunpack.c.l.b16 %v201
      %v499 = vunpack.c.l.b16 %v202
      %v500 = vunpack.c.l.b16 %v203
      %v501 = vunpack.c.l.b16 %v204
      %v502 = vunpack.c.l.b16 %v205
      %v503 = vunpack.c.l.b16 %v206
      %v504 = vunpack.c.l.b16 %v207
      %v505 = vpack.c.b16 %v474, %v473
      %v506 = vpack.c.b16 %v476, %v475
      %v507 = vpack.c.b16 %v478, %v477
      %v508 = vpack.c.b16 %v480, %v479
      %v509 = vpack.c.b16 %v482, %v481
      %v510 = vpack.c.b16 %v484, %v483
      %v511 = vpack.c.b16 %v486, %v485
      %v512 = vpack.c.b16 %v488, %v487
      %v513 = vpack.c.b16 %v490, %v489
      %v514 = vpack.c.b16 %v492, %v491
      %v515 = vpack.c.b16 %v494, %v493
      %v516 = vpack.c.b16 %v496, %v495
      %v517 = vpack.c.b16 %v498, %v497
      %v518 = vpack.c.b16 %v500, %v499
      %v519 = vpack.c.b16 %v502, %v501
      %v520 = vpack.c.b16 %v504, %v503
      %537 = vmatprep.subr.bf16.mxu0 0
      %538 = vmatpush1.bf16.msra.mxu0 %v512
      %539 = vmatprep.subr.bf16.mxu0 0
      %540 = vmatpush1.bf16.msra.mxu0 %v511
      %541 = vmatprep.subr.bf16.mxu0 0
      %542 = vmatpush1.bf16.msra.mxu0 %v510
      %543 = vmatprep.subr.bf16.mxu0 0
      %544 = vmatpush1.bf16.msra.mxu0 %v509
      %545 = vmatprep.subr.bf16.mxu0 0
      %546 = vmatpush1.bf16.msra.mxu0 %v508
      %547 = vmatprep.subr.bf16.mxu0 0
      %548 = vmatpush1.bf16.msra.mxu0 %v507
      %549 = vmatprep.subr.bf16.mxu0 0
      %550 = vmatpush1.bf16.msra.mxu0 %v506
      %551 = vmatprep.subr.bf16.mxu0 0
      %552 = vmatpush1.bf16.msra.mxu0 %v505
      %553 = vmatprep.subr.bf16.mxu0 0
      %554 = vmatpush2.bf16.msra.mxu0 %v520
      %555 = vmatprep.subr.bf16.mxu0 0
      %556 = vmatpush2.bf16.msra.mxu0 %v519
      %557 = vmatprep.subr.bf16.mxu0 0
      %558 = vmatpush2.bf16.msra.mxu0 %v518
      %559 = vmatprep.subr.bf16.mxu0 0
      %560 = vmatpush2.bf16.msra.mxu0 %v517
      %561 = vmatprep.subr.bf16.mxu0 0
      %562 = vmatpush2.bf16.msra.mxu0 %v516
      %563 = vmatprep.subr.bf16.mxu0 0
      %564 = vmatpush2.bf16.msra.mxu0 %v515
      %565 = vmatprep.subr.bf16.mxu0 0
      %566 = vmatpush2.bf16.msra.mxu0 %v514
      %567 = vmatprep.subr.bf16.mxu0 0
      %568 = vmatpush2.bf16.msra.mxu0 %v513
      %569 = vmatprep.mubr.bf16.mxu0 %v254
      %570 = vmatmul.mubr.bf16.gmra.mxu0 %v253
      %v571 = vpop.f32.mrf.mxu0
      %v572 = vadd.f32 %v423, %v571
      %v573 = vpop.f32.mrf.mxu0
      %v574 = vpop.f32.mrf.mxu0
      %v575 = vadd.f32 %v426, %v574
      %v576 = vpop.f32.mrf.mxu0
      %577 = vmatprep.mubr.bf16.mxu0 %v256
      %578 = vmatmul.mubr.bf16.gmra.mxu0 %v255
      %v579 = vpop.f32.mrf.mxu0
      %v580 = vadd.f32 %v431, %v579
      %v581 = vpop.f32.mrf.mxu0
      %v582 = vpop.f32.mrf.mxu0
      %v583 = vadd.f32 %v434, %v582
      %v584 = vpop.f32.mrf.mxu0
      %585 = vdwg.mxu0
      %v586 = vld [vmem:[%s165] sm:$0xcc]
      %v587 = vld [vmem:[%s165 + $0x18] sm:$0x77]
      %s588 = scalar_lea.vmem %s1, 256
      %v589 = vld [vmem:[%s588] sm:$0xf]
      %v590 = vld [vmem:[%s588 + $0x4] sm:$0xf]
      %v591 = vld [vmem:[%s588 + $0x8] sm:$0xf]
      %v592 = vld [vmem:[%s588 + $0xc] sm:$0xf]
      %v593 = vld [vmem:[%s588 + $0x10] sm:$0xf]
      %v594 = vld [vmem:[%s588 + $0x14] sm:$0xf]
      %v595 = vld [vmem:[%s588 + $0x18] sm:$0xf]
      %v596 = vld [vmem:[%s588 + $0x1c] sm:$0xf]
      %v597 = vld [vmem:[%s588 + $0x20] sm:$0xf]
      %v598 = vld [vmem:[%s588 + $0x24] sm:$0xf]
      %v599 = vld [vmem:[%s588 + $0x28] sm:$0xf]
      %v600 = vld [vmem:[%s588 + $0x2c] sm:$0xf]
      %v601 = vld [vmem:[%s588 + $0x30] sm:$0xf]
      %v602 = vld [vmem:[%s588 + $0x34] sm:$0xf]
      %v603 = vld [vmem:[%s588 + $0x38] sm:$0xf]
      %v604 = vld [vmem:[%s588 + $0x3c] sm:$0xf]
      %v605 = vld [vmem:[%s588 + $0x40] sm:$0xf]
      %v606 = vld [vmem:[%s588 + $0x44] sm:$0xf]
      %v607 = vld [vmem:[%s588 + $0x48] sm:$0xf]
      %v608 = vld [vmem:[%s588 + $0x4c] sm:$0xf]
      %v609 = vld [vmem:[%s588 + $0x50] sm:$0xf]
      %v610 = vld [vmem:[%s588 + $0x54] sm:$0xf]
      %v611 = vld [vmem:[%s588 + $0x58] sm:$0xf]
      %v612 = vld [vmem:[%s588 + $0x5c] sm:$0xf]
      %v613 = vld [vmem:[%s588 + $0x60] sm:$0xf]
      %v614 = vld [vmem:[%s588 + $0x64] sm:$0xf]
      %v615 = vld [vmem:[%s588 + $0x68] sm:$0xf]
      %v616 = vld [vmem:[%s588 + $0x6c] sm:$0xf]
      %v617 = vld [vmem:[%s588 + $0x70] sm:$0xf]
      %v618 = vld [vmem:[%s588 + $0x74] sm:$0xf]
      %v619 = vld [vmem:[%s588 + $0x78] sm:$0xf]
      %v620 = vld [vmem:[%s588 + $0x7c] sm:$0xf]
      %v623 = vunpack.c.l.b16 %v586
      %v624 = vunpack.c.h.b16 %v586
      %v625 = vunpack.c.l.b16 %v587
      %v626 = vunpack.c.h.b16 %v587
      %v627 = vpack.c.b16 %v247, %v623
      %v628 = vpack.c.b16 %v248, %v624
      %v629 = vpack.c.b16 %v625, %v249
      %v630 = vpack.c.b16 %v626, %v250
      %vm631 = vsmask.f32 5376
      %v633 = vshrl.u32 %v627, 16
      %v635 = vrot.slane %v633, 2
      %v636 = vshll.u32 %v627, 16
      %v638 = vrot.slane %v636, 3
      %v639 = vor.u32 %v635, %v638
      %v641 = vshrl.u32 %v629, 16
      %v643 = vrot.slane %v641, 2
      %v644 = vshll.u32 %v629, 16
      %v646 = vrot.slane %v644, 3
      %v647 = vor.u32 %v643, %v646
      %v648 = vsel %vm631, %v639, %v647
      %v650 = vshrl.u32 %v628, 16
      %v652 = vrot.slane %v650, 2
      %v653 = vshll.u32 %v628, 16
      %v655 = vrot.slane %v653, 3
      %v656 = vor.u32 %v652, %v655
      %v658 = vshrl.u32 %v630, 16
      %v660 = vrot.slane %v658, 2
      %v661 = vshll.u32 %v630, 16
      %v663 = vrot.slane %v661, 3
      %v664 = vor.u32 %v660, %v663
      %v665 = vsel %vm631, %v656, %v664
      %v702 = vunpack.c.l.b16 %v589
      %v703 = vunpack.c.l.b16 %v590
      %v704 = vunpack.c.l.b16 %v591
      %v705 = vunpack.c.l.b16 %v592
      %v706 = vunpack.c.l.b16 %v593
      %v707 = vunpack.c.l.b16 %v594
      %v708 = vunpack.c.l.b16 %v595
      %v709 = vunpack.c.l.b16 %v596
      %v710 = vunpack.c.l.b16 %v597
      %v711 = vunpack.c.l.b16 %v598
      %v712 = vunpack.c.l.b16 %v599
      %v713 = vunpack.c.l.b16 %v600
      %v714 = vunpack.c.l.b16 %v601
      %v715 = vunpack.c.l.b16 %v602
      %v716 = vunpack.c.l.b16 %v603
      %v717 = vunpack.c.l.b16 %v604
      %v718 = vunpack.c.l.b16 %v605
      %v719 = vunpack.c.l.b16 %v606
      %v720 = vunpack.c.l.b16 %v607
      %v721 = vunpack.c.l.b16 %v608
      %v722 = vunpack.c.l.b16 %v609
      %v723 = vunpack.c.l.b16 %v610
      %v724 = vunpack.c.l.b16 %v611
      %v725 = vunpack.c.l.b16 %v612
      %v726 = vunpack.c.l.b16 %v613
      %v727 = vunpack.c.l.b16 %v614
      %v728 = vunpack.c.l.b16 %v615
      %v729 = vunpack.c.l.b16 %v616
      %v730 = vunpack.c.l.b16 %v617
      %v731 = vunpack.c.l.b16 %v618
      %v732 = vunpack.c.l.b16 %v619
      %v733 = vunpack.c.l.b16 %v620
      %v734 = vpack.c.b16 %v703, %v702
      %v735 = vpack.c.b16 %v705, %v704
      %v736 = vpack.c.b16 %v707, %v706
      %v737 = vpack.c.b16 %v709, %v708
      %v738 = vpack.c.b16 %v711, %v710
      %v739 = vpack.c.b16 %v713, %v712
      %v740 = vpack.c.b16 %v715, %v714
      %v741 = vpack.c.b16 %v717, %v716
      %v742 = vpack.c.b16 %v719, %v718
      %v743 = vpack.c.b16 %v721, %v720
      %v744 = vpack.c.b16 %v723, %v722
      %v745 = vpack.c.b16 %v725, %v724
      %v746 = vpack.c.b16 %v727, %v726
      %v747 = vpack.c.b16 %v729, %v728
      %v748 = vpack.c.b16 %v731, %v730
      %v749 = vpack.c.b16 %v733, %v732
      %766 = vmatprep.subr.bf16.mxu0 0
      %767 = vmatpush1.bf16.msra.mxu0 %v741
      %768 = vmatprep.subr.bf16.mxu0 0
      %769 = vmatpush1.bf16.msra.mxu0 %v740
      %770 = vmatprep.subr.bf16.mxu0 0
      %771 = vmatpush1.bf16.msra.mxu0 %v739
      %772 = vmatprep.subr.bf16.mxu0 0
      %773 = vmatpush1.bf16.msra.mxu0 %v738
      %774 = vmatprep.subr.bf16.mxu0 0
      %775 = vmatpush1.bf16.msra.mxu0 %v737
      %776 = vmatprep.subr.bf16.mxu0 0
      %777 = vmatpush1.bf16.msra.mxu0 %v736
      %778 = vmatprep.subr.bf16.mxu0 0
      %779 = vmatpush1.bf16.msra.mxu0 %v735
      %780 = vmatprep.subr.bf16.mxu0 0
      %781 = vmatpush1.bf16.msra.mxu0 %v734
      %782 = vmatprep.subr.bf16.mxu0 0
      %783 = vmatpush2.bf16.msra.mxu0 %v749
      %784 = vmatprep.subr.bf16.mxu0 0
      %785 = vmatpush2.bf16.msra.mxu0 %v748
      %786 = vmatprep.subr.bf16.mxu0 0
      %787 = vmatpush2.bf16.msra.mxu0 %v747
      %788 = vmatprep.subr.bf16.mxu0 0
      %789 = vmatpush2.bf16.msra.mxu0 %v746
      %790 = vmatprep.subr.bf16.mxu0 0
      %791 = vmatpush2.bf16.msra.mxu0 %v745
      %792 = vmatprep.subr.bf16.mxu0 0
      %793 = vmatpush2.bf16.msra.mxu0 %v744
      %794 = vmatprep.subr.bf16.mxu0 0
      %795 = vmatpush2.bf16.msra.mxu0 %v743
      %796 = vmatprep.subr.bf16.mxu0 0
      %797 = vmatpush2.bf16.msra.mxu0 %v742
      %798 = vmatprep.mubr.bf16.mxu0 %v665
      %799 = vmatmul.mubr.bf16.gmra.mxu0 %v648
      %v800 = vpop.f32.mrf.mxu0
      %v801 = vadd.f32 0.0, %v800
      %v802 = vpop.f32.mrf.mxu0
      %v803 = vpop.f32.mrf.mxu0
      %v804 = vadd.f32 0.0, %v803
      %v805 = vpop.f32.mrf.mxu0
      %806 = vmatprep.mubr.bf16.mxu0 %v664
      %807 = vmatmul.mubr.bf16.gmra.mxu0 %v647
      %v808 = vpop.f32.mrf.mxu0
      %v809 = vadd.f32 0.0, %v808
      %v810 = vpop.f32.mrf.mxu0
      %v811 = vpop.f32.mrf.mxu0
      %v812 = vadd.f32 0.0, %v811
      %v813 = vpop.f32.mrf.mxu0
      %814 = vdwg.mxu0
      %v815 = vadd.f32 %v572, %v801
      %v816 = vadd.f32 %v575, %v804
      %v817 = vadd.f32 %v580, %v809
      %v818 = vadd.f32 %v583, %v812
      %v819 = vld [vmem:[%s165] sm:$0x88]
      %v820 = vld [vmem:[%s165 + $0x18] sm:$0xff]
      %s821 = scalar_lea.vmem %s1, 384
      %v822 = vld [vmem:[%s821] sm:$0xf]
      %v823 = vld [vmem:[%s821 + $0x4] sm:$0xf]
      %v824 = vld [vmem:[%s821 + $0x8] sm:$0xf]
      %v825 = vld [vmem:[%s821 + $0xc] sm:$0xf]
      %v826 = vld [vmem:[%s821 + $0x10] sm:$0xf]
      %v827 = vld [vmem:[%s821 + $0x14] sm:$0xf]
      %v828 = vld [vmem:[%s821 + $0x18] sm:$0xf]
      %v829 = vld [vmem:[%s821 + $0x1c] sm:$0xf]
      %v830 = vld [vmem:[%s821 + $0x20] sm:$0xf]
      %v831 = vld [vmem:[%s821 + $0x24] sm:$0xf]
      %v832 = vld [vmem:[%s821 + $0x28] sm:$0xf]
      %v833 = vld [vmem:[%s821 + $0x2c] sm:$0xf]
      %v834 = vld [vmem:[%s821 + $0x30] sm:$0xf]
      %v835 = vld [vmem:[%s821 + $0x34] sm:$0xf]
      %v836 = vld [vmem:[%s821 + $0x38] sm:$0xf]
      %v837 = vld [vmem:[%s821 + $0x3c] sm:$0xf]
      %v838 = vld [vmem:[%s821 + $0x40] sm:$0xf]
      %v839 = vld [vmem:[%s821 + $0x44] sm:$0xf]
      %v840 = vld [vmem:[%s821 + $0x48] sm:$0xf]
      %v841 = vld [vmem:[%s821 + $0x4c] sm:$0xf]
      %v842 = vld [vmem:[%s821 + $0x50] sm:$0xf]
      %v843 = vld [vmem:[%s821 + $0x54] sm:$0xf]
      %v844 = vld [vmem:[%s821 + $0x58] sm:$0xf]
      %v845 = vld [vmem:[%s821 + $0x5c] sm:$0xf]
      %v846 = vld [vmem:[%s821 + $0x60] sm:$0xf]
      %v847 = vld [vmem:[%s821 + $0x64] sm:$0xf]
      %v848 = vld [vmem:[%s821 + $0x68] sm:$0xf]
      %v849 = vld [vmem:[%s821 + $0x6c] sm:$0xf]
      %v850 = vld [vmem:[%s821 + $0x70] sm:$0xf]
      %v851 = vld [vmem:[%s821 + $0x74] sm:$0xf]
      %v852 = vld [vmem:[%s821 + $0x78] sm:$0xf]
      %v853 = vld [vmem:[%s821 + $0x7c] sm:$0xf]
      %v856 = vunpack.c.l.b16 %v819
      %v857 = vunpack.c.h.b16 %v819
      %v858 = vunpack.c.l.b16 %v820
      %v859 = vunpack.c.h.b16 %v820
      %v860 = vpack.c.b16 %v247, %v856
      %v861 = vpack.c.b16 %v248, %v857
      %v862 = vpack.c.b16 %v858, %v249
      %v863 = vpack.c.b16 %v859, %v250
      %vm864 = vcmask 1044480
      %v865 = vrot.slane %v860, 3
      %v866 = vrot.slane %v862, 3
      %v867 = vsel %vm864, %v865, %v866
      %v868 = vrot.slane %v861, 3
      %v869 = vrot.slane %v863, 3
      %v870 = vsel %vm864, %v868, %v869
      %v907 = vunpack.c.l.b16 %v822
      %v908 = vunpack.c.l.b16 %v823
      %v909 = vunpack.c.l.b16 %v824
      %v910 = vunpack.c.l.b16 %v825
      %v911 = vunpack.c.l.b16 %v826
      %v912 = vunpack.c.l.b16 %v827
      %v913 = vunpack.c.l.b16 %v828
      %v914 = vunpack.c.l.b16 %v829
      %v915 = vunpack.c.l.b16 %v830
      %v916 = vunpack.c.l.b16 %v831
      %v917 = vunpack.c.l.b16 %v832
      %v918 = vunpack.c.l.b16 %v833
      %v919 = vunpack.c.l.b16 %v834
      %v920 = vunpack.c.l.b16 %v835
      %v921 = vunpack.c.l.b16 %v836
      %v922 = vunpack.c.l.b16 %v837
      %v923 = vunpack.c.l.b16 %v838
      %v924 = vunpack.c.l.b16 %v839
      %v925 = vunpack.c.l.b16 %v840
      %v926 = vunpack.c.l.b16 %v841
      %v927 = vunpack.c.l.b16 %v842
      %v928 = vunpack.c.l.b16 %v843
      %v929 = vunpack.c.l.b16 %v844
      %v930 = vunpack.c.l.b16 %v845
      %v931 = vunpack.c.l.b16 %v846
      %v932 = vunpack.c.l.b16 %v847
      %v933 = vunpack.c.l.b16 %v848
      %v934 = vunpack.c.l.b16 %v849
      %v935 = vunpack.c.l.b16 %v850
      %v936 = vunpack.c.l.b16 %v851
      %v937 = vunpack.c.l.b16 %v852
      %v938 = vunpack.c.l.b16 %v853
      %v939 = vpack.c.b16 %v908, %v907
      %v940 = vpack.c.b16 %v910, %v909
      %v941 = vpack.c.b16 %v912, %v911
      %v942 = vpack.c.b16 %v914, %v913
      %v943 = vpack.c.b16 %v916, %v915
      %v944 = vpack.c.b16 %v918, %v917
      %v945 = vpack.c.b16 %v920, %v919
      %v946 = vpack.c.b16 %v922, %v921
      %v947 = vpack.c.b16 %v924, %v923
      %v948 = vpack.c.b16 %v926, %v925
      %v949 = vpack.c.b16 %v928, %v927
      %v950 = vpack.c.b16 %v930, %v929
      %v951 = vpack.c.b16 %v932, %v931
      %v952 = vpack.c.b16 %v934, %v933
      %v953 = vpack.c.b16 %v936, %v935
      %v954 = vpack.c.b16 %v938, %v937
      %971 = vmatprep.subr.bf16.mxu0 0
      %972 = vmatpush1.bf16.msra.mxu0 %v946
      %973 = vmatprep.subr.bf16.mxu0 0
      %974 = vmatpush1.bf16.msra.mxu0 %v945
      %975 = vmatprep.subr.bf16.mxu0 0
      %976 = vmatpush1.bf16.msra.mxu0 %v944
      %977 = vmatprep.subr.bf16.mxu0 0
      %978 = vmatpush1.bf16.msra.mxu0 %v943
      %979 = vmatprep.subr.bf16.mxu0 0
      %980 = vmatpush1.bf16.msra.mxu0 %v942
      %981 = vmatprep.subr.bf16.mxu0 0
      %982 = vmatpush1.bf16.msra.mxu0 %v941
      %983 = vmatprep.subr.bf16.mxu0 0
      %984 = vmatpush1.bf16.msra.mxu0 %v940
      %985 = vmatprep.subr.bf16.mxu0 0
      %986 = vmatpush1.bf16.msra.mxu0 %v939
      %987 = vmatprep.subr.bf16.mxu0 0
      %988 = vmatpush2.bf16.msra.mxu0 %v954
      %989 = vmatprep.subr.bf16.mxu0 0
      %990 = vmatpush2.bf16.msra.mxu0 %v953
      %991 = vmatprep.subr.bf16.mxu0 0
      %992 = vmatpush2.bf16.msra.mxu0 %v952
      %993 = vmatprep.subr.bf16.mxu0 0
      %994 = vmatpush2.bf16.msra.mxu0 %v951
      %995 = vmatprep.subr.bf16.mxu0 0
      %996 = vmatpush2.bf16.msra.mxu0 %v950
      %997 = vmatprep.subr.bf16.mxu0 0
      %998 = vmatpush2.bf16.msra.mxu0 %v949
      %999 = vmatprep.subr.bf16.mxu0 0
      %1000 = vmatpush2.bf16.msra.mxu0 %v948
      %1001 = vmatprep.subr.bf16.mxu0 0
      %1002 = vmatpush2.bf16.msra.mxu0 %v947
      %1003 = vmatprep.mubr.bf16.mxu0 %v870
      %1004 = vmatmul.mubr.bf16.gmra.mxu0 %v867
      %v1005 = vpop.f32.mrf.mxu0
      %v1006 = vadd.f32 0.0, %v1005
      %v1007 = vpop.f32.mrf.mxu0
      %v1008 = vpop.f32.mrf.mxu0
      %v1009 = vadd.f32 0.0, %v1008
      %v1010 = vpop.f32.mrf.mxu0
      %1011 = vmatprep.mubr.bf16.mxu0 %v869
      %1012 = vmatmul.mubr.bf16.gmra.mxu0 %v866
      %v1013 = vpop.f32.mrf.mxu0
      %v1014 = vadd.f32 0.0, %v1013
      %v1015 = vpop.f32.mrf.mxu0
      %v1016 = vpop.f32.mrf.mxu0
      %v1017 = vadd.f32 0.0, %v1016
      %v1018 = vpop.f32.mrf.mxu0
      %1019 = vdwg.mxu0
      %v1020 = vadd.f32 %v815, %v1006
      %v1021 = vadd.f32 %v816, %v1009
      %v1022 = vadd.f32 %v817, %v1014
      %v1023 = vadd.f32 %v818, %v1017
      %v1024 = vld [vmem:[%s2] sm:$0x1]
      %v1026 = vlaneseq
      %v1027 = vshrl.u32 %v1026, 7
      %v1028 = vsub.s32 0, %v1027
      %v1029 = vrot.slane %v1024, %v1028
      %v1031 = vadd.f32 %v1020, %v1029
      %v1032 = vadd.f32 %v1021, %v1029
      %v1033 = vadd.f32 %v1022, %v1029
      %v1034 = vadd.f32 %v1023, %v1029
      %v1035 = vmax.f32 %v1031, 0.0
      %v1036 = vmax.f32 %v1032, 0.0
      %v1037 = vmax.f32 %v1033, 0.0
      %v1038 = vmax.f32 %v1034, 0.0
      %v1039 = vpack.c.bf16 %v1036, %v1035
      %v1040 = vpack.c.bf16 %v1038, %v1037
      %v1043 = vunpack.c.l.b16 %v1039
      %v1044 = vunpack.c.h.b16 %v1039
      %v1045 = vunpack.c.l.b16 %v1040
      %v1046 = vunpack.c.h.b16 %v1040
      %v1047 = vpack.c.b16 %v1043, %v1043
      %v1048 = vpack.c.b16 %v1044, %v1044
      %v1049 = vpack.c.b16 %v1045, %v1045
      %v1050 = vpack.c.b16 %v1046, %v1046
      %1055 = vst [vmem:[%s170] sm:$0xf] %v1047
      %1056 = vst [vmem:[%s170 + $0x4] sm:$0xf] %v1048
      %1057 = vst [vmem:[%s170 + $0x8] sm:$0xf] %v1049
      %vm1058 = vcmask 1040384
      %vm1059 = vsmask.f32 256
      %vm1060 = vmand %vm1058, %vm1059
      %v1061 = vld [vmem:[%s170 + $0xc] sm:$0x1]
      %v1062 = vsel %vm1060, %v1050, %v1061
      %1063 = vst [vmem:[%s170 + $0xc] sm:$0x1] %v1062
      %p1064 = scmp.lt.s32.totalorder %s14, 1
      %s1065 = scalar_select %p1064, %s14, 1
      %s1066 = smul.addr %s1065, 4
      %s1067 = smul.addr %s1066, 4
      %s1068 = scalar_lea.vmem %s3, %s1067
      // Predicated region
      $region33: #{adversarial_autoencoder_forward.5} parent=31 // pred_check
        %p1069 = pneg %p100
      $region34: #{adversarial_autoencoder_forward.5} parent=31 // pred_check_branch
        %1071 = sbr.rel (%p1069) target = $region36
      $region35: #{adversarial_autoencoder_forward.5} parent=31 // pred_region
        _
      $region36: #{adversarial_autoencoder_forward.5} parent=31 // pred_fallthru
        _
    $region32: #{adversarial_autoencoder_forward.5} parent=5 // pred_fallthru
      _
    %p1072 = scmp.le.s32.totalorder 2, %s9
    // Predicated region
    $region37: #{adversarial_autoencoder_forward.5} parent=5 // pred_check
      %p1073 = pneg %p1072
    $region38: #{adversarial_autoencoder_forward.5} parent=5 // pred_check_branch
      %1075 = sbr.rel (%p1073) target = $region40
    $region39: #{adversarial_autoencoder_forward.5} parent=5 // pred_region
      %s1076 = ssub.s32 %s9, 2
      // Predicated region
      $region41: #{adversarial_autoencoder_forward.5} parent=39 // pred_check
        %p1077 = pneg %p106
      $region42: #{adversarial_autoencoder_forward.5} parent=39 // pred_check_branch
        %1079 = sbr.rel (%p1077) target = $region44
      $region43: #{adversarial_autoencoder_forward.5} parent=39 // pred_region
        %p1080 = scmp.lt.s32.totalorder %s15, 1
        %s1081 = scalar_select %p1080, %s15, 1
        %s1082 = smul.addr %s1081, 4
        %s1083 = smul.addr %s1082, 4
        %s1084 = scalar_lea.vmem %s3, %s1083
      $region44: #{adversarial_autoencoder_forward.5} parent=39 // pred_fallthru
        _
    $region40: #{adversarial_autoencoder_forward.5} parent=5 // pred_fallthru
      _
  $region6: #{adversarial_autoencoder_forward.5} parent=0 // loop_footer
    %s13 = sadd.s32 1, %s9
  $region7: #{adversarial_autoencoder_forward.5} parent=0 // loop_footer_branch
    %8 = sbr.rel target = $region3
  $region8: #{adversarial_autoencoder_forward.5} parent=0 // loop_exit
    _

// kernel: adversarial_autoencoder_forward.6
$region0: #{adversarial_autoencoder_forward.6}
  #allocation0 [shape = 'u32[]', space=smem, size = 0x4, offset = 0x4, fixed_abs, tag = 'smem constant byte address 0x4 - core index']
  #allocation1 [shape = 'u32[144,128]{1,0:T(1,128)}', space=vmem, size = 0x12000, scoped, tag = 'internal scratch']
  %s0 = inlined_call_operand.vmem [shape: bf16[2,43,128], index: 0, kind: input, shape index: {}]
  %s1 = inlined_call_operand.vmem [shape: bf16[4,128,256], index: 1, kind: input, shape index: {}]
  %s2 = inlined_call_operand.vmem [shape: f32[1,256], index: 2, kind: input, shape index: {}]
  %s3 = inlined_call_operand.vmem [shape: bf16[2,36,256], index: 3, kind: output, shape index: {}]
  %s4 = sld [smem:[#allocation0]]
  $region45: #{adversarial_autoencoder_forward.6} parent=0
    _
  %s6 = ssub.s32 1, %s4
  %s7 = scalar_select 0, %s6, %s4
  loop: start=0, step=1, limit=4
  $region2: #{adversarial_autoencoder_forward.6} parent=0 // loop_pre_header
    _
  $region3: #{adversarial_autoencoder_forward.6} parent=0 // loop_header
    %s9 = sphi 0, %s13
    %p10 = scmp.ge.s32.totalorder %s9, 4
    %s19 = sphi 0, %s21
    %s22 = sphi 0, %s19
    %s23 = sphi 0, %s22
    %s39 = sphi 0, %s23
    %s43 = sphi 0, %s43
    %s45 = sphi 0, %s43
    %s46 = sphi 0, %s45
    %s60 = sphi 0, %s46
    %s64 = sphi 0, %s64
    %s66 = sphi 0, %s64
    %s67 = sphi 0, %s66
    %s81 = sphi 0, %s67
    %s87 = sphi 0, %s89
    %s90 = sphi 0, %s87
    %s91 = sphi 0, %s90
    %s107 = sphi 0, %s91
  $region4: #{adversarial_autoencoder_forward.6} parent=0 // loop_header_branch
    %12 = sbr.rel (%p10) target = $region8
  $region5: #{adversarial_autoencoder_forward.6} parent=0 // loop_body
    %s14 = ssub.s32 %s9, 1
    %s15 = ssub.s32 %s9, 2
    %s16 = sadd.s32 %s9, 1
    %s17 = ssub.s32 %s9, %s16
    %p18 = scmp.eq.s32.totalorder %s17, 0
    %s20 = sadd.s32 %s19, 1
    %s21 = scalar_select %p18, %s19, %s20
    %p24 = pneg %p18
    %p25 = scmp.eq.s32.totalorder %s9, 1
    %p26 = por %p24, %p25
    %p27 = scmp.ne.s32.totalorder %s19, %s22
    %p28 = scmp.eq.s32.totalorder %s9, 0
    %p29 = por %p27, %p28
    %p30 = scmp.ne.s32.totalorder %s19, %s22
    %p31 = scmp.eq.s32.totalorder %s14, 1
    %p32 = por %p30, %p31
    %p33 = scmp.ne.s32.totalorder %s22, %s23
    %p34 = scmp.eq.s32.totalorder %s14, 0
    %p35 = por %p33, %p34
    %p36 = scmp.ne.s32.totalorder %s22, %s23
    %p37 = scmp.eq.s32.totalorder %s15, 1
    %p38 = por %p36, %p37
    %p40 = scmp.ne.s32.totalorder %s23, %s39
    %p41 = scmp.eq.s32.totalorder %s15, 0
    %p42 = por %p40, %p41
    %s44 = sadd.s32 %s43, 1
    %p47 = scmp.eq.s32.totalorder %s9, 1
    %p48 = scmp.ne.s32.totalorder %s43, %s45
    %p49 = scmp.eq.s32.totalorder %s9, 0
    %p50 = por %p48, %p49
    %p51 = scmp.ne.s32.totalorder %s43, %s45
    %p52 = scmp.eq.s32.totalorder %s14, 1
    %p53 = por %p51, %p52
    %p54 = scmp.ne.s32.totalorder %s45, %s46
    %p55 = scmp.eq.s32.totalorder %s14, 0
    %p56 = por %p54, %p55
    %p57 = scmp.ne.s32.totalorder %s45, %s46
    %p58 = scmp.eq.s32.totalorder %s15, 1
    %p59 = por %p57, %p58
    %p61 = scmp.ne.s32.totalorder %s46, %s60
    %p62 = scmp.eq.s32.totalorder %s15, 0
    %p63 = por %p61, %p62
    %s65 = sadd.s32 %s64, 1
    %p68 = scmp.eq.s32.totalorder %s9, 1
    %p69 = scmp.ne.s32.totalorder %s64, %s66
    %p70 = scmp.eq.s32.totalorder %s9, 0
    %p71 = por %p69, %p70
    %p72 = scmp.ne.s32.totalorder %s64, %s66
    %p73 = scmp.eq.s32.totalorder %s14, 1
    %p74 = por %p72, %p73
    %p75 = scmp.ne.s32.totalorder %s66, %s67
    %p76 = scmp.eq.s32.totalorder %s14, 0
    %p77 = por %p75, %p76
    %p78 = scmp.ne.s32.totalorder %s66, %s67
    %p79 = scmp.eq.s32.totalorder %s15, 1
    %p80 = por %p78, %p79
    %p82 = scmp.ne.s32.totalorder %s67, %s81
    %p83 = scmp.eq.s32.totalorder %s15, 0
    %p84 = por %p82, %p83
    %s85 = ssub.s32 %s9, %s16
    %p86 = scmp.eq.s32.totalorder %s85, 0
    %s88 = sadd.s32 %s87, 1
    %s89 = scalar_select %p86, %s87, %s88
    %p92 = pneg %p86
    %p93 = scmp.eq.s32.totalorder %s9, 1
    %p94 = por %p92, %p93
    %p95 = scmp.ne.s32.totalorder %s87, %s90
    %p96 = scmp.eq.s32.totalorder %s9, 0
    %p97 = por %p95, %p96
    %p98 = scmp.ne.s32.totalorder %s87, %s90
    %p99 = scmp.eq.s32.totalorder %s14, 1
    %p100 = por %p98, %p99
    %p101 = scmp.ne.s32.totalorder %s90, %s91
    %p102 = scmp.eq.s32.totalorder %s14, 0
    %p103 = por %p101, %p102
    %p104 = scmp.ne.s32.totalorder %s90, %s91
    %p105 = scmp.eq.s32.totalorder %s15, 1
    %p106 = por %p104, %p105
    %p108 = scmp.ne.s32.totalorder %s91, %s107
    %p109 = scmp.eq.s32.totalorder %s15, 0
    %p110 = por %p108, %p109
    %p111 = scmp.le.s32.totalorder 1, %s9
    %p112 = scmp.lt.s32.totalorder %s9, 3
    %p113 = pnand %p111, %p112
    %p114 = pneg %p113
    // Predicated region
    $region9: #{adversarial_autoencoder_forward.6} parent=5 // pred_check
      _
    $region10: #{adversarial_autoencoder_forward.6} parent=5 // pred_check_branch
      %116 = sbr.rel (%p113) target = $region12
    $region11: #{adversarial_autoencoder_forward.6} parent=5 // pred_region
      %s117 = ssub.s32 %s9, 1
      // Predicated region
      $region13: #{adversarial_autoencoder_forward.6} parent=11 // pred_check
        %p118 = pneg %p56
      $region14: #{adversarial_autoencoder_forward.6} parent=11 // pred_check_branch
        %120 = sbr.rel (%p118) target = $region16
      $region15: #{adversarial_autoencoder_forward.6} parent=11 // pred_region
        _
      $region16: #{adversarial_autoencoder_forward.6} parent=11 // pred_fallthru
        _
      // Predicated region
      $region17: #{adversarial_autoencoder_forward.6} parent=11 // pred_check
        %p121 = pneg %p77
      $region18: #{adversarial_autoencoder_forward.6} parent=11 // pred_check_branch
        %123 = sbr.rel (%p121) target = $region20
      $region19: #{adversarial_autoencoder_forward.6} parent=11 // pred_region
        _
      $region20: #{adversarial_autoencoder_forward.6} parent=11 // pred_fallthru
        _
    $region12: #{adversarial_autoencoder_forward.6} parent=5 // pred_fallthru
      _
    %p124 = scmp.lt.s32.totalorder %s9, 2
    // Predicated region
    $region21: #{adversarial_autoencoder_forward.6} parent=5 // pred_check
      %p125 = pneg %p124
    $region22: #{adversarial_autoencoder_forward.6} parent=5 // pred_check_branch
      %127 = sbr.rel (%p125) target = $region24
    $region23: #{adversarial_autoencoder_forward.6} parent=5 // pred_region
      // Predicated region
      $region25: #{adversarial_autoencoder_forward.6} parent=23 // pred_check
        %p128 = pneg %p29
      $region26: #{adversarial_autoencoder_forward.6} parent=23 // pred_check_branch
        %130 = sbr.rel (%p128) target = $region28
      $region27: #{adversarial_autoencoder_forward.6} parent=23 // pred_region
        %p131 = scmp.lt.s32.totalorder %s9, 1
        %s132 = scalar_select %p131, %s9, 1
        %s133 = smul.addr %s132, 6
        %s134 = smul.addr %s133, 4
        %s135 = scalar_lea.vmem %s0, %s134
      $region28: #{adversarial_autoencoder_forward.6} parent=23 // pred_fallthru
        _
    $region24: #{adversarial_autoencoder_forward.6} parent=5 // pred_fallthru
      _
    %p136 = scmp.le.s32.totalorder 1, %s9
    %p137 = scmp.lt.s32.totalorder %s9, 3
    %p138 = pnand %p136, %p137
    %p139 = pneg %p138
    // Predicated region
    $region29: #{adversarial_autoencoder_forward.6} parent=5 // pred_check
      _
    $region30: #{adversarial_autoencoder_forward.6} parent=5 // pred_check_branch
      %141 = sbr.rel (%p138) target = $region32
    $region31: #{adversarial_autoencoder_forward.6} parent=5 // pred_region
      %s142 = ssub.s32 %s9, 1
      %p143 = scmp.lt.s32.totalorder %s14, 1
      %s144 = scalar_select %p143, %s14, 1
      %s145 = smul.addr %s144, 6
      %s146 = smul.addr %s145, 4
      %s147 = scalar_lea.vmem %s0, %s146
      %p148 = pneg %p35
      %p149 = pneg %p32
      %p150 = pneg %p56
      %p151 = pneg %p53
      %p152 = pneg %p77
      %p153 = pneg %p74
      %p154 = pneg %p103
      %p155 = pneg %p100
      %p156 = scmp.lt.s32.totalorder %s14, 1
      %s157 = scalar_select %p156, %s14, 1
      %s158 = smul.addr %s157, 10
      %s159 = smul.addr %s158, 4
      %s160 = scalar_lea.vmem %s3, %s159
      %p161 = scmp.lt.s32.totalorder %s14, 1
      %s162 = scalar_select %p161, %s14, 1
      %s163 = smul.addr %s162, 6
      %s164 = smul.addr %s163, 4
      %s165 = scalar_lea.vmem %s0, %s164
      %p166 = scmp.lt.s32.totalorder %s14, 1
      %s167 = scalar_select %p166, %s14, 1
      %s168 = smul.addr %s167, 10
      %s169 = smul.addr %s168, 4
      %s170 = scalar_lea.vmem %s3, %s169
      %v172 = vld [vmem:[%s165] sm:$0xf]
      %v173 = vld [vmem:[%s165 + $0x4] sm:$0xf]
      %v174 = vld [vmem:[%s165 + $0x8] sm:$0xf]
      %v175 = vld [vmem:[%s165 + $0xc] sm:$0xf]
      %v176 = vld [vmem:[%s165 + $0x10] sm:$0x3]
      %v177 = vld [vmem:[%s1] sm:$0xff]
      %v178 = vld [vmem:[%s1 + $0x8] sm:$0xff]
      %v179 = vld [vmem:[%s1 + $0x10] sm:$0xff]
      %v180 = vld [vmem:[%s1 + $0x18] sm:$0xff]
      %v181 = vld [vmem:[%s1 + $0x20] sm:$0xff]
      %v182 = vld [vmem:[%s1 + $0x28] sm:$0xff]
      %v183 = vld [vmem:[%s1 + $0x30] sm:$0xff]
      %v184 = vld [vmem:[%s1 + $0x38] sm:$0xff]
      %v185 = vld [vmem:[%s1 + $0x40] sm:$0xff]
      %v186 = vld [vmem:[%s1 + $0x48] sm:$0xff]
      %v187 = vld [vmem:[%s1 + $0x50] sm:$0xff]
      %v188 = vld [vmem:[%s1 + $0x58] sm:$0xff]
      %v189 = vld [vmem:[%s1 + $0x60] sm:$0xff]
      %v190 = vld [vmem:[%s1 + $0x68] sm:$0xff]
      %v191 = vld [vmem:[%s1 + $0x70] sm:$0xff]
      %v192 = vld [vmem:[%s1 + $0x78] sm:$0xff]
      %v193 = vld [vmem:[%s165 + $0x10] sm:$0x7]
      %s194 = scalar_lea.vmem %s1, 128
      %v195 = vld [vmem:[%s194] sm:$0xff]
      %v196 = vld [vmem:[%s194 + $0x8] sm:$0xff]
      %v197 = vld [vmem:[%s194 + $0x10] sm:$0xff]
      %v198 = vld [vmem:[%s194 + $0x18] sm:$0xff]
      %v199 = vld [vmem:[%s194 + $0x20] sm:$0xff]
      %v200 = vld [vmem:[%s194 + $0x28] sm:$0xff]
      %v201 = vld [vmem:[%s194 + $0x30] sm:$0xff]
      %v202 = vld [vmem:[%s194 + $0x38] sm:$0xff]
      %v203 = vld [vmem:[%s194 + $0x40] sm:$0xff]
      %v204 = vld [vmem:[%s194 + $0x48] sm:$0xff]
      %v205 = vld [vmem:[%s194 + $0x50] sm:$0xff]
      %v206 = vld [vmem:[%s194 + $0x58] sm:$0xff]
      %v207 = vld [vmem:[%s194 + $0x60] sm:$0xff]
      %v208 = vld [vmem:[%s194 + $0x68] sm:$0xff]
      %v209 = vld [vmem:[%s194 + $0x70] sm:$0xff]
      %v210 = vld [vmem:[%s194 + $0x78] sm:$0xff]
      %v216 = vunpack.c.l.b16 %v172
      %v217 = vunpack.c.l.b16 %v173
      %v218 = vunpack.c.l.b16 %v174
      %v219 = vunpack.c.l.b16 %v175
      %v220 = vunpack.c.l.b16 %v193
      %v221 = vpack.c.b16 %v217, %v216
      %v222 = vpack.c.b16 %v219, %v218
      %v223 = vpack.c.b16 %v220, %v220
      %vm224 = vsmask.f32 7424
      %v226 = vshrl.u32 %v221, 16
      %v228 = vshll.u32 %v221, 16
      %v230 = vrot.slane %v228, 1
      %v231 = vor.u32 %v226, %v230
      %v233 = vshll.u32 %v222, 16
      %v235 = vrot.slane %v233, 1
      %v236 = vsel %vm224, %v231, %v235
      %v237 = vshrl.u32 %v222, 16
      %v239 = vor.u32 %v237, %v235
      %v241 = vshll.u32 %v223, 16
      %v243 = vrot.slane %v241, 1
      %v244 = vsel %vm224, %v239, %v243
      %v245 = vshrl.u32 %v223, 16
      %v247 = vor.u32 %v245, %v243
      %v267 = vunpack.c.l.b16 %v195
      %v268 = vunpack.c.h.b16 %v195
      %v269 = vunpack.c.l.b16 %v196
      %v270 = vunpack.c.h.b16 %v196
      %v271 = vunpack.c.l.b16 %v197
      %v272 = vunpack.c.h.b16 %v197
      %v273 = vunpack.c.l.b16 %v198
      %v274 = vunpack.c.h.b16 %v198
      %v275 = vunpack.c.l.b16 %v199
      %v276 = vunpack.c.h.b16 %v199
      %v277 = vunpack.c.l.b16 %v200
      %v278 = vunpack.c.h.b16 %v200
      %v279 = vunpack.c.l.b16 %v201
      %v280 = vunpack.c.h.b16 %v201
      %v281 = vunpack.c.l.b16 %v202
      %v282 = vunpack.c.h.b16 %v202
      %v283 = vunpack.c.l.b16 %v203
      %v284 = vunpack.c.h.b16 %v203
      %v285 = vunpack.c.l.b16 %v204
      %v286 = vunpack.c.h.b16 %v204
      %v287 = vunpack.c.l.b16 %v205
      %v288 = vunpack.c.h.b16 %v205
      %v289 = vunpack.c.l.b16 %v206
      %v290 = vunpack.c.h.b16 %v206
      %v291 = vunpack.c.l.b16 %v207
      %v292 = vunpack.c.h.b16 %v207
      %v293 = vunpack.c.l.b16 %v208
      %v294 = vunpack.c.h.b16 %v208
      %v295 = vunpack.c.l.b16 %v209
      %v296 = vunpack.c.h.b16 %v209
      %v297 = vunpack.c.l.b16 %v210
      %v298 = vunpack.c.h.b16 %v210
      %v299 = vpack.c.b16 %v269, %v267
      %v300 = vpack.c.b16 %v270, %v268
      %v301 = vpack.c.b16 %v273, %v271
      %v302 = vpack.c.b16 %v274, %v272
      %v303 = vpack.c.b16 %v277, %v275
      %v304 = vpack.c.b16 %v278, %v276
      %v305 = vpack.c.b16 %v281, %v279
      %v306 = vpack.c.b16 %v282, %v280
      %v307 = vpack.c.b16 %v285, %v283
      %v308 = vpack.c.b16 %v286, %v284
      %v309 = vpack.c.b16 %v289, %v287
      %v310 = vpack.c.b16 %v290, %v288
      %v311 = vpack.c.b16 %v293, %v291
      %v312 = vpack.c.b16 %v294, %v292
      %v313 = vpack.c.b16 %v297, %v295
      %v314 = vpack.c.b16 %v298, %v296
      %331 = vmatprep.subr.bf16.mxu0 %v314
      %332 = vmatpush1.bf16.msra.mxu0 %v313
      %333 = vmatprep.subr.bf16.mxu0 %v312
      %334 = vmatpush1.bf16.msra.mxu0 %v311
      %335 = vmatprep.subr.bf16.mxu0 %v310
      %336 = vmatpush1.bf16.msra.mxu0 %v309
      %337 = vmatprep.subr.bf16.mxu0 %v308
      %338 = vmatpush1.bf16.msra.mxu0 %v307
      %339 = vmatprep.subr.bf16.mxu0 %v306
      %340 = vmatpush1.bf16.msra.mxu0 %v305
      %341 = vmatprep.subr.bf16.mxu0 %v304
      %342 = vmatpush1.bf16.msra.mxu0 %v303
      %343 = vmatprep.subr.bf16.mxu0 %v302
      %344 = vmatpush1.bf16.msra.mxu0 %v301
      %345 = vmatprep.subr.bf16.mxu0 %v300
      %346 = vmatpush1.bf16.msra.mxu0 %v299
      %347 = vmatprep.subr.bf16.mxu0 0
      %348 = vmatpush2.bf16.msra.mxu0 0
      %349 = vmatprep.subr.bf16.mxu0 0
      %350 = vmatpush2.bf16.msra.mxu0 0
      %351 = vmatprep.subr.bf16.mxu0 0
      %352 = vmatpush2.bf16.msra.mxu0 0
      %353 = vmatprep.subr.bf16.mxu0 0
      %354 = vmatpush2.bf16.msra.mxu0 0
      %355 = vmatprep.subr.bf16.mxu0 0
      %356 = vmatpush2.bf16.msra.mxu0 0
      %357 = vmatprep.subr.bf16.mxu0 0
      %358 = vmatpush2.bf16.msra.mxu0 0
      %359 = vmatprep.subr.bf16.mxu0 0
      %360 = vmatpush2.bf16.msra.mxu0 0
      %361 = vmatprep.subr.bf16.mxu0 0
      %362 = vmatpush2.bf16.msra.mxu0 0
      %363 = vmatprep.mubr.bf16.mxu0 0
      %364 = vmatmul.mubr.bf16.gmra.mxu0 %v236
      %v365 = vpop.f32.mrf.mxu0
      %v366 = vadd.f32 0.0, %v365
      %v367 = vpop.f32.mrf.mxu0
      %v368 = vadd.f32 0.0, %v367
      %v369 = vpop.f32.mrf.mxu0
      %v370 = vadd.f32 0.0, %v369
      %v371 = vpop.f32.mrf.mxu0
      %v372 = vadd.f32 0.0, %v371
      %373 = vmatprep.mubr.bf16.mxu0 0
      %374 = vmatmul.mubr.bf16.gmra.mxu0 %v244
      %v375 = vpop.f32.mrf.mxu0
      %v376 = vadd.f32 0.0, %v375
      %v377 = vpop.f32.mrf.mxu0
      %v378 = vadd.f32 0.0, %v377
      %v379 = vpop.f32.mrf.mxu0
      %v380 = vadd.f32 0.0, %v379
      %v381 = vpop.f32.mrf.mxu0
      %v382 = vadd.f32 0.0, %v381
      %383 = vmatprep.mubr.bf16.mxu0 0
      %384 = vmatmul.mubr.bf16.gmra.mxu0 %v247
      %v385 = vpop.f32.mrf.mxu0
      %v386 = vadd.f32 0.0, %v385
      %v387 = vpop.f32.mrf.mxu0
      %v388 = vadd.f32 0.0, %v387
      %v389 = vpop.f32.mrf.mxu0
      %v390 = vpop.f32.mrf.mxu0
      %391 = vdwg.mxu0
      %v393 = vunpack.c.l.b16 %v176
      %v394 = vpack.c.b16 %v393, %v393
      %v414 = vunpack.c.l.b16 %v177
      %v415 = vunpack.c.h.b16 %v177
      %v416 = vunpack.c.l.b16 %v178
      %v417 = vunpack.c.h.b16 %v178
      %v418 = vunpack.c.l.b16 %v179
      %v419 = vunpack.c.h.b16 %v179
      %v420 = vunpack.c.l.b16 %v180
      %v421 = vunpack.c.h.b16 %v180
      %v422 = vunpack.c.l.b16 %v181
      %v423 = vunpack.c.h.b16 %v181
      %v424 = vunpack.c.l.b16 %v182
      %v425 = vunpack.c.h.b16 %v182
      %v426 = vunpack.c.l.b16 %v183
      %v427 = vunpack.c.h.b16 %v183
      %v428 = vunpack.c.l.b16 %v184
      %v429 = vunpack.c.h.b16 %v184
      %v430 = vunpack.c.l.b16 %v185
      %v431 = vunpack.c.h.b16 %v185
      %v432 = vunpack.c.l.b16 %v186
      %v433 = vunpack.c.h.b16 %v186
      %v434 = vunpack.c.l.b16 %v187
      %v435 = vunpack.c.h.b16 %v187
      %v436 = vunpack.c.l.b16 %v188
      %v437 = vunpack.c.h.b16 %v188
      %v438 = vunpack.c.l.b16 %v189
      %v439 = vunpack.c.h.b16 %v189
      %v440 = vunpack.c.l.b16 %v190
      %v441 = vunpack.c.h.b16 %v190
      %v442 = vunpack.c.l.b16 %v191
      %v443 = vunpack.c.h.b16 %v191
      %v444 = vunpack.c.l.b16 %v192
      %v445 = vunpack.c.h.b16 %v192
      %v446 = vpack.c.b16 %v416, %v414
      %v447 = vpack.c.b16 %v417, %v415
      %v448 = vpack.c.b16 %v420, %v418
      %v449 = vpack.c.b16 %v421, %v419
      %v450 = vpack.c.b16 %v424, %v422
      %v451 = vpack.c.b16 %v425, %v423
      %v452 = vpack.c.b16 %v428, %v426
      %v453 = vpack.c.b16 %v429, %v427
      %v454 = vpack.c.b16 %v432, %v430
      %v455 = vpack.c.b16 %v433, %v431
      %v456 = vpack.c.b16 %v436, %v434
      %v457 = vpack.c.b16 %v437, %v435
      %v458 = vpack.c.b16 %v440, %v438
      %v459 = vpack.c.b16 %v441, %v439
      %v460 = vpack.c.b16 %v444, %v442
      %v461 = vpack.c.b16 %v445, %v443
      %478 = vmatprep.subr.bf16.mxu0 %v461
      %479 = vmatpush1.bf16.msra.mxu0 %v460
      %480 = vmatprep.subr.bf16.mxu0 %v459
      %481 = vmatpush1.bf16.msra.mxu0 %v458
      %482 = vmatprep.subr.bf16.mxu0 %v457
      %483 = vmatpush1.bf16.msra.mxu0 %v456
      %484 = vmatprep.subr.bf16.mxu0 %v455
      %485 = vmatpush1.bf16.msra.mxu0 %v454
      %486 = vmatprep.subr.bf16.mxu0 %v453
      %487 = vmatpush1.bf16.msra.mxu0 %v452
      %488 = vmatprep.subr.bf16.mxu0 %v451
      %489 = vmatpush1.bf16.msra.mxu0 %v450
      %490 = vmatprep.subr.bf16.mxu0 %v449
      %491 = vmatpush1.bf16.msra.mxu0 %v448
      %492 = vmatprep.subr.bf16.mxu0 %v447
      %493 = vmatpush1.bf16.msra.mxu0 %v446
      %494 = vmatprep.subr.bf16.mxu0 0
      %495 = vmatpush2.bf16.msra.mxu0 0
      %496 = vmatprep.subr.bf16.mxu0 0
      %497 = vmatpush2.bf16.msra.mxu0 0
      %498 = vmatprep.subr.bf16.mxu0 0
      %499 = vmatpush2.bf16.msra.mxu0 0
      %500 = vmatprep.subr.bf16.mxu0 0
      %501 = vmatpush2.bf16.msra.mxu0 0
      %502 = vmatprep.subr.bf16.mxu0 0
      %503 = vmatpush2.bf16.msra.mxu0 0
      %504 = vmatprep.subr.bf16.mxu0 0
      %505 = vmatpush2.bf16.msra.mxu0 0
      %506 = vmatprep.subr.bf16.mxu0 0
      %507 = vmatpush2.bf16.msra.mxu0 0
      %508 = vmatprep.subr.bf16.mxu0 0
      %509 = vmatpush2.bf16.msra.mxu0 0
      %510 = vmatprep.mubr.bf16.mxu0 0
      %511 = vmatmul.mubr.bf16.gmra.mxu0 %v221
      %v512 = vpop.f32.mrf.mxu0
      %v513 = vadd.f32 %v366, %v512
      %v514 = vpop.f32.mrf.mxu0
      %v515 = vadd.f32 %v368, %v514
      %v516 = vpop.f32.mrf.mxu0
      %v517 = vadd.f32 %v370, %v516
      %v518 = vpop.f32.mrf.mxu0
      %v519 = vadd.f32 %v372, %v518
      %520 = vmatprep.mubr.bf16.mxu0 0
      %521 = vmatmul.mubr.bf16.gmra.mxu0 %v222
      %v522 = vpop.f32.mrf.mxu0
      %v523 = vadd.f32 %v376, %v522
      %v524 = vpop.f32.mrf.mxu0
      %v525 = vadd.f32 %v378, %v524
      %v526 = vpop.f32.mrf.mxu0
      %v527 = vadd.f32 %v380, %v526
      %v528 = vpop.f32.mrf.mxu0
      %v529 = vadd.f32 %v382, %v528
      %530 = vmatprep.mubr.bf16.mxu0 0
      %531 = vmatmul.mubr.bf16.gmra.mxu0 %v394
      %v532 = vpop.f32.mrf.mxu0
      %v533 = vadd.f32 %v386, %v532
      %v534 = vpop.f32.mrf.mxu0
      %v535 = vadd.f32 %v388, %v534
      %v536 = vpop.f32.mrf.mxu0
      %v537 = vpop.f32.mrf.mxu0
      %538 = vdwg.mxu0
      %v539 = vld [vmem:[%s165] sm:$0x8]
      %v540 = vld [vmem:[%s165 + $0x4] sm:$0xf]
      %v541 = vld [vmem:[%s165 + $0x8] sm:$0xf]
      %v542 = vld [vmem:[%s165 + $0xc] sm:$0xf]
      %v543 = vld [vmem:[%s165 + $0x10] sm:$0xf]
      %v544 = vld [vmem:[%s165 + $0x14] sm:$0x1]
      %s545 = scalar_lea.vmem %s1, 256
      %v546 = vld [vmem:[%s545] sm:$0xff]
      %v547 = vld [vmem:[%s545 + $0x8] sm:$0xff]
      %v548 = vld [vmem:[%s545 + $0x10] sm:$0xff]
      %v549 = vld [vmem:[%s545 + $0x18] sm:$0xff]
      %v550 = vld [vmem:[%s545 + $0x20] sm:$0xff]
      %v551 = vld [vmem:[%s545 + $0x28] sm:$0xff]
      %v552 = vld [vmem:[%s545 + $0x30] sm:$0xff]
      %v553 = vld [vmem:[%s545 + $0x38] sm:$0xff]
      %v554 = vld [vmem:[%s545 + $0x40] sm:$0xff]
      %v555 = vld [vmem:[%s545 + $0x48] sm:$0xff]
      %v556 = vld [vmem:[%s545 + $0x50] sm:$0xff]
      %v557 = vld [vmem:[%s545 + $0x58] sm:$0xff]
      %v558 = vld [vmem:[%s545 + $0x60] sm:$0xff]
      %v559 = vld [vmem:[%s545 + $0x68] sm:$0xff]
      %v560 = vld [vmem:[%s545 + $0x70] sm:$0xff]
      %v561 = vld [vmem:[%s545 + $0x78] sm:$0xff]
      %v568 = vunpack.c.l.b16 %v539
      %v569 = vunpack.c.l.b16 %v540
      %v570 = vunpack.c.l.b16 %v541
      %v571 = vunpack.c.l.b16 %v542
      %v572 = vunpack.c.l.b16 %v543
      %v573 = vunpack.c.l.b16 %v544
      %v574 = vpack.c.b16 %v569, %v568
      %v575 = vpack.c.b16 %v571, %v570
      %v576 = vpack.c.b16 %v573, %v572
      %vm577 = vcmask 1044480
      %v578 = vrot.slane %v574, 3
      %v579 = vrot.slane %v575, 3
      %v580 = vsel %vm577, %v578, %v579
      %v581 = vrot.slane %v576, 3
      %v582 = vsel %vm577, %v579, %v581
      %v602 = vunpack.c.l.b16 %v546
      %v603 = vunpack.c.h.b16 %v546
      %v604 = vunpack.c.l.b16 %v547
      %v605 = vunpack.c.h.b16 %v547
      %v606 = vunpack.c.l.b16 %v548
      %v607 = vunpack.c.h.b16 %v548
      %v608 = vunpack.c.l.b16 %v549
      %v609 = vunpack.c.h.b16 %v549
      %v610 = vunpack.c.l.b16 %v550
      %v611 = vunpack.c.h.b16 %v550
      %v612 = vunpack.c.l.b16 %v551
      %v613 = vunpack.c.h.b16 %v551
      %v614 = vunpack.c.l.b16 %v552
      %v615 = vunpack.c.h.b16 %v552
      %v616 = vunpack.c.l.b16 %v553
      %v617 = vunpack.c.h.b16 %v553
      %v618 = vunpack.c.l.b16 %v554
      %v619 = vunpack.c.h.b16 %v554
      %v620 = vunpack.c.l.b16 %v555
      %v621 = vunpack.c.h.b16 %v555
      %v622 = vunpack.c.l.b16 %v556
      %v623 = vunpack.c.h.b16 %v556
      %v624 = vunpack.c.l.b16 %v557
      %v625 = vunpack.c.h.b16 %v557
      %v626 = vunpack.c.l.b16 %v558
      %v627 = vunpack.c.h.b16 %v558
      %v628 = vunpack.c.l.b16 %v559
      %v629 = vunpack.c.h.b16 %v559
      %v630 = vunpack.c.l.b16 %v560
      %v631 = vunpack.c.h.b16 %v560
      %v632 = vunpack.c.l.b16 %v561
      %v633 = vunpack.c.h.b16 %v561
      %v634 = vpack.c.b16 %v604, %v602
      %v635 = vpack.c.b16 %v605, %v603
      %v636 = vpack.c.b16 %v608, %v606
      %v637 = vpack.c.b16 %v609, %v607
      %v638 = vpack.c.b16 %v612, %v610
      %v639 = vpack.c.b16 %v613, %v611
      %v640 = vpack.c.b16 %v616, %v614
      %v641 = vpack.c.b16 %v617, %v615
      %v642 = vpack.c.b16 %v620, %v618
      %v643 = vpack.c.b16 %v621, %v619
      %v644 = vpack.c.b16 %v624, %v622
      %v645 = vpack.c.b16 %v625, %v623
      %v646 = vpack.c.b16 %v628, %v626
      %v647 = vpack.c.b16 %v629, %v627
      %v648 = vpack.c.b16 %v632, %v630
      %v649 = vpack.c.b16 %v633, %v631
      %666 = vmatprep.subr.bf16.mxu0 %v649
      %667 = vmatpush1.bf16.msra.mxu0 %v648
      %668 = vmatprep.subr.bf16.mxu0 %v647
      %669 = vmatpush1.bf16.msra.mxu0 %v646
      %670 = vmatprep.subr.bf16.mxu0 %v645
      %671 = vmatpush1.bf16.msra.mxu0 %v644
      %672 = vmatprep.subr.bf16.mxu0 %v643
      %673 = vmatpush1.bf16.msra.mxu0 %v642
      %674 = vmatprep.subr.bf16.mxu0 %v641
      %675 = vmatpush1.bf16.msra.mxu0 %v640
      %676 = vmatprep.subr.bf16.mxu0 %v639
      %677 = vmatpush1.bf16.msra.mxu0 %v638
      %678 = vmatprep.subr.bf16.mxu0 %v637
      %679 = vmatpush1.bf16.msra.mxu0 %v636
      %680 = vmatprep.subr.bf16.mxu0 %v635
      %681 = vmatpush1.bf16.msra.mxu0 %v634
      %682 = vmatprep.subr.bf16.mxu0 0
      %683 = vmatpush2.bf16.msra.mxu0 0
      %684 = vmatprep.subr.bf16.mxu0 0
      %685 = vmatpush2.bf16.msra.mxu0 0
      %686 = vmatprep.subr.bf16.mxu0 0
      %687 = vmatpush2.bf16.msra.mxu0 0
      %688 = vmatprep.subr.bf16.mxu0 0
      %689 = vmatpush2.bf16.msra.mxu0 0
      %690 = vmatprep.subr.bf16.mxu0 0
      %691 = vmatpush2.bf16.msra.mxu0 0
      %692 = vmatprep.subr.bf16.mxu0 0
      %693 = vmatpush2.bf16.msra.mxu0 0
      %694 = vmatprep.subr.bf16.mxu0 0
      %695 = vmatpush2.bf16.msra.mxu0 0
      %696 = vmatprep.subr.bf16.mxu0 0
      %697 = vmatpush2.bf16.msra.mxu0 0
      %698 = vmatprep.mubr.bf16.mxu0 0
      %699 = vmatmul.mubr.bf16.gmra.mxu0 %v580
      %v700 = vpop.f32.mrf.mxu0
      %v701 = vadd.f32 0.0, %v700
      %v702 = vpop.f32.mrf.mxu0
      %v703 = vadd.f32 0.0, %v702
      %v704 = vpop.f32.mrf.mxu0
      %v705 = vadd.f32 0.0, %v704
      %v706 = vpop.f32.mrf.mxu0
      %v707 = vadd.f32 0.0, %v706
      %708 = vmatprep.mubr.bf16.mxu0 0
      %709 = vmatmul.mubr.bf16.gmra.mxu0 %v582
      %v710 = vpop.f32.mrf.mxu0
      %v711 = vadd.f32 0.0, %v710
      %v712 = vpop.f32.mrf.mxu0
      %v713 = vadd.f32 0.0, %v712
      %v714 = vpop.f32.mrf.mxu0
      %v715 = vadd.f32 0.0, %v714
      %v716 = vpop.f32.mrf.mxu0
      %v717 = vadd.f32 0.0, %v716
      %718 = vmatprep.mubr.bf16.mxu0 0
      %719 = vmatmul.mubr.bf16.gmra.mxu0 %v581
      %v720 = vpop.f32.mrf.mxu0
      %v721 = vadd.f32 0.0, %v720
      %v722 = vpop.f32.mrf.mxu0
      %v723 = vadd.f32 0.0, %v722
      %v724 = vpop.f32.mrf.mxu0
      %v725 = vpop.f32.mrf.mxu0
      %726 = vdwg.mxu0
      %v727 = vadd.f32 %v513, %v701
      %v728 = vadd.f32 %v515, %v703
      %v729 = vadd.f32 %v517, %v705
      %v730 = vadd.f32 %v519, %v707
      %v731 = vadd.f32 %v523, %v711
      %v732 = vadd.f32 %v525, %v713
      %v733 = vadd.f32 %v527, %v715
      %v734 = vadd.f32 %v529, %v717
      %v735 = vadd.f32 %v533, %v721
      %v736 = vadd.f32 %v535, %v723
      %v737 = vld [vmem:[%s165 + $0x14] sm:$0x3]
      %s738 = scalar_lea.vmem %s1, 384
      %v739 = vld [vmem:[%s738] sm:$0xff]
      %v740 = vld [vmem:[%s738 + $0x8] sm:$0xff]
      %v741 = vld [vmem:[%s738 + $0x10] sm:$0xff]
      %v742 = vld [vmem:[%s738 + $0x18] sm:$0xff]
      %v743 = vld [vmem:[%s738 + $0x20] sm:$0xff]
      %v744 = vld [vmem:[%s738 + $0x28] sm:$0xff]
      %v745 = vld [vmem:[%s738 + $0x30] sm:$0xff]
      %v746 = vld [vmem:[%s738 + $0x38] sm:$0xff]
      %v747 = vld [vmem:[%s738 + $0x40] sm:$0xff]
      %v748 = vld [vmem:[%s738 + $0x48] sm:$0xff]
      %v749 = vld [vmem:[%s738 + $0x50] sm:$0xff]
      %v750 = vld [vmem:[%s738 + $0x58] sm:$0xff]
      %v751 = vld [vmem:[%s738 + $0x60] sm:$0xff]
      %v752 = vld [vmem:[%s738 + $0x68] sm:$0xff]
      %v753 = vld [vmem:[%s738 + $0x70] sm:$0xff]
      %v754 = vld [vmem:[%s738 + $0x78] sm:$0xff]
      %v756 = vunpack.c.l.b16 %v737
      %v757 = vpack.c.b16 %v756, %v572
      %vm758 = vsmask.f32 4352
      %v760 = vshrl.u32 %v574, 16
      %v762 = vrot.slane %v760, 3
      %v763 = vshll.u32 %v574, 16
      %v765 = vrot.slane %v763, 4
      %v766 = vor.u32 %v762, %v765
      %v768 = vshrl.u32 %v575, 16
      %v770 = vrot.slane %v768, 3
      %v771 = vshll.u32 %v575, 16
      %v773 = vrot.slane %v771, 4
      %v774 = vor.u32 %v770, %v773
      %v775 = vsel %vm758, %v766, %v774
      %v777 = vshrl.u32 %v757, 16
      %v779 = vrot.slane %v777, 3
      %v780 = vshll.u32 %v757, 16
      %v782 = vrot.slane %v780, 4
      %v783 = vor.u32 %v779, %v782
      %v784 = vsel %vm758, %v774, %v783
      %v804 = vunpack.c.l.b16 %v739
      %v805 = vunpack.c.h.b16 %v739
      %v806 = vunpack.c.l.b16 %v740
      %v807 = vunpack.c.h.b16 %v740
      %v808 = vunpack.c.l.b16 %v741
      %v809 = vunpack.c.h.b16 %v741
      %v810 = vunpack.c.l.b16 %v742
      %v811 = vunpack.c.h.b16 %v742
      %v812 = vunpack.c.l.b16 %v743
      %v813 = vunpack.c.h.b16 %v743
      %v814 = vunpack.c.l.b16 %v744
      %v815 = vunpack.c.h.b16 %v744
      %v816 = vunpack.c.l.b16 %v745
      %v817 = vunpack.c.h.b16 %v745
      %v818 = vunpack.c.l.b16 %v746
      %v819 = vunpack.c.h.b16 %v746
      %v820 = vunpack.c.l.b16 %v747
      %v821 = vunpack.c.h.b16 %v747
      %v822 = vunpack.c.l.b16 %v748
      %v823 = vunpack.c.h.b16 %v748
      %v824 = vunpack.c.l.b16 %v749
      %v825 = vunpack.c.h.b16 %v749
      %v826 = vunpack.c.l.b16 %v750
      %v827 = vunpack.c.h.b16 %v750
      %v828 = vunpack.c.l.b16 %v751
      %v829 = vunpack.c.h.b16 %v751
      %v830 = vunpack.c.l.b16 %v752
      %v831 = vunpack.c.h.b16 %v752
      %v832 = vunpack.c.l.b16 %v753
      %v833 = vunpack.c.h.b16 %v753
      %v834 = vunpack.c.l.b16 %v754
      %v835 = vunpack.c.h.b16 %v754
      %v836 = vpack.c.b16 %v806, %v804
      %v837 = vpack.c.b16 %v807, %v805
      %v838 = vpack.c.b16 %v810, %v808
      %v839 = vpack.c.b16 %v811, %v809
      %v840 = vpack.c.b16 %v814, %v812
      %v841 = vpack.c.b16 %v815, %v813
      %v842 = vpack.c.b16 %v818, %v816
      %v843 = vpack.c.b16 %v819, %v817
      %v844 = vpack.c.b16 %v822, %v820
      %v845 = vpack.c.b16 %v823, %v821
      %v846 = vpack.c.b16 %v826, %v824
      %v847 = vpack.c.b16 %v827, %v825
      %v848 = vpack.c.b16 %v830, %v828
      %v849 = vpack.c.b16 %v831, %v829
      %v850 = vpack.c.b16 %v834, %v832
      %v851 = vpack.c.b16 %v835, %v833
      %868 = vmatprep.subr.bf16.mxu0 %v851
      %869 = vmatpush1.bf16.msra.mxu0 %v850
      %870 = vmatprep.subr.bf16.mxu0 %v849
      %871 = vmatpush1.bf16.msra.mxu0 %v848
      %872 = vmatprep.subr.bf16.mxu0 %v847
      %873 = vmatpush1.bf16.msra.mxu0 %v846
      %874 = vmatprep.subr.bf16.mxu0 %v845
      %875 = vmatpush1.bf16.msra.mxu0 %v844
      %876 = vmatprep.subr.bf16.mxu0 %v843
      %877 = vmatpush1.bf16.msra.mxu0 %v842
      %878 = vmatprep.subr.bf16.mxu0 %v841
      %879 = vmatpush1.bf16.msra.mxu0 %v840
      %880 = vmatprep.subr.bf16.mxu0 %v839
      %881 = vmatpush1.bf16.msra.mxu0 %v838
      %882 = vmatprep.subr.bf16.mxu0 %v837
      %883 = vmatpush1.bf16.msra.mxu0 %v836
      %884 = vmatprep.subr.bf16.mxu0 0
      %885 = vmatpush2.bf16.msra.mxu0 0
      %886 = vmatprep.subr.bf16.mxu0 0
      %887 = vmatpush2.bf16.msra.mxu0 0
      %888 = vmatprep.subr.bf16.mxu0 0
      %889 = vmatpush2.bf16.msra.mxu0 0
      %890 = vmatprep.subr.bf16.mxu0 0
      %891 = vmatpush2.bf16.msra.mxu0 0
      %892 = vmatprep.subr.bf16.mxu0 0
      %893 = vmatpush2.bf16.msra.mxu0 0
      %894 = vmatprep.subr.bf16.mxu0 0
      %895 = vmatpush2.bf16.msra.mxu0 0
      %896 = vmatprep.subr.bf16.mxu0 0
      %897 = vmatpush2.bf16.msra.mxu0 0
      %898 = vmatprep.subr.bf16.mxu0 0
      %899 = vmatpush2.bf16.msra.mxu0 0
      %900 = vmatprep.mubr.bf16.mxu0 0
      %901 = vmatmul.mubr.bf16.gmra.mxu0 %v775
      %v902 = vpop.f32.mrf.mxu0
      %v903 = vadd.f32 0.0, %v902
      %v904 = vpop.f32.mrf.mxu0
      %v905 = vadd.f32 0.0, %v904
      %v906 = vpop.f32.mrf.mxu0
      %v907 = vadd.f32 0.0, %v906
      %v908 = vpop.f32.mrf.mxu0
      %v909 = vadd.f32 0.0, %v908
      %910 = vmatprep.mubr.bf16.mxu0 0
      %911 = vmatmul.mubr.bf16.gmra.mxu0 %v784
      %v912 = vpop.f32.mrf.mxu0
      %v913 = vadd.f32 0.0, %v912
      %v914 = vpop.f32.mrf.mxu0
      %v915 = vadd.f32 0.0, %v914
      %v916 = vpop.f32.mrf.mxu0
      %v917 = vadd.f32 0.0, %v916
      %v918 = vpop.f32.mrf.mxu0
      %v919 = vadd.f32 0.0, %v918
      %920 = vmatprep.mubr.bf16.mxu0 0
      %921 = vmatmul.mubr.bf16.gmra.mxu0 %v783
      %v922 = vpop.f32.mrf.mxu0
      %v923 = vadd.f32 0.0, %v922
      %v924 = vpop.f32.mrf.mxu0
      %v925 = vadd.f32 0.0, %v924
      %v926 = vpop.f32.mrf.mxu0
      %v927 = vpop.f32.mrf.mxu0
      %928 = vdwg.mxu0
      %v929 = vadd.f32 %v727, %v903
      %v930 = vadd.f32 %v728, %v905
      %v931 = vadd.f32 %v729, %v907
      %v932 = vadd.f32 %v730, %v909
      %v933 = vadd.f32 %v731, %v913
      %v934 = vadd.f32 %v732, %v915
      %v935 = vadd.f32 %v733, %v917
      %v936 = vadd.f32 %v734, %v919
      %v937 = vadd.f32 %v735, %v923
      %v938 = vadd.f32 %v736, %v925
      %v939 = vld [vmem:[%s2] sm:$0x3]
      %v941 = vlaneseq
      %v942 = vshrl.u32 %v941, 7
      %v943 = vsub.s32 0, %v942
      %v944 = vrot.slane %v939, %v943
      %v945 = vlaneseq
      %v946 = vshrl.u32 %v945, 7
      %v947 = vsub.s32 1, %v946
      %v948 = vrot.slane %v939, %v947
      %v951 = vadd.f32 %v929, %v944
      %v952 = vadd.f32 %v930, %v948
      %v953 = vadd.f32 %v931, %v944
      %v954 = vadd.f32 %v932, %v948
      %v955 = vadd.f32 %v933, %v944
      %v956 = vadd.f32 %v934, %v948
      %v957 = vadd.f32 %v935, %v944
      %v958 = vadd.f32 %v936, %v948
      %v959 = vadd.f32 %v937, %v944
      %v960 = vadd.f32 %v938, %v948
      %v961 = vmax.f32 %v951, 0.0
      %v962 = vmax.f32 %v952, 0.0
      %v963 = vmax.f32 %v953, 0.0
      %v964 = vmax.f32 %v954, 0.0
      %v965 = vmax.f32 %v955, 0.0
      %v966 = vmax.f32 %v956, 0.0
      %v967 = vmax.f32 %v957, 0.0
      %v968 = vmax.f32 %v958, 0.0
      %v969 = vmax.f32 %v959, 0.0
      %v970 = vmax.f32 %v960, 0.0
      %v971 = vpack.c.bf16 %v963, %v961
      %v972 = vpack.c.bf16 %v964, %v962
      %v973 = vpack.c.bf16 %v967, %v965
      %v974 = vpack.c.bf16 %v968, %v966
      %v975 = vpack.c.bf16 %v969, %v969
      %v976 = vpack.c.bf16 %v970, %v970
      %v983 = vunpack.c.l.b16 %v971
      %v984 = vunpack.c.l.b16 %v972
      %v985 = vunpack.c.h.b16 %v971
      %v986 = vunpack.c.h.b16 %v972
      %v987 = vunpack.c.l.b16 %v973
      %v988 = vunpack.c.l.b16 %v974
      %v989 = vunpack.c.h.b16 %v973
      %v990 = vunpack.c.h.b16 %v974
      %v991 = vunpack.c.l.b16 %v975
      %v992 = vunpack.c.l.b16 %v976
      %v993 = vpack.c.b16 %v984, %v983
      %v994 = vpack.c.b16 %v986, %v985
      %v995 = vpack.c.b16 %v988, %v987
      %v996 = vpack.c.b16 %v990, %v989
      %v997 = vpack.c.b16 %v992, %v991
      %1003 = vst [vmem:[%s170] sm:$0xff] %v993
      %1004 = vst [vmem:[%s170 + $0x8] sm:$0xff] %v994
      %1005 = vst [vmem:[%s170 + $0x10] sm:$0xff] %v995
      %1006 = vst [vmem:[%s170 + $0x18] sm:$0xff] %v996
      %1007 = vst [vmem:[%s170 + $0x20] sm:$0x33] %v997
      %p1008 = scmp.lt.s32.totalorder %s14, 1
      %s1009 = scalar_select %p1008, %s14, 1
      %s1010 = smul.addr %s1009, 10
      %s1011 = smul.addr %s1010, 4
      %s1012 = scalar_lea.vmem %s3, %s1011
      // Predicated region
      $region33: #{adversarial_autoencoder_forward.6} parent=31 // pred_check
        %p1013 = pneg %p100
      $region34: #{adversarial_autoencoder_forward.6} parent=31 // pred_check_branch
        %1015 = sbr.rel (%p1013) target = $region36
      $region35: #{adversarial_autoencoder_forward.6} parent=31 // pred_region
        _
      $region36: #{adversarial_autoencoder_forward.6} parent=31 // pred_fallthru
        _
    $region32: #{adversarial_autoencoder_forward.6} parent=5 // pred_fallthru
      _
    %p1016 = scmp.le.s32.totalorder 2, %s9
    // Predicated region
    $region37: #{adversarial_autoencoder_forward.6} parent=5 // pred_check
      %p1017 = pneg %p1016
    $region38: #{adversarial_autoencoder_forward.6} parent=5 // pred_check_branch
      %1019 = sbr.rel (%p1017) target = $region40
    $region39: #{adversarial_autoencoder_forward.6} parent=5 // pred_region
      %s1020 = ssub.s32 %s9, 2
      // Predicated region
      $region41: #{adversarial_autoencoder_forward.6} parent=39 // pred_check
        %p1021 = pneg %p106
      $region42: #{adversarial_autoencoder_forward.6} parent=39 // pred_check_branch
        %1023 = sbr.rel (%p1021) target = $region44
      $region43: #{adversarial_autoencoder_forward.6} parent=39 // pred_region
        %p1024 = scmp.lt.s32.totalorder %s15, 1
        %s1025 = scalar_select %p1024, %s15, 1
        %s1026 = smul.addr %s1025, 10
        %s1027 = smul.addr %s1026, 4
        %s1028 = scalar_lea.vmem %s3, %s1027
      $region44: #{adversarial_autoencoder_forward.6} parent=39 // pred_fallthru
        _
    $region40: #{adversarial_autoencoder_forward.6} parent=5 // pred_fallthru
      _
  $region6: #{adversarial_autoencoder_forward.6} parent=0 // loop_footer
    %s13 = sadd.s32 1, %s9
  $region7: #{adversarial_autoencoder_forward.6} parent=0 // loop_footer_branch
    %8 = sbr.rel target = $region3
  $region8: #{adversarial_autoencoder_forward.6} parent=0 // loop_exit
    _

// kernel: adversarial_autoencoder_forward.7
$region0: #{adversarial_autoencoder_forward.7}
  #allocation0 [shape = 'u32[]', space=smem, size = 0x4, offset = 0x4, fixed_abs, tag = 'smem constant byte address 0x4 - core index']
  #allocation1 [shape = 'u32[144,128]{1,0:T(1,128)}', space=vmem, size = 0x12000, scoped, tag = 'internal scratch']
  %s0 = inlined_call_operand.vmem [shape: bf16[2,111,64], index: 0, kind: input, shape index: {}]
  %s1 = inlined_call_operand.vmem [shape: bf16[4,64,16], index: 1, kind: input, shape index: {}]
  %s2 = inlined_call_operand.vmem [shape: f32[1,16], index: 2, kind: input, shape index: {}]
  %s3 = inlined_call_operand.vmem [shape: f32[2,100,16], index: 3, kind: output, shape index: {}]
  %s4 = sld [smem:[#allocation0]]
  $region45: #{adversarial_autoencoder_forward.7} parent=0
    _
  %s6 = ssub.s32 1, %s4
  %s7 = scalar_select 0, %s6, %s4
  loop: start=0, step=1, limit=4
  $region2: #{adversarial_autoencoder_forward.7} parent=0 // loop_pre_header
    _
  $region3: #{adversarial_autoencoder_forward.7} parent=0 // loop_header
    %s9 = sphi 0, %s13
    %p10 = scmp.ge.s32.totalorder %s9, 4
    %s19 = sphi 0, %s21
    %s22 = sphi 0, %s19
    %s23 = sphi 0, %s22
    %s39 = sphi 0, %s23
    %s43 = sphi 0, %s43
    %s45 = sphi 0, %s43
    %s46 = sphi 0, %s45
    %s60 = sphi 0, %s46
    %s64 = sphi 0, %s64
    %s66 = sphi 0, %s64
    %s67 = sphi 0, %s66
    %s81 = sphi 0, %s67
    %s87 = sphi 0, %s89
    %s90 = sphi 0, %s87
    %s91 = sphi 0, %s90
    %s107 = sphi 0, %s91
  $region4: #{adversarial_autoencoder_forward.7} parent=0 // loop_header_branch
    %12 = sbr.rel (%p10) target = $region8
  $region5: #{adversarial_autoencoder_forward.7} parent=0 // loop_body
    %s14 = ssub.s32 %s9, 1
    %s15 = ssub.s32 %s9, 2
    %s16 = sadd.s32 %s9, 1
    %s17 = ssub.s32 %s9, %s16
    %p18 = scmp.eq.s32.totalorder %s17, 0
    %s20 = sadd.s32 %s19, 1
    %s21 = scalar_select %p18, %s19, %s20
    %p24 = pneg %p18
    %p25 = scmp.eq.s32.totalorder %s9, 1
    %p26 = por %p24, %p25
    %p27 = scmp.ne.s32.totalorder %s19, %s22
    %p28 = scmp.eq.s32.totalorder %s9, 0
    %p29 = por %p27, %p28
    %p30 = scmp.ne.s32.totalorder %s19, %s22
    %p31 = scmp.eq.s32.totalorder %s14, 1
    %p32 = por %p30, %p31
    %p33 = scmp.ne.s32.totalorder %s22, %s23
    %p34 = scmp.eq.s32.totalorder %s14, 0
    %p35 = por %p33, %p34
    %p36 = scmp.ne.s32.totalorder %s22, %s23
    %p37 = scmp.eq.s32.totalorder %s15, 1
    %p38 = por %p36, %p37
    %p40 = scmp.ne.s32.totalorder %s23, %s39
    %p41 = scmp.eq.s32.totalorder %s15, 0
    %p42 = por %p40, %p41
    %s44 = sadd.s32 %s43, 1
    %p47 = scmp.eq.s32.totalorder %s9, 1
    %p48 = scmp.ne.s32.totalorder %s43, %s45
    %p49 = scmp.eq.s32.totalorder %s9, 0
    %p50 = por %p48, %p49
    %p51 = scmp.ne.s32.totalorder %s43, %s45
    %p52 = scmp.eq.s32.totalorder %s14, 1
    %p53 = por %p51, %p52
    %p54 = scmp.ne.s32.totalorder %s45, %s46
    %p55 = scmp.eq.s32.totalorder %s14, 0
    %p56 = por %p54, %p55
    %p57 = scmp.ne.s32.totalorder %s45, %s46
    %p58 = scmp.eq.s32.totalorder %s15, 1
    %p59 = por %p57, %p58
    %p61 = scmp.ne.s32.totalorder %s46, %s60
    %p62 = scmp.eq.s32.totalorder %s15, 0
    %p63 = por %p61, %p62
    %s65 = sadd.s32 %s64, 1
    %p68 = scmp.eq.s32.totalorder %s9, 1
    %p69 = scmp.ne.s32.totalorder %s64, %s66
    %p70 = scmp.eq.s32.totalorder %s9, 0
    %p71 = por %p69, %p70
    %p72 = scmp.ne.s32.totalorder %s64, %s66
    %p73 = scmp.eq.s32.totalorder %s14, 1
    %p74 = por %p72, %p73
    %p75 = scmp.ne.s32.totalorder %s66, %s67
    %p76 = scmp.eq.s32.totalorder %s14, 0
    %p77 = por %p75, %p76
    %p78 = scmp.ne.s32.totalorder %s66, %s67
    %p79 = scmp.eq.s32.totalorder %s15, 1
    %p80 = por %p78, %p79
    %p82 = scmp.ne.s32.totalorder %s67, %s81
    %p83 = scmp.eq.s32.totalorder %s15, 0
    %p84 = por %p82, %p83
    %s85 = ssub.s32 %s9, %s16
    %p86 = scmp.eq.s32.totalorder %s85, 0
    %s88 = sadd.s32 %s87, 1
    %s89 = scalar_select %p86, %s87, %s88
    %p92 = pneg %p86
    %p93 = scmp.eq.s32.totalorder %s9, 1
    %p94 = por %p92, %p93
    %p95 = scmp.ne.s32.totalorder %s87, %s90
    %p96 = scmp.eq.s32.totalorder %s9, 0
    %p97 = por %p95, %p96
    %p98 = scmp.ne.s32.totalorder %s87, %s90
    %p99 = scmp.eq.s32.totalorder %s14, 1
    %p100 = por %p98, %p99
    %p101 = scmp.ne.s32.totalorder %s90, %s91
    %p102 = scmp.eq.s32.totalorder %s14, 0
    %p103 = por %p101, %p102
    %p104 = scmp.ne.s32.totalorder %s90, %s91
    %p105 = scmp.eq.s32.totalorder %s15, 1
    %p106 = por %p104, %p105
    %p108 = scmp.ne.s32.totalorder %s91, %s107
    %p109 = scmp.eq.s32.totalorder %s15, 0
    %p110 = por %p108, %p109
    %p111 = scmp.le.s32.totalorder 1, %s9
    %p112 = scmp.lt.s32.totalorder %s9, 3
    %p113 = pnand %p111, %p112
    %p114 = pneg %p113
    // Predicated region
    $region9: #{adversarial_autoencoder_forward.7} parent=5 // pred_check
      _
    $region10: #{adversarial_autoencoder_forward.7} parent=5 // pred_check_branch
      %116 = sbr.rel (%p113) target = $region12
    $region11: #{adversarial_autoencoder_forward.7} parent=5 // pred_region
      %s117 = ssub.s32 %s9, 1
      // Predicated region
      $region13: #{adversarial_autoencoder_forward.7} parent=11 // pred_check
        %p118 = pneg %p56
      $region14: #{adversarial_autoencoder_forward.7} parent=11 // pred_check_branch
        %120 = sbr.rel (%p118) target = $region16
      $region15: #{adversarial_autoencoder_forward.7} parent=11 // pred_region
        _
      $region16: #{adversarial_autoencoder_forward.7} parent=11 // pred_fallthru
        _
      // Predicated region
      $region17: #{adversarial_autoencoder_forward.7} parent=11 // pred_check
        %p121 = pneg %p77
      $region18: #{adversarial_autoencoder_forward.7} parent=11 // pred_check_branch
        %123 = sbr.rel (%p121) target = $region20
      $region19: #{adversarial_autoencoder_forward.7} parent=11 // pred_region
        _
      $region20: #{adversarial_autoencoder_forward.7} parent=11 // pred_fallthru
        _
    $region12: #{adversarial_autoencoder_forward.7} parent=5 // pred_fallthru
      _
    %p124 = scmp.lt.s32.totalorder %s9, 2
    // Predicated region
    $region21: #{adversarial_autoencoder_forward.7} parent=5 // pred_check
      %p125 = pneg %p124
    $region22: #{adversarial_autoencoder_forward.7} parent=5 // pred_check_branch
      %127 = sbr.rel (%p125) target = $region24
    $region23: #{adversarial_autoencoder_forward.7} parent=5 // pred_region
      // Predicated region
      $region25: #{adversarial_autoencoder_forward.7} parent=23 // pred_check
        %p128 = pneg %p29
      $region26: #{adversarial_autoencoder_forward.7} parent=23 // pred_check_branch
        %130 = sbr.rel (%p128) target = $region28
      $region27: #{adversarial_autoencoder_forward.7} parent=23 // pred_region
        %p131 = scmp.lt.s32.totalorder %s9, 1
        %s132 = scalar_select %p131, %s9, 1
        %s133 = smul.addr %s132, 14
        %s134 = smul.addr %s133, 4
        %s135 = scalar_lea.vmem %s0, %s134
      $region28: #{adversarial_autoencoder_forward.7} parent=23 // pred_fallthru
        _
    $region24: #{adversarial_autoencoder_forward.7} parent=5 // pred_fallthru
      _
    %p136 = scmp.le.s32.totalorder 1, %s9
    %p137 = scmp.lt.s32.totalorder %s9, 3
    %p138 = pnand %p136, %p137
    %p139 = pneg %p138
    // Predicated region
    $region29: #{adversarial_autoencoder_forward.7} parent=5 // pred_check
      _
    $region30: #{adversarial_autoencoder_forward.7} parent=5 // pred_check_branch
      %141 = sbr.rel (%p138) target = $region32
    $region31: #{adversarial_autoencoder_forward.7} parent=5 // pred_region
      %s142 = ssub.s32 %s9, 1
      %p143 = scmp.lt.s32.totalorder %s14, 1
      %s144 = scalar_select %p143, %s14, 1
      %s145 = smul.addr %s144, 14
      %s146 = smul.addr %s145, 4
      %s147 = scalar_lea.vmem %s0, %s146
      %p148 = pneg %p35
      %p149 = pneg %p32
      %p150 = pneg %p56
      %p151 = pneg %p53
      %p152 = pneg %p77
      %p153 = pneg %p74
      %p154 = pneg %p103
      %p155 = pneg %p100
      %p156 = scmp.lt.s32.totalorder %s14, 1
      %s157 = scalar_select %p156, %s14, 1
      %s158 = smul.addr %s157, 13
      %s159 = smul.addr %s158, 8
      %s160 = scalar_lea.vmem %s3, %s159
      %p161 = scmp.lt.s32.totalorder %s14, 1
      %s162 = scalar_select %p161, %s14, 1
      %s163 = smul.addr %s162, 14
      %s164 = smul.addr %s163, 4
      %s165 = scalar_lea.vmem %s0, %s164
      %p166 = scmp.lt.s32.totalorder %s14, 1
      %s167 = scalar_select %p166, %s14, 1
      %s168 = smul.addr %s167, 13
      %s169 = smul.addr %s168, 8
      %s170 = scalar_lea.vmem %s3, %s169
      %v172 = vld [vmem:[%s165] sm:$0xf]
      %v173 = vld [vmem:[%s165 + $0x4] sm:$0xf]
      %v174 = vld [vmem:[%s165 + $0x8] sm:$0xf]
      %v175 = vld [vmem:[%s165 + $0xc] sm:$0xf]
      %v176 = vld [vmem:[%s165 + $0x10] sm:$0xf]
      %v177 = vld [vmem:[%s165 + $0x14] sm:$0xf]
      %v178 = vld [vmem:[%s165 + $0x18] sm:$0xf]
      %v179 = vld [vmem:[%s165 + $0x1c] sm:$0xf]
      %v180 = vld [vmem:[%s165 + $0x20] sm:$0xf]
      %v181 = vld [vmem:[%s165 + $0x24] sm:$0xf]
      %v182 = vld [vmem:[%s165 + $0x28] sm:$0xf]
      %v183 = vld [vmem:[%s165 + $0x2c] sm:$0xf]
      %v184 = vld [vmem:[%s165 + $0x30] sm:$0x3]
      %v185 = vld [vmem:[%s1] sm:$0xf]
      %v186 = vld [vmem:[%s1 + $0x4] sm:$0xf]
      %v187 = vld [vmem:[%s1 + $0x8] sm:$0xf]
      %v188 = vld [vmem:[%s1 + $0xc] sm:$0xf]
      %v189 = vld [vmem:[%s1 + $0x10] sm:$0xf]
      %v190 = vld [vmem:[%s1 + $0x14] sm:$0xf]
      %v191 = vld [vmem:[%s1 + $0x18] sm:$0xf]
      %v192 = vld [vmem:[%s1 + $0x1c] sm:$0xf]
      %v193 = vld [vmem:[%s165 + $0x30] sm:$0x7]
      %s194 = scalar_lea.vmem %s1, 32
      %v195 = vld [vmem:[%s194] sm:$0xf]
      %v196 = vld [vmem:[%s194 + $0x4] sm:$0xf]
      %v197 = vld [vmem:[%s194 + $0x8] sm:$0xf]
      %v198 = vld [vmem:[%s194 + $0xc] sm:$0xf]
      %v199 = vld [vmem:[%s194 + $0x10] sm:$0xf]
      %v200 = vld [vmem:[%s194 + $0x14] sm:$0xf]
      %v201 = vld [vmem:[%s194 + $0x18] sm:$0xf]
      %v202 = vld [vmem:[%s194 + $0x1c] sm:$0xf]
      %v216 = vunpack.c.l.b16 %v172
      %v217 = vunpack.c.l.b16 %v173
      %v218 = vunpack.c.l.b16 %v174
      %v219 = vunpack.c.l.b16 %v175
      %v220 = vunpack.c.l.b16 %v176
      %v221 = vunpack.c.l.b16 %v177
      %v222 = vunpack.c.l.b16 %v178
      %v223 = vunpack.c.l.b16 %v179
      %v224 = vunpack.c.l.b16 %v180
      %v225 = vunpack.c.l.b16 %v181
      %v226 = vunpack.c.l.b16 %v182
      %v227 = vunpack.c.l.b16 %v183
      %v228 = vunpack.c.l.b16 %v193
      %v229 = vpack.c.b16 %v217, %v216
      %v230 = vpack.c.b16 %v219, %v218
      %v231 = vpack.c.b16 %v221, %v220
      %v232 = vpack.c.b16 %v223, %v222
      %v233 = vpack.c.b16 %v225, %v224
      %v234 = vpack.c.b16 %v227, %v226
      %v235 = vpack.c.b16 %v228, %v228
      %vm236 = vsmask.f32 7424
      %v238 = vshrl.u32 %v229, 16
      %v240 = vshll.u32 %v229, 16
      %v242 = vrot.slane %v240, 1
      %v243 = vor.u32 %v238, %v242
      %v245 = vshll.u32 %v230, 16
      %v247 = vrot.slane %v245, 1
      %v248 = vsel %vm236, %v243, %v247
      %v249 = vshrl.u32 %v230, 16
      %v251 = vor.u32 %v249, %v247
      %v253 = vshll.u32 %v231, 16
      %v255 = vrot.slane %v253, 1
      %v256 = vsel %vm236, %v251, %v255
      %v257 = vshrl.u32 %v231, 16
      %v259 = vor.u32 %v257, %v255
      %v261 = vshll.u32 %v232, 16
      %v263 = vrot.slane %v261, 1
      %v264 = vsel %vm236, %v259, %v263
      %v265 = vshrl.u32 %v232, 16
      %v267 = vor.u32 %v265, %v263
      %v269 = vshll.u32 %v233, 16
      %v271 = vrot.slane %v269, 1
      %v272 = vsel %vm236, %v267, %v271
      %v273 = vshrl.u32 %v233, 16
      %v275 = vor.u32 %v273, %v271
      %v277 = vshll.u32 %v234, 16
      %v279 = vrot.slane %v277, 1
      %v280 = vsel %vm236, %v275, %v279
      %v281 = vshrl.u32 %v234, 16
      %v283 = vor.u32 %v281, %v279
      %v285 = vshll.u32 %v235, 16
      %v287 = vrot.slane %v285, 1
      %v288 = vsel %vm236, %v283, %v287
      %v289 = vshrl.u32 %v235, 16
      %v291 = vor.u32 %v289, %v287
      %v300 = vunpack.c.l.b16 %v195
      %v301 = vunpack.c.l.b16 %v196
      %v302 = vunpack.c.l.b16 %v197
      %v303 = vunpack.c.l.b16 %v198
      %v304 = vunpack.c.l.b16 %v199
      %v305 = vunpack.c.l.b16 %v200
      %v306 = vunpack.c.l.b16 %v201
      %v307 = vunpack.c.l.b16 %v202
      %v308 = vpack.c.b16 %v301, %v300
      %v309 = vpack.c.b16 %v303, %v302
      %v310 = vpack.c.b16 %v305, %v304
      %v311 = vpack.c.b16 %v307, %v306
      %vm316 = vcmask 523264
      %v318 = vsel %vm316, %v248, 0
      %v321 = vsel %vm316, %v256, 0
      %v324 = vsel %vm316, %v264, 0
      %v327 = vsel %vm316, %v272, 0
      %v330 = vsel %vm316, %v280, 0
      %v333 = vsel %vm316, %v288, 0
      %v336 = vsel %vm316, %v291, 0
      %338 = vmatprep.subr.bf16.mxu0 0
      %339 = vmatpush1.bf16.msra.mxu0 0
      %340 = vmatprep.subr.bf16.mxu0 0
      %341 = vmatpush1.bf16.msra.mxu0 0
      %342 = vmatprep.subr.bf16.mxu0 0
      %343 = vmatpush1.bf16.msra.mxu0 0
      %344 = vmatprep.subr.bf16.mxu0 0
      %345 = vmatpush1.bf16.msra.mxu0 0
      %346 = vmatprep.subr.bf16.mxu0 0
      %347 = vmatpush1.bf16.msra.mxu0 %v311
      %348 = vmatprep.subr.bf16.mxu0 0
      %349 = vmatpush1.bf16.msra.mxu0 %v310
      %350 = vmatprep.subr.bf16.mxu0 0
      %351 = vmatpush1.bf16.msra.mxu0 %v309
      %352 = vmatprep.subr.bf16.mxu0 0
      %353 = vmatpush1.bf16.msra.mxu0 %v308
      %354 = vmatprep.subr.bf16.mxu0 0
      %355 = vmatpush2.bf16.msra.mxu0 0
      %356 = vmatprep.subr.bf16.mxu0 0
      %357 = vmatpush2.bf16.msra.mxu0 0
      %358 = vmatprep.subr.bf16.mxu0 0
      %359 = vmatpush2.bf16.msra.mxu0 0
      %360 = vmatprep.subr.bf16.mxu0 0
      %361 = vmatpush2.bf16.msra.mxu0 0
      %362 = vmatprep.subr.bf16.mxu0 0
      %363 = vmatpush2.bf16.msra.mxu0 0
      %364 = vmatprep.subr.bf16.mxu0 0
      %365 = vmatpush2.bf16.msra.mxu0 0
      %366 = vmatprep.subr.bf16.mxu0 0
      %367 = vmatpush2.bf16.msra.mxu0 0
      %368 = vmatprep.subr.bf16.mxu0 0
      %369 = vmatpush2.bf16.msra.mxu0 0
      %370 = vmatprep.mubr.bf16.mxu0 0
      %371 = vmatmul.mubr.bf16.gmra.mxu0 %v318
      %v372 = vpop.f32.mrf.mxu0
      %v373 = vadd.f32 0.0, %v372
      %v374 = vpop.f32.mrf.mxu0
      %v375 = vpop.f32.mrf.mxu0
      %v376 = vadd.f32 0.0, %v375
      %v377 = vpop.f32.mrf.mxu0
      %378 = vmatprep.mubr.bf16.mxu0 0
      %379 = vmatmul.mubr.bf16.gmra.mxu0 %v321
      %v380 = vpop.f32.mrf.mxu0
      %v381 = vadd.f32 0.0, %v380
      %v382 = vpop.f32.mrf.mxu0
      %v383 = vpop.f32.mrf.mxu0
      %v384 = vadd.f32 0.0, %v383
      %v385 = vpop.f32.mrf.mxu0
      %386 = vmatprep.mubr.bf16.mxu0 0
      %387 = vmatmul.mubr.bf16.gmra.mxu0 %v324
      %v388 = vpop.f32.mrf.mxu0
      %v389 = vadd.f32 0.0, %v388
      %v390 = vpop.f32.mrf.mxu0
      %v391 = vpop.f32.mrf.mxu0
      %v392 = vadd.f32 0.0, %v391
      %v393 = vpop.f32.mrf.mxu0
      %394 = vmatprep.mubr.bf16.mxu0 0
      %395 = vmatmul.mubr.bf16.gmra.mxu0 %v327
      %v396 = vpop.f32.mrf.mxu0
      %v397 = vadd.f32 0.0, %v396
      %v398 = vpop.f32.mrf.mxu0
      %v399 = vpop.f32.mrf.mxu0
      %v400 = vadd.f32 0.0, %v399
      %v401 = vpop.f32.mrf.mxu0
      %402 = vmatprep.mubr.bf16.mxu0 0
      %403 = vmatmul.mubr.bf16.gmra.mxu0 %v330
      %v404 = vpop.f32.mrf.mxu0
      %v405 = vadd.f32 0.0, %v404
      %v406 = vpop.f32.mrf.mxu0
      %v407 = vpop.f32.mrf.mxu0
      %v408 = vadd.f32 0.0, %v407
      %v409 = vpop.f32.mrf.mxu0
      %410 = vmatprep.mubr.bf16.mxu0 0
      %411 = vmatmul.mubr.bf16.gmra.mxu0 %v333
      %v412 = vpop.f32.mrf.mxu0
      %v413 = vadd.f32 0.0, %v412
      %v414 = vpop.f32.mrf.mxu0
      %v415 = vpop.f32.mrf.mxu0
      %v416 = vadd.f32 0.0, %v415
      %v417 = vpop.f32.mrf.mxu0
      %418 = vmatprep.mubr.bf16.mxu0 0
      %419 = vmatmul.mubr.bf16.gmra.mxu0 %v336
      %v420 = vpop.f32.mrf.mxu0
      %v421 = vadd.f32 0.0, %v420
      %v422 = vpop.f32.mrf.mxu0
      %v423 = vpop.f32.mrf.mxu0
      %v424 = vpop.f32.mrf.mxu0
      %425 = vdwg.mxu0
      %v427 = vunpack.c.l.b16 %v184
      %v428 = vpack.c.b16 %v427, %v427
      %v437 = vunpack.c.l.b16 %v185
      %v438 = vunpack.c.l.b16 %v186
      %v439 = vunpack.c.l.b16 %v187
      %v440 = vunpack.c.l.b16 %v188
      %v441 = vunpack.c.l.b16 %v189
      %v442 = vunpack.c.l.b16 %v190
      %v443 = vunpack.c.l.b16 %v191
      %v444 = vunpack.c.l.b16 %v192
      %v445 = vpack.c.b16 %v438, %v437
      %v446 = vpack.c.b16 %v440, %v439
      %v447 = vpack.c.b16 %v442, %v441
      %v448 = vpack.c.b16 %v444, %v443
      %v453 = vsel %vm316, %v229, 0
      %v455 = vsel %vm316, %v230, 0
      %v457 = vsel %vm316, %v231, 0
      %v459 = vsel %vm316, %v232, 0
      %v461 = vsel %vm316, %v233, 0
      %v463 = vsel %vm316, %v234, 0
      %v466 = vsel %vm316, %v428, 0
      %468 = vmatprep.subr.bf16.mxu0 0
      %469 = vmatpush1.bf16.msra.mxu0 0
      %470 = vmatprep.subr.bf16.mxu0 0
      %471 = vmatpush1.bf16.msra.mxu0 0
      %472 = vmatprep.subr.bf16.mxu0 0
      %473 = vmatpush1.bf16.msra.mxu0 0
      %474 = vmatprep.subr.bf16.mxu0 0
      %475 = vmatpush1.bf16.msra.mxu0 0
      %476 = vmatprep.subr.bf16.mxu0 0
      %477 = vmatpush1.bf16.msra.mxu0 %v448
      %478 = vmatprep.subr.bf16.mxu0 0
      %479 = vmatpush1.bf16.msra.mxu0 %v447
      %480 = vmatprep.subr.bf16.mxu0 0
      %481 = vmatpush1.bf16.msra.mxu0 %v446
      %482 = vmatprep.subr.bf16.mxu0 0
      %483 = vmatpush1.bf16.msra.mxu0 %v445
      %484 = vmatprep.subr.bf16.mxu0 0
      %485 = vmatpush2.bf16.msra.mxu0 0
      %486 = vmatprep.subr.bf16.mxu0 0
      %487 = vmatpush2.bf16.msra.mxu0 0
      %488 = vmatprep.subr.bf16.mxu0 0
      %489 = vmatpush2.bf16.msra.mxu0 0
      %490 = vmatprep.subr.bf16.mxu0 0
      %491 = vmatpush2.bf16.msra.mxu0 0
      %492 = vmatprep.subr.bf16.mxu0 0
      %493 = vmatpush2.bf16.msra.mxu0 0
      %494 = vmatprep.subr.bf16.mxu0 0
      %495 = vmatpush2.bf16.msra.mxu0 0
      %496 = vmatprep.subr.bf16.mxu0 0
      %497 = vmatpush2.bf16.msra.mxu0 0
      %498 = vmatprep.subr.bf16.mxu0 0
      %499 = vmatpush2.bf16.msra.mxu0 0
      %500 = vmatprep.mubr.bf16.mxu0 0
      %501 = vmatmul.mubr.bf16.gmra.mxu0 %v453
      %v502 = vpop.f32.mrf.mxu0
      %v503 = vadd.f32 %v373, %v502
      %v504 = vpop.f32.mrf.mxu0
      %v505 = vpop.f32.mrf.mxu0
      %v506 = vadd.f32 %v376, %v505
      %v507 = vpop.f32.mrf.mxu0
      %508 = vmatprep.mubr.bf16.mxu0 0
      %509 = vmatmul.mubr.bf16.gmra.mxu0 %v455
      %v510 = vpop.f32.mrf.mxu0
      %v511 = vadd.f32 %v381, %v510
      %v512 = vpop.f32.mrf.mxu0
      %v513 = vpop.f32.mrf.mxu0
      %v514 = vadd.f32 %v384, %v513
      %v515 = vpop.f32.mrf.mxu0
      %516 = vmatprep.mubr.bf16.mxu0 0
      %517 = vmatmul.mubr.bf16.gmra.mxu0 %v457
      %v518 = vpop.f32.mrf.mxu0
      %v519 = vadd.f32 %v389, %v518
      %v520 = vpop.f32.mrf.mxu0
      %v521 = vpop.f32.mrf.mxu0
      %v522 = vadd.f32 %v392, %v521
      %v523 = vpop.f32.mrf.mxu0
      %524 = vmatprep.mubr.bf16.mxu0 0
      %525 = vmatmul.mubr.bf16.gmra.mxu0 %v459
      %v526 = vpop.f32.mrf.mxu0
      %v527 = vadd.f32 %v397, %v526
      %v528 = vpop.f32.mrf.mxu0
      %v529 = vpop.f32.mrf.mxu0
      %v530 = vadd.f32 %v400, %v529
      %v531 = vpop.f32.mrf.mxu0
      %532 = vmatprep.mubr.bf16.mxu0 0
      %533 = vmatmul.mubr.bf16.gmra.mxu0 %v461
      %v534 = vpop.f32.mrf.mxu0
      %v535 = vadd.f32 %v405, %v534
      %v536 = vpop.f32.mrf.mxu0
      %v537 = vpop.f32.mrf.mxu0
      %v538 = vadd.f32 %v408, %v537
      %v539 = vpop.f32.mrf.mxu0
      %540 = vmatprep.mubr.bf16.mxu0 0
      %541 = vmatmul.mubr.bf16.gmra.mxu0 %v463
      %v542 = vpop.f32.mrf.mxu0
      %v543 = vadd.f32 %v413, %v542
      %v544 = vpop.f32.mrf.mxu0
      %v545 = vpop.f32.mrf.mxu0
      %v546 = vadd.f32 %v416, %v545
      %v547 = vpop.f32.mrf.mxu0
      %548 = vmatprep.mubr.bf16.mxu0 0
      %549 = vmatmul.mubr.bf16.gmra.mxu0 %v466
      %v550 = vpop.f32.mrf.mxu0
      %v551 = vadd.f32 %v421, %v550
      %v552 = vpop.f32.mrf.mxu0
      %v553 = vpop.f32.mrf.mxu0
      %v554 = vpop.f32.mrf.mxu0
      %555 = vdwg.mxu0
      %v556 = vld [vmem:[%s165 + $0x4] sm:$0xe]
      %v557 = vld [vmem:[%s165 + $0x8] sm:$0xf]
      %v558 = vld [vmem:[%s165 + $0xc] sm:$0xf]
      %v559 = vld [vmem:[%s165 + $0x10] sm:$0xf]
      %v560 = vld [vmem:[%s165 + $0x14] sm:$0xf]
      %v561 = vld [vmem:[%s165 + $0x18] sm:$0xf]
      %v562 = vld [vmem:[%s165 + $0x1c] sm:$0xf]
      %v563 = vld [vmem:[%s165 + $0x20] sm:$0xf]
      %v564 = vld [vmem:[%s165 + $0x24] sm:$0xf]
      %v565 = vld [vmem:[%s165 + $0x28] sm:$0xf]
      %v566 = vld [vmem:[%s165 + $0x2c] sm:$0xf]
      %v567 = vld [vmem:[%s165 + $0x30] sm:$0xf]
      %v568 = vld [vmem:[%s165 + $0x34] sm:$0x7]
      %s569 = scalar_lea.vmem %s1, 64
      %v570 = vld [vmem:[%s569] sm:$0xf]
      %v571 = vld [vmem:[%s569 + $0x4] sm:$0xf]
      %v572 = vld [vmem:[%s569 + $0x8] sm:$0xf]
      %v573 = vld [vmem:[%s569 + $0xc] sm:$0xf]
      %v574 = vld [vmem:[%s569 + $0x10] sm:$0xf]
      %v575 = vld [vmem:[%s569 + $0x14] sm:$0xf]
      %v576 = vld [vmem:[%s569 + $0x18] sm:$0xf]
      %v577 = vld [vmem:[%s569 + $0x1c] sm:$0xf]
      %v591 = vunpack.c.l.b16 %v556
      %v592 = vunpack.c.l.b16 %v557
      %v593 = vunpack.c.l.b16 %v558
      %v594 = vunpack.c.l.b16 %v559
      %v595 = vunpack.c.l.b16 %v560
      %v596 = vunpack.c.l.b16 %v561
      %v597 = vunpack.c.l.b16 %v562
      %v598 = vunpack.c.l.b16 %v563
      %v599 = vunpack.c.l.b16 %v564
      %v600 = vunpack.c.l.b16 %v565
      %v601 = vunpack.c.l.b16 %v566
      %v602 = vunpack.c.l.b16 %v567
      %v603 = vunpack.c.l.b16 %v568
      %v604 = vpack.c.b16 %v592, %v591
      %v605 = vpack.c.b16 %v594, %v593
      %v606 = vpack.c.b16 %v596, %v595
      %v607 = vpack.c.b16 %v598, %v597
      %v608 = vpack.c.b16 %v600, %v599
      %v609 = vpack.c.b16 %v602, %v601
      %v610 = vpack.c.b16 %v603, %v603
      %vm611 = vcmask 1046528
      %v612 = vrot.slane %v604, 1
      %v613 = vrot.slane %v605, 1
      %v614 = vsel %vm611, %v612, %v613
      %v615 = vrot.slane %v606, 1
      %v616 = vsel %vm611, %v613, %v615
      %v617 = vrot.slane %v607, 1
      %v618 = vsel %vm611, %v615, %v617
      %v619 = vrot.slane %v608, 1
      %v620 = vsel %vm611, %v617, %v619
      %v621 = vrot.slane %v609, 1
      %v622 = vsel %vm611, %v619, %v621
      %v623 = vrot.slane %v610, 1
      %v624 = vsel %vm611, %v621, %v623
      %v633 = vunpack.c.l.b16 %v570
      %v634 = vunpack.c.l.b16 %v571
      %v635 = vunpack.c.l.b16 %v572
      %v636 = vunpack.c.l.b16 %v573
      %v637 = vunpack.c.l.b16 %v574
      %v638 = vunpack.c.l.b16 %v575
      %v639 = vunpack.c.l.b16 %v576
      %v640 = vunpack.c.l.b16 %v577
      %v641 = vpack.c.b16 %v634, %v633
      %v642 = vpack.c.b16 %v636, %v635
      %v643 = vpack.c.b16 %v638, %v637
      %v644 = vpack.c.b16 %v640, %v639
      %v650 = vsel %vm316, %v614, 0
      %v653 = vsel %vm316, %v616, 0
      %v656 = vsel %vm316, %v618, 0
      %v659 = vsel %vm316, %v620, 0
      %v662 = vsel %vm316, %v622, 0
      %v665 = vsel %vm316, %v624, 0
      %v668 = vsel %vm316, %v623, 0
      %670 = vmatprep.subr.bf16.mxu0 0
      %671 = vmatpush1.bf16.msra.mxu0 0
      %672 = vmatprep.subr.bf16.mxu0 0
      %673 = vmatpush1.bf16.msra.mxu0 0
      %674 = vmatprep.subr.bf16.mxu0 0
      %675 = vmatpush1.bf16.msra.mxu0 0
      %676 = vmatprep.subr.bf16.mxu0 0
      %677 = vmatpush1.bf16.msra.mxu0 0
      %678 = vmatprep.subr.bf16.mxu0 0
      %679 = vmatpush1.bf16.msra.mxu0 %v644
      %680 = vmatprep.subr.bf16.mxu0 0
      %681 = vmatpush1.bf16.msra.mxu0 %v643
      %682 = vmatprep.subr.bf16.mxu0 0
      %683 = vmatpush1.bf16.msra.mxu0 %v642
      %684 = vmatprep.subr.bf16.mxu0 0
      %685 = vmatpush1.bf16.msra.mxu0 %v641
      %686 = vmatprep.subr.bf16.mxu0 0
      %687 = vmatpush2.bf16.msra.mxu0 0
      %688 = vmatprep.subr.bf16.mxu0 0
      %689 = vmatpush2.bf16.msra.mxu0 0
      %690 = vmatprep.subr.bf16.mxu0 0
      %691 = vmatpush2.bf16.msra.mxu0 0
      %692 = vmatprep.subr.bf16.mxu0 0
      %693 = vmatpush2.bf16.msra.mxu0 0
      %694 = vmatprep.subr.bf16.mxu0 0
      %695 = vmatpush2.bf16.msra.mxu0 0
      %696 = vmatprep.subr.bf16.mxu0 0
      %697 = vmatpush2.bf16.msra.mxu0 0
      %698 = vmatprep.subr.bf16.mxu0 0
      %699 = vmatpush2.bf16.msra.mxu0 0
      %700 = vmatprep.subr.bf16.mxu0 0
      %701 = vmatpush2.bf16.msra.mxu0 0
      %702 = vmatprep.mubr.bf16.mxu0 0
      %703 = vmatmul.mubr.bf16.gmra.mxu0 %v650
      %v704 = vpop.f32.mrf.mxu0
      %v705 = vadd.f32 0.0, %v704
      %v706 = vpop.f32.mrf.mxu0
      %v707 = vpop.f32.mrf.mxu0
      %v708 = vadd.f32 0.0, %v707
      %v709 = vpop.f32.mrf.mxu0
      %710 = vmatprep.mubr.bf16.mxu0 0
      %711 = vmatmul.mubr.bf16.gmra.mxu0 %v653
      %v712 = vpop.f32.mrf.mxu0
      %v713 = vadd.f32 0.0, %v712
      %v714 = vpop.f32.mrf.mxu0
      %v715 = vpop.f32.mrf.mxu0
      %v716 = vadd.f32 0.0, %v715
      %v717 = vpop.f32.mrf.mxu0
      %718 = vmatprep.mubr.bf16.mxu0 0
      %719 = vmatmul.mubr.bf16.gmra.mxu0 %v656
      %v720 = vpop.f32.mrf.mxu0
      %v721 = vadd.f32 0.0, %v720
      %v722 = vpop.f32.mrf.mxu0
      %v723 = vpop.f32.mrf.mxu0
      %v724 = vadd.f32 0.0, %v723
      %v725 = vpop.f32.mrf.mxu0
      %726 = vmatprep.mubr.bf16.mxu0 0
      %727 = vmatmul.mubr.bf16.gmra.mxu0 %v659
      %v728 = vpop.f32.mrf.mxu0
      %v729 = vadd.f32 0.0, %v728
      %v730 = vpop.f32.mrf.mxu0
      %v731 = vpop.f32.mrf.mxu0
      %v732 = vadd.f32 0.0, %v731
      %v733 = vpop.f32.mrf.mxu0
      %734 = vmatprep.mubr.bf16.mxu0 0
      %735 = vmatmul.mubr.bf16.gmra.mxu0 %v662
      %v736 = vpop.f32.mrf.mxu0
      %v737 = vadd.f32 0.0, %v736
      %v738 = vpop.f32.mrf.mxu0
      %v739 = vpop.f32.mrf.mxu0
      %v740 = vadd.f32 0.0, %v739
      %v741 = vpop.f32.mrf.mxu0
      %742 = vmatprep.mubr.bf16.mxu0 0
      %743 = vmatmul.mubr.bf16.gmra.mxu0 %v665
      %v744 = vpop.f32.mrf.mxu0
      %v745 = vadd.f32 0.0, %v744
      %v746 = vpop.f32.mrf.mxu0
      %v747 = vpop.f32.mrf.mxu0
      %v748 = vadd.f32 0.0, %v747
      %v749 = vpop.f32.mrf.mxu0
      %750 = vmatprep.mubr.bf16.mxu0 0
      %751 = vmatmul.mubr.bf16.gmra.mxu0 %v668
      %v752 = vpop.f32.mrf.mxu0
      %v753 = vadd.f32 0.0, %v752
      %v754 = vpop.f32.mrf.mxu0
      %v755 = vpop.f32.mrf.mxu0
      %v756 = vpop.f32.mrf.mxu0
      %757 = vdwg.mxu0
      %v758 = vadd.f32 %v503, %v705
      %v759 = vadd.f32 %v506, %v708
      %v760 = vadd.f32 %v511, %v713
      %v761 = vadd.f32 %v514, %v716
      %v762 = vadd.f32 %v519, %v721
      %v763 = vadd.f32 %v522, %v724
      %v764 = vadd.f32 %v527, %v729
      %v765 = vadd.f32 %v530, %v732
      %v766 = vadd.f32 %v535, %v737
      %v767 = vadd.f32 %v538, %v740
      %v768 = vadd.f32 %v543, %v745
      %v769 = vadd.f32 %v546, %v748
      %v770 = vadd.f32 %v551, %v753
      %v771 = vld [vmem:[%s165 + $0x34] sm:$0xf]
      %s772 = scalar_lea.vmem %s1, 96
      %v773 = vld [vmem:[%s772] sm:$0xf]
      %v774 = vld [vmem:[%s772 + $0x4] sm:$0xf]
      %v775 = vld [vmem:[%s772 + $0x8] sm:$0xf]
      %v776 = vld [vmem:[%s772 + $0xc] sm:$0xf]
      %v777 = vld [vmem:[%s772 + $0x10] sm:$0xf]
      %v778 = vld [vmem:[%s772 + $0x14] sm:$0xf]
      %v779 = vld [vmem:[%s772 + $0x18] sm:$0xf]
      %v780 = vld [vmem:[%s772 + $0x1c] sm:$0xf]
      %v782 = vunpack.c.l.b16 %v771
      %v783 = vpack.c.b16 %v782, %v782
      %vm784 = vsmask.f32 6400
      %v786 = vshrl.u32 %v604, 16
      %v788 = vrot.slane %v786, 1
      %v789 = vshll.u32 %v604, 16
      %v791 = vrot.slane %v789, 2
      %v792 = vor.u32 %v788, %v791
      %v794 = vshrl.u32 %v605, 16
      %v796 = vrot.slane %v794, 1
      %v797 = vshll.u32 %v605, 16
      %v799 = vrot.slane %v797, 2
      %v800 = vor.u32 %v796, %v799
      %v801 = vsel %vm784, %v792, %v800
      %v803 = vshrl.u32 %v606, 16
      %v805 = vrot.slane %v803, 1
      %v806 = vshll.u32 %v606, 16
      %v808 = vrot.slane %v806, 2
      %v809 = vor.u32 %v805, %v808
      %v810 = vsel %vm784, %v800, %v809
      %v812 = vshrl.u32 %v607, 16
      %v814 = vrot.slane %v812, 1
      %v815 = vshll.u32 %v607, 16
      %v817 = vrot.slane %v815, 2
      %v818 = vor.u32 %v814, %v817
      %v819 = vsel %vm784, %v809, %v818
      %v821 = vshrl.u32 %v608, 16
      %v823 = vrot.slane %v821, 1
      %v824 = vshll.u32 %v608, 16
      %v826 = vrot.slane %v824, 2
      %v827 = vor.u32 %v823, %v826
      %v828 = vsel %vm784, %v818, %v827
      %v830 = vshrl.u32 %v609, 16
      %v832 = vrot.slane %v830, 1
      %v833 = vshll.u32 %v609, 16
      %v835 = vrot.slane %v833, 2
      %v836 = vor.u32 %v832, %v835
      %v837 = vsel %vm784, %v827, %v836
      %v839 = vshrl.u32 %v783, 16
      %v841 = vrot.slane %v839, 1
      %v842 = vshll.u32 %v783, 16
      %v844 = vrot.slane %v842, 2
      %v845 = vor.u32 %v841, %v844
      %v846 = vsel %vm784, %v836, %v845
      %v855 = vunpack.c.l.b16 %v773
      %v856 = vunpack.c.l.b16 %v774
      %v857 = vunpack.c.l.b16 %v775
      %v858 = vunpack.c.l.b16 %v776
      %v859 = vunpack.c.l.b16 %v777
      %v860 = vunpack.c.l.b16 %v778
      %v861 = vunpack.c.l.b16 %v779
      %v862 = vunpack.c.l.b16 %v780
      %v863 = vpack.c.b16 %v856, %v855
      %v864 = vpack.c.b16 %v858, %v857
      %v865 = vpack.c.b16 %v860, %v859
      %v866 = vpack.c.b16 %v862, %v861
      %v872 = vsel %vm316, %v801, 0
      %v875 = vsel %vm316, %v810, 0
      %v878 = vsel %vm316, %v819, 0
      %v881 = vsel %vm316, %v828, 0
      %v884 = vsel %vm316, %v837, 0
      %v887 = vsel %vm316, %v846, 0
      %v890 = vsel %vm316, %v845, 0
      %892 = vmatprep.subr.bf16.mxu0 0
      %893 = vmatpush1.bf16.msra.mxu0 0
      %894 = vmatprep.subr.bf16.mxu0 0
      %895 = vmatpush1.bf16.msra.mxu0 0
      %896 = vmatprep.subr.bf16.mxu0 0
      %897 = vmatpush1.bf16.msra.mxu0 0
      %898 = vmatprep.subr.bf16.mxu0 0
      %899 = vmatpush1.bf16.msra.mxu0 0
      %900 = vmatprep.subr.bf16.mxu0 0
      %901 = vmatpush1.bf16.msra.mxu0 %v866
      %902 = vmatprep.subr.bf16.mxu0 0
      %903 = vmatpush1.bf16.msra.mxu0 %v865
      %904 = vmatprep.subr.bf16.mxu0 0
      %905 = vmatpush1.bf16.msra.mxu0 %v864
      %906 = vmatprep.subr.bf16.mxu0 0
      %907 = vmatpush1.bf16.msra.mxu0 %v863
      %908 = vmatprep.subr.bf16.mxu0 0
      %909 = vmatpush2.bf16.msra.mxu0 0
      %910 = vmatprep.subr.bf16.mxu0 0
      %911 = vmatpush2.bf16.msra.mxu0 0
      %912 = vmatprep.subr.bf16.mxu0 0
      %913 = vmatpush2.bf16.msra.mxu0 0
      %914 = vmatprep.subr.bf16.mxu0 0
      %915 = vmatpush2.bf16.msra.mxu0 0
      %916 = vmatprep.subr.bf16.mxu0 0
      %917 = vmatpush2.bf16.msra.mxu0 0
      %918 = vmatprep.subr.bf16.mxu0 0
      %919 = vmatpush2.bf16.msra.mxu0 0
      %920 = vmatprep.subr.bf16.mxu0 0
      %921 = vmatpush2.bf16.msra.mxu0 0
      %922 = vmatprep.subr.bf16.mxu0 0
      %923 = vmatpush2.bf16.msra.mxu0 0
      %924 = vmatprep.mubr.bf16.mxu0 0
      %925 = vmatmul.mubr.bf16.gmra.mxu0 %v872
      %v926 = vpop.f32.mrf.mxu0
      %v927 = vadd.f32 0.0, %v926
      %v928 = vpop.f32.mrf.mxu0
      %v929 = vpop.f32.mrf.mxu0
      %v930 = vadd.f32 0.0, %v929
      %v931 = vpop.f32.mrf.mxu0
      %932 = vmatprep.mubr.bf16.mxu0 0
      %933 = vmatmul.mubr.bf16.gmra.mxu0 %v875
      %v934 = vpop.f32.mrf.mxu0
      %v935 = vadd.f32 0.0, %v934
      %v936 = vpop.f32.mrf.mxu0
      %v937 = vpop.f32.mrf.mxu0
      %v938 = vadd.f32 0.0, %v937
      %v939 = vpop.f32.mrf.mxu0
      %940 = vmatprep.mubr.bf16.mxu0 0
      %941 = vmatmul.mubr.bf16.gmra.mxu0 %v878
      %v942 = vpop.f32.mrf.mxu0
      %v943 = vadd.f32 0.0, %v942
      %v944 = vpop.f32.mrf.mxu0
      %v945 = vpop.f32.mrf.mxu0
      %v946 = vadd.f32 0.0, %v945
      %v947 = vpop.f32.mrf.mxu0
      %948 = vmatprep.mubr.bf16.mxu0 0
      %949 = vmatmul.mubr.bf16.gmra.mxu0 %v881
      %v950 = vpop.f32.mrf.mxu0
      %v951 = vadd.f32 0.0, %v950
      %v952 = vpop.f32.mrf.mxu0
      %v953 = vpop.f32.mrf.mxu0
      %v954 = vadd.f32 0.0, %v953
      %v955 = vpop.f32.mrf.mxu0
      %956 = vmatprep.mubr.bf16.mxu0 0
      %957 = vmatmul.mubr.bf16.gmra.mxu0 %v884
      %v958 = vpop.f32.mrf.mxu0
      %v959 = vadd.f32 0.0, %v958
      %v960 = vpop.f32.mrf.mxu0
      %v961 = vpop.f32.mrf.mxu0
      %v962 = vadd.f32 0.0, %v961
      %v963 = vpop.f32.mrf.mxu0
      %964 = vmatprep.mubr.bf16.mxu0 0
      %965 = vmatmul.mubr.bf16.gmra.mxu0 %v887
      %v966 = vpop.f32.mrf.mxu0
      %v967 = vadd.f32 0.0, %v966
      %v968 = vpop.f32.mrf.mxu0
      %v969 = vpop.f32.mrf.mxu0
      %v970 = vadd.f32 0.0, %v969
      %v971 = vpop.f32.mrf.mxu0
      %972 = vmatprep.mubr.bf16.mxu0 0
      %973 = vmatmul.mubr.bf16.gmra.mxu0 %v890
      %v974 = vpop.f32.mrf.mxu0
      %v975 = vadd.f32 0.0, %v974
      %v976 = vpop.f32.mrf.mxu0
      %v977 = vpop.f32.mrf.mxu0
      %v978 = vpop.f32.mrf.mxu0
      %979 = vdwg.mxu0
      %v980 = vadd.f32 %v758, %v927
      %v981 = vadd.f32 %v759, %v930
      %v982 = vadd.f32 %v760, %v935
      %v983 = vadd.f32 %v761, %v938
      %v984 = vadd.f32 %v762, %v943
      %v985 = vadd.f32 %v763, %v946
      %v986 = vadd.f32 %v764, %v951
      %v987 = vadd.f32 %v765, %v954
      %v988 = vadd.f32 %v766, %v959
      %v989 = vadd.f32 %v767, %v962
      %v990 = vadd.f32 %v768, %v967
      %v991 = vadd.f32 %v769, %v970
      %v992 = vadd.f32 %v770, %v975
      %v993 = vld [vmem:[%s2] sm:$0x1]
      %v995 = vlaneseq
      %v996 = vshrl.u32 %v995, 7
      %v997 = vsub.s32 0, %v996
      %v998 = vrot.slane %v993, %v997
      %v1000 = vadd.f32 %v980, %v998
      %v1001 = vadd.f32 %v981, %v998
      %v1002 = vadd.f32 %v982, %v998
      %v1003 = vadd.f32 %v983, %v998
      %v1004 = vadd.f32 %v984, %v998
      %v1005 = vadd.f32 %v985, %v998
      %v1006 = vadd.f32 %v986, %v998
      %v1007 = vadd.f32 %v987, %v998
      %v1008 = vadd.f32 %v988, %v998
      %v1009 = vadd.f32 %v989, %v998
      %v1010 = vadd.f32 %v990, %v998
      %v1011 = vadd.f32 %v991, %v998
      %v1012 = vadd.f32 %v992, %v998
      %v1013 = vtanh.pop %v1000
      %v1014 = vtanh.pop %v1001
      %v1015 = vtanh.pop %v1002
      %v1016 = vtanh.pop %v1003
      %v1017 = vtanh.pop %v1004
      %v1018 = vtanh.pop %v1005
      %v1019 = vtanh.pop %v1006
      %v1020 = vtanh.pop %v1007
      %v1021 = vtanh.pop %v1008
      %v1022 = vtanh.pop %v1009
      %v1023 = vtanh.pop %v1010
      %v1024 = vtanh.pop %v1011
      %v1025 = vtanh.pop %v1012
      %vm1026 = vcmask 130048
      %1027 = vst.msk [vmem:[%s170] sm:$0xff] %vm1026, %v1013
      %1028 = vst.msk [vmem:[%s170 + $0x8] sm:$0xff] %vm1026, %v1014
      %1029 = vst.msk [vmem:[%s170 + $0x10] sm:$0xff] %vm1026, %v1015
      %1030 = vst.msk [vmem:[%s170 + $0x18] sm:$0xff] %vm1026, %v1016
      %1031 = vst.msk [vmem:[%s170 + $0x20] sm:$0xff] %vm1026, %v1017
      %1032 = vst.msk [vmem:[%s170 + $0x28] sm:$0xff] %vm1026, %v1018
      %1033 = vst.msk [vmem:[%s170 + $0x30] sm:$0xff] %vm1026, %v1019
      %1034 = vst.msk [vmem:[%s170 + $0x38] sm:$0xff] %vm1026, %v1020
      %1035 = vst.msk [vmem:[%s170 + $0x40] sm:$0xff] %vm1026, %v1021
      %1036 = vst.msk [vmem:[%s170 + $0x48] sm:$0xff] %vm1026, %v1022
      %1037 = vst.msk [vmem:[%s170 + $0x50] sm:$0xff] %vm1026, %v1023
      %1038 = vst.msk [vmem:[%s170 + $0x58] sm:$0xff] %vm1026, %v1024
      %vm1039 = vcmask 125952
      %1040 = vst.msk [vmem:[%s170 + $0x60] sm:$0xf] %vm1039, %v1025
      %p1041 = scmp.lt.s32.totalorder %s14, 1
      %s1042 = scalar_select %p1041, %s14, 1
      %s1043 = smul.addr %s1042, 13
      %s1044 = smul.addr %s1043, 8
      %s1045 = scalar_lea.vmem %s3, %s1044
      // Predicated region
      $region33: #{adversarial_autoencoder_forward.7} parent=31 // pred_check
        %p1046 = pneg %p100
      $region34: #{adversarial_autoencoder_forward.7} parent=31 // pred_check_branch
        %1048 = sbr.rel (%p1046) target = $region36
      $region35: #{adversarial_autoencoder_forward.7} parent=31 // pred_region
        _
      $region36: #{adversarial_autoencoder_forward.7} parent=31 // pred_fallthru
        _
    $region32: #{adversarial_autoencoder_forward.7} parent=5 // pred_fallthru
      _
    %p1049 = scmp.le.s32.totalorder 2, %s9
    // Predicated region
    $region37: #{adversarial_autoencoder_forward.7} parent=5 // pred_check
      %p1050 = pneg %p1049
    $region38: #{adversarial_autoencoder_forward.7} parent=5 // pred_check_branch
      %1052 = sbr.rel (%p1050) target = $region40
    $region39: #{adversarial_autoencoder_forward.7} parent=5 // pred_region
      %s1053 = ssub.s32 %s9, 2
      // Predicated region
      $region41: #{adversarial_autoencoder_forward.7} parent=39 // pred_check
        %p1054 = pneg %p106
      $region42: #{adversarial_autoencoder_forward.7} parent=39 // pred_check_branch
        %1056 = sbr.rel (%p1054) target = $region44
      $region43: #{adversarial_autoencoder_forward.7} parent=39 // pred_region
        %p1057 = scmp.lt.s32.totalorder %s15, 1
        %s1058 = scalar_select %p1057, %s15, 1
        %s1059 = smul.addr %s1058, 13
        %s1060 = smul.addr %s1059, 8
        %s1061 = scalar_lea.vmem %s3, %s1060
      $region44: #{adversarial_autoencoder_forward.7} parent=39 // pred_fallthru
        _
    $region40: #{adversarial_autoencoder_forward.7} parent=5 // pred_fallthru
      _
  $region6: #{adversarial_autoencoder_forward.7} parent=0 // loop_footer
    %s13 = sadd.s32 1, %s9
  $region7: #{adversarial_autoencoder_forward.7} parent=0 // loop_footer_branch
    %8 = sbr.rel target = $region3
  $region8: #{adversarial_autoencoder_forward.7} parent=0 // loop_exit
    _

</llo_original>
